<compile_context>
chip_gen: v5e
topology: v5e:2x2
jax: 0.10.0
libtpu: 0.0.40
codegen_flags: <defaults>
</compile_context>

<pallas_src>
import functools

import jax
import jax.numpy as jnp
from jax.experimental import pallas as pl
from jax.experimental.pallas import tpu as pltpu

LANE = 128
VMEM_LIMIT_BYTES = 32 * 1024 * 1024


def _round_up(n, m):
    return ((n + m - 1) // m) * m


# ---------------------------------------------------------------------------
# Fused forward kernel: one grid step = one batch element.
#   xcol_ref : (M1P, KP)      im2col'd input for conv1 (zero padded)
#   w1_ref   : (C1P, KP)      conv1 weight, (OUT, taps*IN) orientation
#   b1_ref   : (1, C1P)
#   w2_ref   : (9, C2P, C1P)  conv2 per-tap weights, PyTorch (OUT, IN)
#   b2_ref   : (1, C2P)
#   w{3..8}  : (Coutp, Cinp)  1x1 conv weights, PyTorch (OUT, IN)
#   b{3..8}  : (1, Coutp)
#   o_ref    : (M2P, C8P)     flattened (Ho, W1) rows x padded out-channels
#   y1_ref   : VMEM scratch (M1P, C1P) holding the flattened conv1 output
# ---------------------------------------------------------------------------
def _fused_forward_kernel(xcol_ref, w1_ref, b1_ref, w2_ref, b2_ref,
                          w3_ref, b3_ref, w4_ref, b4_ref, w5_ref, b5_ref,
                          w6_ref, b6_ref, w7_ref, b7_ref, w8_ref, b8_ref,
                          o_ref, y1_ref, *, w1_width):
    M2P = o_ref.shape[0]
    C2P = w2_ref.shape[1]
    contract_last = (((1,), (1,)), ((), ()))

    # ---- layer 1: im2col'd 3x3 conv as a single matmul + bias + ReLU -------
    y1 = jax.lax.dot_general(xcol_ref[...], w1_ref[...],
                             dimension_numbers=contract_last,
                             preferred_element_type=jnp.float32)
    y1_ref[...] = jnp.maximum(y1 + b1_ref[...], 0.0)

    # ---- layer 2: 3x3 conv as 9 whole-image tap matmuls --------------------
    # Output row q = h*W1 + w reads input row q + ky*W1 + kx; rows with
    # w >= Wo are junk but position-local and get sliced off in the wrapper.
    acc = jnp.zeros((M2P, C2P), jnp.float32)
    for ky in range(3):
        for kx in range(3):
            shift = ky * w1_width + kx                    # static per tap
            slab = y1_ref[pl.ds(shift, M2P), :]           # (M2P, C1P)
            acc = acc + jax.lax.dot_general(
                slab, w2_ref[3 * ky + kx],
                dimension_numbers=contract_last,
                preferred_element_type=jnp.float32)
    y = jnp.maximum(acc + b2_ref[...], 0.0)

    # ---- layers 3..7: 1x1 conv + ReLU chain (weights resident in VMEM) -----
    for w_ref, b_ref in ((w3_ref, b3_ref), (w4_ref, b4_ref), (w5_ref, b5_ref),
                         (w6_ref, b6_ref), (w7_ref, b7_ref)):
        y = jnp.maximum(
            jax.lax.dot_general(y, w_ref[...],
                                dimension_numbers=contract_last,
                                preferred_element_type=jnp.float32)
            + b_ref[...], 0.0)

    # ---- layer 8: 1x1 conv, no activation ----------------------------------
    y = jax.lax.dot_general(y, w8_ref[...],
                            dimension_numbers=contract_last,
                            preferred_element_type=jnp.float32) + b8_ref[...]
    o_ref[...] = y.astype(o_ref.dtype)


# ---------------------------------------------------------------------------
# One-time parameter packing (NOT per-forward hot path).
# ---------------------------------------------------------------------------
def prepare_params(params):
    packed = {}

    # conv1: fold (cin, ky, kx) taps into the contraction axis (im2col form).
    w1, b1 = params["w1"], params["b1"]
    cout, cin = w1.shape[0], w1.shape[1]
    coutp, kp = _round_up(cout, LANE), _round_up(cin * 9, LANE)
    w1f = w1.reshape(cout, cin * 9)                       # (co, ci*3*3)
    packed["w1"] = jnp.pad(w1f, ((0, coutp - cout), (0, kp - cin * 9)))
    packed["b1"] = jnp.pad(b1.reshape(1, cout), ((0, 0), (0, coutp - cout)))

    # conv2: (Cout, Cin, 3, 3) -> (9, Cout_p, Cin_p), PyTorch OUT/IN per tap.
    w2, b2 = params["w2"], params["b2"]
    cout, cin = w2.shape[0], w2.shape[1]
    coutp, cinp = _round_up(cout, LANE), _round_up(cin, LANE)
    w2t = jnp.transpose(w2, (2, 3, 0, 1)).reshape(9, cout, cin)
    packed["w2"] = jnp.pad(w2t, ((0, 0), (0, coutp - cout), (0, cinp - cin)))
    packed["b2"] = jnp.pad(b2.reshape(1, cout), ((0, 0), (0, coutp - cout)))

    # conv3..conv8: 1x1 -> (Cout_p, Cin_p), PyTorch (OUT, IN) layout.
    for i in range(3, 9):
        w, b = params[f"w{i}"], params[f"b{i}"]
        cout, cin = w.shape[0], w.shape[1]
        coutp, cinp = _round_up(cout, LANE), _round_up(cin, LANE)
        packed[f"w{i}"] = jnp.pad(w.reshape(cout, cin),
                                  ((0, coutp - cout), (0, cinp - cin)))
        packed[f"b{i}"] = jnp.pad(b.reshape(1, cout),
                                  ((0, 0), (0, coutp - cout)))
    return packed


# ---------------------------------------------------------------------------
# Full forward (default PyTorch path: maskn=None, batch_norm=False, VALID).
# ---------------------------------------------------------------------------
def cnn5x5_bc_forward(x_nchw, packed, n_out_channels=4):
    N, C, H, W = x_nchw.shape
    H1, W1 = H - 2, W - 2                 # conv1 output spatial
    Ho, Wo = H1 - 2, W1 - 2               # conv2..8 output spatial
    M1 = H1 * W1                          # conv1 output rows (flattened)
    M2 = Ho * W1                          # conv2 rows computed (w>=Wo = junk)
    M2P = _round_up(M2, 8)
    M1P = _round_up(max(M1, M2P + 2 * W1 + 2), 8)   # covers max tap shift

    KP = packed["w1"].shape[1]            # padded im2col K (128)
    C1P = packed["w1"].shape[0]           # 256
    C2P = packed["w2"].shape[1]           # 128
    C8P = packed["w8"].shape[0]           # 128

    # im2col for layer 1: taps x in-channels folded into the contraction axis.
    cols = []
    for ci in range(C):
        for ky in range(3):
            for kx in range(3):
                cols.append(x_nchw[:, ci, ky:ky + H1, kx:kx + W1])
    xcol = jnp.stack(cols, axis=-1).reshape(N, M1, C * 9).astype(jnp.float32)
    xcol = jnp.pad(xcol, ((0, 0), (0, M1P - M1), (0, KP - C * 9)))

    const2 = lambda n: (0, 0)
    const3 = lambda n: (0, 0, 0)
    in_specs = [
        pl.BlockSpec((None, M1P, KP), lambda n: (n, 0, 0)),
        pl.BlockSpec((C1P, KP), const2),
        pl.BlockSpec((1, C1P), const2),
        pl.BlockSpec((9, C2P, C1P), const3),
        pl.BlockSpec((1, C2P), const2),
    ]
    args = [xcol, packed["w1"], packed["b1"], packed["w2"], packed["b2"]]
    for i in range(3, 9):
        w = packed[f"w{i}"]
        in_specs.append(pl.BlockSpec(tuple(w.shape), const2))
        in_specs.append(pl.BlockSpec((1, w.shape[0]), const2))
        args += [w, packed[f"b{i}"]]

    kernel = functools.partial(_fused_forward_kernel, w1_width=W1)
    out = pl.pallas_call(
        kernel,
        out_shape=jax.ShapeDtypeStruct((N, M2P, C8P), jnp.float32),
        grid_spec=pltpu.PrefetchScalarGridSpec(
            num_scalar_prefetch=0,
            grid=(N,),
            in_specs=in_specs,
            out_specs=pl.BlockSpec((None, M2P, C8P), lambda n: (n, 0, 0)),
            scratch_shapes=[pltpu.VMEM((M1P, C1P), jnp.float32)],
        ),
        compiler_params=pltpu.CompilerParams(
            dimension_semantics=("parallel",),
            vmem_limit_bytes=VMEM_LIMIT_BYTES,
        ),
    )(*args)

    # Strip padded rows / channels / junk columns; back to NCHW.
    y = out[:, :M2, :n_out_channels].reshape(N, Ho, W1, n_out_channels)
    y = y[:, :, :Wo, :]
    # TODO(synk): final_transformation is set externally on the PyTorch module
    # (no default); treated as identity here.  The PyTorch forward also returns
    # matrix_dict, which is only used on the maskn path (skipped for maskn=None).
    return jnp.transpose(y, (0, 3, 1, 2))


# ---------------------------------------------------------------------------
# Pure-JAX reference (same math as the PyTorch module with defaults).
# ---------------------------------------------------------------------------
def _ref_forward(x, params):
    def conv(x, w, b, relu):
        y = jax.lax.conv_general_dilated(
            x, w, window_strides=(1, 1), padding="VALID",
            dimension_numbers=("NCHW", "OIHW", "NCHW"))
        y = y + b[None, :, None, None]
        return jnp.maximum(y, 0.0) if relu else y

    for i in range(1, 8):
        x = conv(x, params[f"w{i}"], params[f"b{i}"], relu=True)
    return conv(x, params["w8"], params["b8"], relu=False)


if __name__ == "__main__":
    key = jax.random.PRNGKey(0)
    N, C_IN, H, W = 2, 2, 16, 16
    N_OUT = 4
    layer_defs = [                       # (out_channels, in_channels, kernel)
        (232, C_IN, 3), (116, 232, 3), (58, 116, 1), (58, 58, 1),
        (58, 58, 1), (58, 58, 1), (58, 58, 1), (N_OUT, 58, 1),
    ]

    keys = jax.random.split(key, 2 * len(layer_defs) + 1)
    x = jax.random.normal(keys[0], (N, C_IN, H, W), dtype=jnp.float32)

    params = {}
    for idx, (cout, cin, ksz) in enumerate(layer_defs, start=1):
        bound = 1.0 / float((cin * ksz * ksz) ** 0.5)   # PyTorch default init
        params[f"w{idx}"] = jax.random.uniform(
            keys[2 * idx - 1], (cout, cin, ksz, ksz),
            minval=-bound, maxval=bound, dtype=jnp.float32)
        params[f"b{idx}"] = jax.random.uniform(
            keys[2 * idx], (cout,),
            minval=-bound, maxval=bound, dtype=jnp.float32)

    packed = prepare_params(params)
    fwd = jax.jit(cnn5x5_bc_forward)
    out = jax.block_until_ready(fwd(x, packed))

    ref = _ref_forward(x, params)
    assert out.shape == (N, N_OUT, H - 4, W - 4), out.shape
    max_err = float(jnp.max(jnp.abs(out - ref)))
    assert jnp.allclose(out, ref, atol=1e-4, rtol=1e-4), f"max abs err {max_err}"

    print("KERNEL_OK")
</pallas_src>

<mosaic_0001>
module attributes {stable_mosaic.version = 11 : i64} {
  func.func @_fused_forward_kernel(%arg0: i32, %arg1: memref<1x200x128xf32, #tpu.memory_space<vmem>>, %arg2: memref<256x128xf32, #tpu.memory_space<vmem>>, %arg3: memref<1x256xf32, #tpu.memory_space<vmem>>, %arg4: memref<9x128x256xf32, #tpu.memory_space<vmem>>, %arg5: memref<1x128xf32, #tpu.memory_space<vmem>>, %arg6: memref<128x128xf32, #tpu.memory_space<vmem>>, %arg7: memref<1x128xf32, #tpu.memory_space<vmem>>, %arg8: memref<128x128xf32, #tpu.memory_space<vmem>>, %arg9: memref<1x128xf32, #tpu.memory_space<vmem>>, %arg10: memref<128x128xf32, #tpu.memory_space<vmem>>, %arg11: memref<1x128xf32, #tpu.memory_space<vmem>>, %arg12: memref<128x128xf32, #tpu.memory_space<vmem>>, %arg13: memref<1x128xf32, #tpu.memory_space<vmem>>, %arg14: memref<128x128xf32, #tpu.memory_space<vmem>>, %arg15: memref<1x128xf32, #tpu.memory_space<vmem>>, %arg16: memref<128x128xf32, #tpu.memory_space<vmem>>, %arg17: memref<1x128xf32, #tpu.memory_space<vmem>>, %arg18: memref<1x168x128xf32, #tpu.memory_space<vmem>>, %arg19: memref<200x256xf32, #tpu.memory_space<vmem>>) attributes {dimension_semantics = [#tpu.dimension_semantics<parallel>], iteration_bounds = array<i64: 2>, scalar_prefetch = 0 : i64, scratch_operands = 1 : i64, tpu.core_type = #tpu.core_type<tc>, window_params = [{transform_indices = @transform_0, window_bounds = array<i64: 1, 200, 128>}, {pipeline_mode = #tpu.pipeline_mode<synchronous>, transform_indices = @transform_1, window_bounds = array<i64: 256, 128>}, {pipeline_mode = #tpu.pipeline_mode<synchronous>, transform_indices = @transform_2, window_bounds = array<i64: 1, 256>}, {pipeline_mode = #tpu.pipeline_mode<synchronous>, transform_indices = @transform_3, window_bounds = array<i64: 9, 128, 256>}, {pipeline_mode = #tpu.pipeline_mode<synchronous>, transform_indices = @transform_4, window_bounds = array<i64: 1, 128>}, {pipeline_mode = #tpu.pipeline_mode<synchronous>, transform_indices = @transform_5, window_bounds = array<i64: 128, 128>}, {pipeline_mode = #tpu.pipeline_mode<synchronous>, transform_indices = @transform_6, window_bounds = array<i64: 1, 128>}, {pipeline_mode = #tpu.pipeline_mode<synchronous>, transform_indices = @transform_7, window_bounds = array<i64: 128, 128>}, {pipeline_mode = #tpu.pipeline_mode<synchronous>, transform_indices = @transform_8, window_bounds = array<i64: 1, 128>}, {pipeline_mode = #tpu.pipeline_mode<synchronous>, transform_indices = @transform_9, window_bounds = array<i64: 128, 128>}, {pipeline_mode = #tpu.pipeline_mode<synchronous>, transform_indices = @transform_10, window_bounds = array<i64: 1, 128>}, {pipeline_mode = #tpu.pipeline_mode<synchronous>, transform_indices = @transform_11, window_bounds = array<i64: 128, 128>}, {pipeline_mode = #tpu.pipeline_mode<synchronous>, transform_indices = @transform_12, window_bounds = array<i64: 1, 128>}, {pipeline_mode = #tpu.pipeline_mode<synchronous>, transform_indices = @transform_13, window_bounds = array<i64: 128, 128>}, {pipeline_mode = #tpu.pipeline_mode<synchronous>, transform_indices = @transform_14, window_bounds = array<i64: 1, 128>}, {pipeline_mode = #tpu.pipeline_mode<synchronous>, transform_indices = @transform_15, window_bounds = array<i64: 128, 128>}, {pipeline_mode = #tpu.pipeline_mode<synchronous>, transform_indices = @transform_16, window_bounds = array<i64: 1, 128>}, {transform_indices = @transform_17, window_bounds = array<i64: 1, 168, 128>}]} {
    %c0 = arith.constant 0 : index
    %c0_0 = arith.constant 0 : index
    %c0_1 = arith.constant 0 : index
    %0 = vector.load %arg1[%c0, %c0_0, %c0_1] : memref<1x200x128xf32, #tpu.memory_space<vmem>>, vector<1x200x128xf32>
    %1 = vector.shape_cast %0 : vector<1x200x128xf32> to vector<200x128xf32>
    %c0_2 = arith.constant 0 : index
    %c0_3 = arith.constant 0 : index
    %2 = vector.load %arg2[%c0_2, %c0_3] : memref<256x128xf32, #tpu.memory_space<vmem>>, vector<256x128xf32>
    %cst = arith.constant dense<0.000000e+00> : vector<200x256xf32>
    %3 = tpu.matmul %1, %2, %cst {dimension_numbers = #tpu.dot_dimension_numbers<[1], [1], [0], [0], [0, 0, 1, 0], [], []>} : vector<200x128xf32>, vector<256x128xf32>, vector<200x256xf32> -> vector<200x256xf32>
    %c0_4 = arith.constant 0 : index
    %c0_5 = arith.constant 0 : index
    %4 = vector.load %arg3[%c0_4, %c0_5] : memref<1x256xf32, #tpu.memory_space<vmem>>, vector<1x256xf32>
    %5 = vector.broadcast %4 : vector<1x256xf32> to vector<200x256xf32>
    %6 = arith.addf %3, %5 : vector<200x256xf32>
    %cst_6 = arith.constant 0.000000e+00 : f32
    %7 = vector.broadcast %cst_6 : f32 to vector<200x256xf32>
    %8 = arith.maximumf %6, %7 : vector<200x256xf32>
    %c0_7 = arith.constant 0 : index
    %c0_8 = arith.constant 0 : index
    %9 = vector.load %arg19[%c0_7, %c0_8] : memref<200x256xf32, #tpu.memory_space<vmem>>, vector<200x256xf32>
    tpu.vector_store %arg19[%c0_7, %c0_8], %8 {strides = array<i32>} : memref<200x256xf32, #tpu.memory_space<vmem>>, vector<200x256xf32>,
    %cst_9 = arith.constant 0.000000e+00 : f32
    %10 = vector.broadcast %cst_9 : f32 to vector<168x128xf32>
    %c0_10 = arith.constant 0 : index
    %c0_11 = arith.constant 0 : index
    %11 = vector.load %arg19[%c0_10, %c0_11] : memref<200x256xf32, #tpu.memory_space<vmem>>, vector<168x256xf32>
    %c0_12 = arith.constant 0 : index
    %c0_13 = arith.constant 0 : index
    %c0_14 = arith.constant 0 : index
    %12 = vector.load %arg4[%c0_12, %c0_13, %c0_14] : memref<9x128x256xf32, #tpu.memory_space<vmem>>, vector<1x128x256xf32>
    %13 = vector.shape_cast %12 : vector<1x128x256xf32> to vector<128x256xf32>
    %cst_15 = arith.constant dense<0.000000e+00> : vector<168x128xf32>
    %14 = tpu.matmul %11, %13, %cst_15 {dimension_numbers = #tpu.dot_dimension_numbers<[1], [1], [0], [0], [0, 0, 1, 0], [], []>} : vector<168x256xf32>, vector<128x256xf32>, vector<168x128xf32> -> vector<168x128xf32>
    %15 = arith.addf %10, %14 : vector<168x128xf32>
    %c1 = arith.constant 1 : index
    %c0_16 = arith.constant 0 : index
    %16 = vector.load %arg19[%c1, %c0_16] : memref<200x256xf32, #tpu.memory_space<vmem>>, vector<168x256xf32>
    %c1_17 = arith.constant 1 : index
    %c0_18 = arith.constant 0 : index
    %c0_19 = arith.constant 0 : index
    %17 = vector.load %arg4[%c1_17, %c0_18, %c0_19] : memref<9x128x256xf32, #tpu.memory_space<vmem>>, vector<1x128x256xf32>
    %18 = vector.shape_cast %17 : vector<1x128x256xf32> to vector<128x256xf32>
    %cst_20 = arith.constant dense<0.000000e+00> : vector<168x128xf32>
    %19 = tpu.matmul %16, %18, %cst_20 {dimension_numbers = #tpu.dot_dimension_numbers<[1], [1], [0], [0], [0, 0, 1, 0], [], []>} : vector<168x256xf32>, vector<128x256xf32>, vector<168x128xf32> -> vector<168x128xf32>
    %20 = arith.addf %15, %19 : vector<168x128xf32>
    %c2 = arith.constant 2 : index
    %c0_21 = arith.constant 0 : index
    %21 = vector.load %arg19[%c2, %c0_21] : memref<200x256xf32, #tpu.memory_space<vmem>>, vector<168x256xf32>
    %c2_22 = arith.constant 2 : index
    %c0_23 = arith.constant 0 : index
    %c0_24 = arith.constant 0 : index
    %22 = vector.load %arg4[%c2_22, %c0_23, %c0_24] : memref<9x128x256xf32, #tpu.memory_space<vmem>>, vector<1x128x256xf32>
    %23 = vector.shape_cast %22 : vector<1x128x256xf32> to vector<128x256xf32>
    %cst_25 = arith.constant dense<0.000000e+00> : vector<168x128xf32>
    %24 = tpu.matmul %21, %23, %cst_25 {dimension_numbers = #tpu.dot_dimension_numbers<[1], [1], [0], [0], [0, 0, 1, 0], [], []>} : vector<168x256xf32>, vector<128x256xf32>, vector<168x128xf32> -> vector<168x128xf32>
    %25 = arith.addf %20, %24 : vector<168x128xf32>
    %c14 = arith.constant 14 : index
    %c0_26 = arith.constant 0 : index
    %26 = vector.load %arg19[%c14, %c0_26] : memref<200x256xf32, #tpu.memory_space<vmem>>, vector<168x256xf32>
    %c3 = arith.constant 3 : index
    %c0_27 = arith.constant 0 : index
    %c0_28 = arith.constant 0 : index
    %27 = vector.load %arg4[%c3, %c0_27, %c0_28] : memref<9x128x256xf32, #tpu.memory_space<vmem>>, vector<1x128x256xf32>
    %28 = vector.shape_cast %27 : vector<1x128x256xf32> to vector<128x256xf32>
    %cst_29 = arith.constant dense<0.000000e+00> : vector<168x128xf32>
    %29 = tpu.matmul %26, %28, %cst_29 {dimension_numbers = #tpu.dot_dimension_numbers<[1], [1], [0], [0], [0, 0, 1, 0], [], []>} : vector<168x256xf32>, vector<128x256xf32>, vector<168x128xf32> -> vector<168x128xf32>
    %30 = arith.addf %25, %29 : vector<168x128xf32>
    %c15 = arith.constant 15 : index
    %c0_30 = arith.constant 0 : index
    %31 = vector.load %arg19[%c15, %c0_30] : memref<200x256xf32, #tpu.memory_space<vmem>>, vector<168x256xf32>
    %c4 = arith.constant 4 : index
    %c0_31 = arith.constant 0 : index
    %c0_32 = arith.constant 0 : index
    %32 = vector.load %arg4[%c4, %c0_31, %c0_32] : memref<9x128x256xf32, #tpu.memory_space<vmem>>, vector<1x128x256xf32>
    %33 = vector.shape_cast %32 : vector<1x128x256xf32> to vector<128x256xf32>
    %cst_33 = arith.constant dense<0.000000e+00> : vector<168x128xf32>
    %34 = tpu.matmul %31, %33, %cst_33 {dimension_numbers = #tpu.dot_dimension_numbers<[1], [1], [0], [0], [0, 0, 1, 0], [], []>} : vector<168x256xf32>, vector<128x256xf32>, vector<168x128xf32> -> vector<168x128xf32>
    %35 = arith.addf %30, %34 : vector<168x128xf32>
    %c16 = arith.constant 16 : index
    %c0_34 = arith.constant 0 : index
    %36 = vector.load %arg19[%c16, %c0_34] : memref<200x256xf32, #tpu.memory_space<vmem>>, vector<168x256xf32>
    %c5 = arith.constant 5 : index
    %c0_35 = arith.constant 0 : index
    %c0_36 = arith.constant 0 : index
    %37 = vector.load %arg4[%c5, %c0_35, %c0_36] : memref<9x128x256xf32, #tpu.memory_space<vmem>>, vector<1x128x256xf32>
    %38 = vector.shape_cast %37 : vector<1x128x256xf32> to vector<128x256xf32>
    %cst_37 = arith.constant dense<0.000000e+00> : vector<168x128xf32>
    %39 = tpu.matmul %36, %38, %cst_37 {dimension_numbers = #tpu.dot_dimension_numbers<[1], [1], [0], [0], [0, 0, 1, 0], [], []>} : vector<168x256xf32>, vector<128x256xf32>, vector<168x128xf32> -> vector<168x128xf32>
    %40 = arith.addf %35, %39 : vector<168x128xf32>
    %c28 = arith.constant 28 : index
    %c0_38 = arith.constant 0 : index
    %41 = vector.load %arg19[%c28, %c0_38] : memref<200x256xf32, #tpu.memory_space<vmem>>, vector<168x256xf32>
    %c6 = arith.constant 6 : index
    %c0_39 = arith.constant 0 : index
    %c0_40 = arith.constant 0 : index
    %42 = vector.load %arg4[%c6, %c0_39, %c0_40] : memref<9x128x256xf32, #tpu.memory_space<vmem>>, vector<1x128x256xf32>
    %43 = vector.shape_cast %42 : vector<1x128x256xf32> to vector<128x256xf32>
    %cst_41 = arith.constant dense<0.000000e+00> : vector<168x128xf32>
    %44 = tpu.matmul %41, %43, %cst_41 {dimension_numbers = #tpu.dot_dimension_numbers<[1], [1], [0], [0], [0, 0, 1, 0], [], []>} : vector<168x256xf32>, vector<128x256xf32>, vector<168x128xf32> -> vector<168x128xf32>
    %45 = arith.addf %40, %44 : vector<168x128xf32>
    %c29 = arith.constant 29 : index
    %c0_42 = arith.constant 0 : index
    %46 = vector.load %arg19[%c29, %c0_42] : memref<200x256xf32, #tpu.memory_space<vmem>>, vector<168x256xf32>
    %c7 = arith.constant 7 : index
    %c0_43 = arith.constant 0 : index
    %c0_44 = arith.constant 0 : index
    %47 = vector.load %arg4[%c7, %c0_43, %c0_44] : memref<9x128x256xf32, #tpu.memory_space<vmem>>, vector<1x128x256xf32>
    %48 = vector.shape_cast %47 : vector<1x128x256xf32> to vector<128x256xf32>
    %cst_45 = arith.constant dense<0.000000e+00> : vector<168x128xf32>
    %49 = tpu.matmul %46, %48, %cst_45 {dimension_numbers = #tpu.dot_dimension_numbers<[1], [1], [0], [0], [0, 0, 1, 0], [], []>} : vector<168x256xf32>, vector<128x256xf32>, vector<168x128xf32> -> vector<168x128xf32>
    %50 = arith.addf %45, %49 : vector<168x128xf32>
    %c30 = arith.constant 30 : index
    %c0_46 = arith.constant 0 : index
    %51 = vector.load %arg19[%c30, %c0_46] : memref<200x256xf32, #tpu.memory_space<vmem>>, vector<168x256xf32>
    %c8 = arith.constant 8 : index
    %c0_47 = arith.constant 0 : index
    %c0_48 = arith.constant 0 : index
    %52 = vector.load %arg4[%c8, %c0_47, %c0_48] : memref<9x128x256xf32, #tpu.memory_space<vmem>>, vector<1x128x256xf32>
    %53 = vector.shape_cast %52 : vector<1x128x256xf32> to vector<128x256xf32>
    %cst_49 = arith.constant dense<0.000000e+00> : vector<168x128xf32>
    %54 = tpu.matmul %51, %53, %cst_49 {dimension_numbers = #tpu.dot_dimension_numbers<[1], [1], [0], [0], [0, 0, 1, 0], [], []>} : vector<168x256xf32>, vector<128x256xf32>, vector<168x128xf32> -> vector<168x128xf32>
    %55 = arith.addf %50, %54 : vector<168x128xf32>
    %c0_50 = arith.constant 0 : index
    %c0_51 = arith.constant 0 : index
    %56 = vector.load %arg5[%c0_50, %c0_51] : memref<1x128xf32, #tpu.memory_space<vmem>>, vector<1x128xf32>
    %57 = vector.broadcast %56 : vector<1x128xf32> to vector<168x128xf32>
    %58 = arith.addf %55, %57 : vector<168x128xf32>
    %cst_52 = arith.constant 0.000000e+00 : f32
    %59 = vector.broadcast %cst_52 : f32 to vector<168x128xf32>
    %60 = arith.maximumf %58, %59 : vector<168x128xf32>
    %c0_53 = arith.constant 0 : index
    %c0_54 = arith.constant 0 : index
    %61 = vector.load %arg6[%c0_53, %c0_54] : memref<128x128xf32, #tpu.memory_space<vmem>>, vector<128x128xf32>
    %cst_55 = arith.constant dense<0.000000e+00> : vector<168x128xf32>
    %62 = tpu.matmul %60, %61, %cst_55 {dimension_numbers = #tpu.dot_dimension_numbers<[1], [1], [0], [0], [0, 0, 1, 0], [], []>} : vector<168x128xf32>, vector<128x128xf32>, vector<168x128xf32> -> vector<168x128xf32>
    %c0_56 = arith.constant 0 : index
    %c0_57 = arith.constant 0 : index
    %63 = vector.load %arg7[%c0_56, %c0_57] : memref<1x128xf32, #tpu.memory_space<vmem>>, vector<1x128xf32>
    %64 = vector.broadcast %63 : vector<1x128xf32> to vector<168x128xf32>
    %65 = arith.addf %62, %64 : vector<168x128xf32>
    %cst_58 = arith.constant 0.000000e+00 : f32
    %66 = vector.broadcast %cst_58 : f32 to vector<168x128xf32>
    %67 = arith.maximumf %65, %66 : vector<168x128xf32>
    %c0_59 = arith.constant 0 : index
    %c0_60 = arith.constant 0 : index
    %68 = vector.load %arg8[%c0_59, %c0_60] : memref<128x128xf32, #tpu.memory_space<vmem>>, vector<128x128xf32>
    %cst_61 = arith.constant dense<0.000000e+00> : vector<168x128xf32>
    %69 = tpu.matmul %67, %68, %cst_61 {dimension_numbers = #tpu.dot_dimension_numbers<[1], [1], [0], [0], [0, 0, 1, 0], [], []>} : vector<168x128xf32>, vector<128x128xf32>, vector<168x128xf32> -> vector<168x128xf32>
    %c0_62 = arith.constant 0 : index
    %c0_63 = arith.constant 0 : index
    %70 = vector.load %arg9[%c0_62, %c0_63] : memref<1x128xf32, #tpu.memory_space<vmem>>, vector<1x128xf32>
    %71 = vector.broadcast %70 : vector<1x128xf32> to vector<168x128xf32>
    %72 = arith.addf %69, %71 : vector<168x128xf32>
    %cst_64 = arith.constant 0.000000e+00 : f32
    %73 = vector.broadcast %cst_64 : f32 to vector<168x128xf32>
    %74 = arith.maximumf %72, %73 : vector<168x128xf32>
    %c0_65 = arith.constant 0 : index
    %c0_66 = arith.constant 0 : index
    %75 = vector.load %arg10[%c0_65, %c0_66] : memref<128x128xf32, #tpu.memory_space<vmem>>, vector<128x128xf32>
    %cst_67 = arith.constant dense<0.000000e+00> : vector<168x128xf32>
    %76 = tpu.matmul %74, %75, %cst_67 {dimension_numbers = #tpu.dot_dimension_numbers<[1], [1], [0], [0], [0, 0, 1, 0], [], []>} : vector<168x128xf32>, vector<128x128xf32>, vector<168x128xf32> -> vector<168x128xf32>
    %c0_68 = arith.constant 0 : index
    %c0_69 = arith.constant 0 : index
    %77 = vector.load %arg11[%c0_68, %c0_69] : memref<1x128xf32, #tpu.memory_space<vmem>>, vector<1x128xf32>
    %78 = vector.broadcast %77 : vector<1x128xf32> to vector<168x128xf32>
    %79 = arith.addf %76, %78 : vector<168x128xf32>
    %cst_70 = arith.constant 0.000000e+00 : f32
    %80 = vector.broadcast %cst_70 : f32 to vector<168x128xf32>
    %81 = arith.maximumf %79, %80 : vector<168x128xf32>
    %c0_71 = arith.constant 0 : index
    %c0_72 = arith.constant 0 : index
    %82 = vector.load %arg12[%c0_71, %c0_72] : memref<128x128xf32, #tpu.memory_space<vmem>>, vector<128x128xf32>
    %cst_73 = arith.constant dense<0.000000e+00> : vector<168x128xf32>
    %83 = tpu.matmul %81, %82, %cst_73 {dimension_numbers = #tpu.dot_dimension_numbers<[1], [1], [0], [0], [0, 0, 1, 0], [], []>} : vector<168x128xf32>, vector<128x128xf32>, vector<168x128xf32> -> vector<168x128xf32>
    %c0_74 = arith.constant 0 : index
    %c0_75 = arith.constant 0 : index
    %84 = vector.load %arg13[%c0_74, %c0_75] : memref<1x128xf32, #tpu.memory_space<vmem>>, vector<1x128xf32>
    %85 = vector.broadcast %84 : vector<1x128xf32> to vector<168x128xf32>
    %86 = arith.addf %83, %85 : vector<168x128xf32>
    %cst_76 = arith.constant 0.000000e+00 : f32
    %87 = vector.broadcast %cst_76 : f32 to vector<168x128xf32>
    %88 = arith.maximumf %86, %87 : vector<168x128xf32>
    %c0_77 = arith.constant 0 : index
    %c0_78 = arith.constant 0 : index
    %89 = vector.load %arg14[%c0_77, %c0_78] : memref<128x128xf32, #tpu.memory_space<vmem>>, vector<128x128xf32>
    %cst_79 = arith.constant dense<0.000000e+00> : vector<168x128xf32>
    %90 = tpu.matmul %88, %89, %cst_79 {dimension_numbers = #tpu.dot_dimension_numbers<[1], [1], [0], [0], [0, 0, 1, 0], [], []>} : vector<168x128xf32>, vector<128x128xf32>, vector<168x128xf32> -> vector<168x128xf32>
    %c0_80 = arith.constant 0 : index
    %c0_81 = arith.constant 0 : index
    %91 = vector.load %arg15[%c0_80, %c0_81] : memref<1x128xf32, #tpu.memory_space<vmem>>, vector<1x128xf32>
    %92 = vector.broadcast %91 : vector<1x128xf32> to vector<168x128xf32>
    %93 = arith.addf %90, %92 : vector<168x128xf32>
    %cst_82 = arith.constant 0.000000e+00 : f32
    %94 = vector.broadcast %cst_82 : f32 to vector<168x128xf32>
    %95 = arith.maximumf %93, %94 : vector<168x128xf32>
    %c0_83 = arith.constant 0 : index
    %c0_84 = arith.constant 0 : index
    %96 = vector.load %arg16[%c0_83, %c0_84] : memref<128x128xf32, #tpu.memory_space<vmem>>, vector<128x128xf32>
    %cst_85 = arith.constant dense<0.000000e+00> : vector<168x128xf32>
    %97 = tpu.matmul %95, %96, %cst_85 {dimension_numbers = #tpu.dot_dimension_numbers<[1], [1], [0], [0], [0, 0, 1, 0], [], []>} : vector<168x128xf32>, vector<128x128xf32>, vector<168x128xf32> -> vector<168x128xf32>
    %c0_86 = arith.constant 0 : index
    %c0_87 = arith.constant 0 : index
    %98 = vector.load %arg17[%c0_86, %c0_87] : memref<1x128xf32, #tpu.memory_space<vmem>>, vector<1x128xf32>
    %99 = vector.broadcast %98 : vector<1x128xf32> to vector<168x128xf32>
    %100 = arith.addf %97, %99 : vector<168x128xf32>
    %c0_88 = arith.constant 0 : index
    %c0_89 = arith.constant 0 : index
    %c0_90 = arith.constant 0 : index
    %101 = vector.load %arg18[%c0_88, %c0_89, %c0_90] : memref<1x168x128xf32, #tpu.memory_space<vmem>>, vector<1x168x128xf32>
    %102 = vector.shape_cast %101 : vector<1x168x128xf32> to vector<168x128xf32>
    %103 = vector.shape_cast %100 : vector<168x128xf32> to vector<1x168x128xf32>
    tpu.vector_store %arg18[%c0_88, %c0_89, %c0_90], %103 {strides = array<i32>} : memref<1x168x128xf32, #tpu.memory_space<vmem>>, vector<1x168x128xf32>,
    return
  }
  func.func @transform_0(%arg0: i32) -> (i32, i32, i32) {
    %c0_i32 = arith.constant 0 : i32
    %c0_i32_0 = arith.constant 0 : i32
    %c0_i32_1 = arith.constant 0 : i32
    return %arg0, %c0_i32, %c0_i32_0 : i32, i32, i32
  }
  func.func @transform_1(%arg0: i32) -> (i32, i32) {
    %c0_i32 = arith.constant 0 : i32
    %c0_i32_0 = arith.constant 0 : i32
    %c0_i32_1 = arith.constant 0 : i32
    return %c0_i32, %c0_i32_0 : i32, i32
  }
  func.func @transform_2(%arg0: i32) -> (i32, i32) {
    %c0_i32 = arith.constant 0 : i32
    %c0_i32_0 = arith.constant 0 : i32
    %c0_i32_1 = arith.constant 0 : i32
    return %c0_i32, %c0_i32_0 : i32, i32
  }
  func.func @transform_3(%arg0: i32) -> (i32, i32, i32) {
    %c0_i32 = arith.constant 0 : i32
    %c0_i32_0 = arith.constant 0 : i32
    %c0_i32_1 = arith.constant 0 : i32
    %c0_i32_2 = arith.constant 0 : i32
    return %c0_i32, %c0_i32_0, %c0_i32_1 : i32, i32, i32
  }
  func.func @transform_4(%arg0: i32) -> (i32, i32) {
    %c0_i32 = arith.constant 0 : i32
    %c0_i32_0 = arith.constant 0 : i32
    %c0_i32_1 = arith.constant 0 : i32
    return %c0_i32, %c0_i32_0 : i32, i32
  }
  func.func @transform_5(%arg0: i32) -> (i32, i32) {
    %c0_i32 = arith.constant 0 : i32
    %c0_i32_0 = arith.constant 0 : i32
    %c0_i32_1 = arith.constant 0 : i32
    return %c0_i32, %c0_i32_0 : i32, i32
  }
  func.func @transform_6(%arg0: i32) -> (i32, i32) {
    %c0_i32 = arith.constant 0 : i32
    %c0_i32_0 = arith.constant 0 : i32
    %c0_i32_1 = arith.constant 0 : i32
    return %c0_i32, %c0_i32_0 : i32, i32
  }
  func.func @transform_7(%arg0: i32) -> (i32, i32) {
    %c0_i32 = arith.constant 0 : i32
    %c0_i32_0 = arith.constant 0 : i32
    %c0_i32_1 = arith.constant 0 : i32
    return %c0_i32, %c0_i32_0 : i32, i32
  }
  func.func @transform_8(%arg0: i32) -> (i32, i32) {
    %c0_i32 = arith.constant 0 : i32
    %c0_i32_0 = arith.constant 0 : i32
    %c0_i32_1 = arith.constant 0 : i32
    return %c0_i32, %c0_i32_0 : i32, i32
  }
  func.func @transform_9(%arg0: i32) -> (i32, i32) {
    %c0_i32 = arith.constant 0 : i32
    %c0_i32_0 = arith.constant 0 : i32
    %c0_i32_1 = arith.constant 0 : i32
    return %c0_i32, %c0_i32_0 : i32, i32
  }
  func.func @transform_10(%arg0: i32) -> (i32, i32) {
    %c0_i32 = arith.constant 0 : i32
    %c0_i32_0 = arith.constant 0 : i32
    %c0_i32_1 = arith.constant 0 : i32
    return %c0_i32, %c0_i32_0 : i32, i32
  }
  func.func @transform_11(%arg0: i32) -> (i32, i32) {
    %c0_i32 = arith.constant 0 : i32
    %c0_i32_0 = arith.constant 0 : i32
    %c0_i32_1 = arith.constant 0 : i32
    return %c0_i32, %c0_i32_0 : i32, i32
  }
  func.func @transform_12(%arg0: i32) -> (i32, i32) {
    %c0_i32 = arith.constant 0 : i32
    %c0_i32_0 = arith.constant 0 : i32
    %c0_i32_1 = arith.constant 0 : i32
    return %c0_i32, %c0_i32_0 : i32, i32
  }
  func.func @transform_13(%arg0: i32) -> (i32, i32) {
    %c0_i32 = arith.constant 0 : i32
    %c0_i32_0 = arith.constant 0 : i32
    %c0_i32_1 = arith.constant 0 : i32
    return %c0_i32, %c0_i32_0 : i32, i32
  }
  func.func @transform_14(%arg0: i32) -> (i32, i32) {
    %c0_i32 = arith.constant 0 : i32
    %c0_i32_0 = arith.constant 0 : i32
    %c0_i32_1 = arith.constant 0 : i32
    return %c0_i32, %c0_i32_0 : i32, i32
  }
  func.func @transform_15(%arg0: i32) -> (i32, i32) {
    %c0_i32 = arith.constant 0 : i32
    %c0_i32_0 = arith.constant 0 : i32
    %c0_i32_1 = arith.constant 0 : i32
    return %c0_i32, %c0_i32_0 : i32, i32
  }
  func.func @transform_16(%arg0: i32) -> (i32, i32) {
    %c0_i32 = arith.constant 0 : i32
    %c0_i32_0 = arith.constant 0 : i32
    %c0_i32_1 = arith.constant 0 : i32
    return %c0_i32, %c0_i32_0 : i32, i32
  }
  func.func @transform_17(%arg0: i32) -> (i32, i32, i32) {
    %c0_i32 = arith.constant 0 : i32
    %c0_i32_0 = arith.constant 0 : i32
    %c0_i32_1 = arith.constant 0 : i32
    return %arg0, %c0_i32, %c0_i32_0 : i32, i32, i32
  }
}

</mosaic_0001>

<llo_original>
// kernel: cnn5x5_bc_forward.1
$region0: #{cnn5x5_bc_forward.1}
  #allocation0 [shape = 'u32[]', space=smem, size = 0x4, offset = 0x4, fixed_abs, tag = 'smem constant byte address 0x4 - core index']
  #allocation1 [shape = 'u32[72,128]{1,0:T(1,128)}', space=vmem, size = 0x9000, scoped, tag = 'internal scratch']
  #allocation2 [shape = 'f32[200,256]{1,0:T(8,128)}', space=vmem, size = 0x32000, scoped, tag = 'scratch operand']
  %s0 = inlined_call_operand.vmem [shape: f32[2,200,128], index: 0, kind: input, shape index: {}]
  %s1 = inlined_call_operand.vmem [shape: f32[256,128], index: 1, kind: input, shape index: {}]
  %s2 = inlined_call_operand.vmem [shape: f32[1,256], index: 2, kind: input, shape index: {}]
  %s3 = inlined_call_operand.vmem [shape: f32[9,128,256], index: 3, kind: input, shape index: {}]
  %s4 = inlined_call_operand.vmem [shape: f32[1,128], index: 4, kind: input, shape index: {}]
  %s5 = inlined_call_operand.vmem [shape: f32[128,128], index: 5, kind: input, shape index: {}]
  %s6 = inlined_call_operand.vmem [shape: f32[1,128], index: 6, kind: input, shape index: {}]
  %s7 = inlined_call_operand.vmem [shape: f32[128,128], index: 7, kind: input, shape index: {}]
  %s8 = inlined_call_operand.vmem [shape: f32[1,128], index: 8, kind: input, shape index: {}]
  %s9 = inlined_call_operand.vmem [shape: f32[128,128], index: 9, kind: input, shape index: {}]
  %s10 = inlined_call_operand.vmem [shape: f32[1,128], index: 10, kind: input, shape index: {}]
  %s11 = inlined_call_operand.vmem [shape: f32[128,128], index: 11, kind: input, shape index: {}]
  %s12 = inlined_call_operand.vmem [shape: f32[1,128], index: 12, kind: input, shape index: {}]
  %s13 = inlined_call_operand.vmem [shape: f32[128,128], index: 13, kind: input, shape index: {}]
  %s14 = inlined_call_operand.vmem [shape: f32[1,128], index: 14, kind: input, shape index: {}]
  %s15 = inlined_call_operand.hbm [shape: f32[128,128], index: 15, kind: input, shape index: {}]
  %s16 = inlined_call_operand.vmem [shape: f32[1,128], index: 16, kind: input, shape index: {}]
  %s17 = inlined_call_operand.vmem [shape: f32[2,168,128], index: 17, kind: output, shape index: {}]
  %s18 = sld [smem:[#allocation0]]
  $region105: #{cnn5x5_bc_forward.1} parent=0
    _
  %s20 = ssub.s32 1, %s18
  %s21 = scalar_select 0, %s20, %s18
  $region1: #{cnn5x5_bc_forward.1} parent=0
    #allocation3 [shape = 'u8[65536]{0}', space=vmem, size = 0x10000, scoped, tag = 'input window, operand 15, single buffered']
    #allocation4 [shape = 's32[2]{0}', space=sflag, size = 0x8, scoped, tag = 'scoped memory for cnn5x5_bc_forward.1']
    %22 = vsyncpa [#allocation4], 0
    loop: start=0, step=1, limit=4
    $region2: #{cnn5x5_bc_forward.1} parent=1 // loop_pre_header
      _
    $region3: #{cnn5x5_bc_forward.1} parent=1 // loop_header
      %s24 = sphi 0, %s28
      %p25 = scmp.ge.s32.totalorder %s24, 4
      %s34 = sphi 0, %s36
      %s37 = sphi 0, %s34
      %s38 = sphi 0, %s37
      %s54 = sphi 0, %s38
      %s58 = sphi 0, %s58
      %s60 = sphi 0, %s58
      %s61 = sphi 0, %s60
      %s75 = sphi 0, %s61
      %s79 = sphi 0, %s79
      %s81 = sphi 0, %s79
      %s82 = sphi 0, %s81
      %s96 = sphi 0, %s82
      %s100 = sphi 0, %s100
      %s102 = sphi 0, %s100
      %s103 = sphi 0, %s102
      %s117 = sphi 0, %s103
      %s121 = sphi 0, %s121
      %s123 = sphi 0, %s121
      %s124 = sphi 0, %s123
      %s138 = sphi 0, %s124
      %s142 = sphi 0, %s142
      %s144 = sphi 0, %s142
      %s145 = sphi 0, %s144
      %s159 = sphi 0, %s145
      %s163 = sphi 0, %s163
      %s165 = sphi 0, %s163
      %s166 = sphi 0, %s165
      %s180 = sphi 0, %s166
      %s184 = sphi 0, %s184
      %s186 = sphi 0, %s184
      %s187 = sphi 0, %s186
      %s201 = sphi 0, %s187
      %s205 = sphi 0, %s205
      %s207 = sphi 0, %s205
      %s208 = sphi 0, %s207
      %s222 = sphi 0, %s208
      %s226 = sphi 0, %s226
      %s228 = sphi 0, %s226
      %s229 = sphi 0, %s228
      %s243 = sphi 0, %s229
      %s247 = sphi 0, %s247
      %s249 = sphi 0, %s247
      %s250 = sphi 0, %s249
      %s264 = sphi 0, %s250
      %s268 = sphi 0, %s268
      %s270 = sphi 0, %s268
      %s271 = sphi 0, %s270
      %s285 = sphi 0, %s271
      %s289 = sphi 0, %s289
      %s291 = sphi 0, %s289
      %s292 = sphi 0, %s291
      %s306 = sphi 0, %s292
      %s310 = sphi 0, %s310
      %s312 = sphi 0, %s310
      %s313 = sphi 0, %s312
      %s327 = sphi 0, %s313
      %s331 = sphi 0, %s331
      %s333 = sphi 0, %s331
      %s334 = sphi 0, %s333
      %s348 = sphi 0, %s334
      %s352 = sphi 0, %s352
      %s354 = sphi 0, %s352
      %s355 = sphi 0, %s354
      %s369 = sphi 0, %s355
      %s373 = sphi 0, %s373
      %s375 = sphi 0, %s373
      %s376 = sphi 0, %s375
      %s390 = sphi 0, %s376
      %s396 = sphi 0, %s398
      %s399 = sphi 0, %s396
      %s400 = sphi 0, %s399
      %s416 = sphi 0, %s400
    $region4: #{cnn5x5_bc_forward.1} parent=1 // loop_header_branch
      %27 = sbr.rel (%p25) target = $region8
    $region5: #{cnn5x5_bc_forward.1} parent=1 // loop_body
      %s29 = ssub.s32 %s24, 1
      %s30 = ssub.s32 %s24, 2
      %s31 = sadd.s32 %s24, 1
      %s32 = ssub.s32 %s24, %s31
      %p33 = scmp.eq.s32.totalorder %s32, 0
      %s35 = sadd.s32 %s34, 1
      %s36 = scalar_select %p33, %s34, %s35
      %p39 = pneg %p33
      %p40 = scmp.eq.s32.totalorder %s24, 1
      %p41 = por %p39, %p40
      %p42 = scmp.ne.s32.totalorder %s34, %s37
      %p43 = scmp.eq.s32.totalorder %s24, 0
      %p44 = por %p42, %p43
      %p45 = scmp.ne.s32.totalorder %s34, %s37
      %p46 = scmp.eq.s32.totalorder %s29, 1
      %p47 = por %p45, %p46
      %p48 = scmp.ne.s32.totalorder %s37, %s38
      %p49 = scmp.eq.s32.totalorder %s29, 0
      %p50 = por %p48, %p49
      %p51 = scmp.ne.s32.totalorder %s37, %s38
      %p52 = scmp.eq.s32.totalorder %s30, 1
      %p53 = por %p51, %p52
      %p55 = scmp.ne.s32.totalorder %s38, %s54
      %p56 = scmp.eq.s32.totalorder %s30, 0
      %p57 = por %p55, %p56
      %s59 = sadd.s32 %s58, 1
      %p62 = scmp.eq.s32.totalorder %s24, 1
      %p63 = scmp.ne.s32.totalorder %s58, %s60
      %p64 = scmp.eq.s32.totalorder %s24, 0
      %p65 = por %p63, %p64
      %p66 = scmp.ne.s32.totalorder %s58, %s60
      %p67 = scmp.eq.s32.totalorder %s29, 1
      %p68 = por %p66, %p67
      %p69 = scmp.ne.s32.totalorder %s60, %s61
      %p70 = scmp.eq.s32.totalorder %s29, 0
      %p71 = por %p69, %p70
      %p72 = scmp.ne.s32.totalorder %s60, %s61
      %p73 = scmp.eq.s32.totalorder %s30, 1
      %p74 = por %p72, %p73
      %p76 = scmp.ne.s32.totalorder %s61, %s75
      %p77 = scmp.eq.s32.totalorder %s30, 0
      %p78 = por %p76, %p77
      %s80 = sadd.s32 %s79, 1
      %p83 = scmp.eq.s32.totalorder %s24, 1
      %p84 = scmp.ne.s32.totalorder %s79, %s81
      %p85 = scmp.eq.s32.totalorder %s24, 0
      %p86 = por %p84, %p85
      %p87 = scmp.ne.s32.totalorder %s79, %s81
      %p88 = scmp.eq.s32.totalorder %s29, 1
      %p89 = por %p87, %p88
      %p90 = scmp.ne.s32.totalorder %s81, %s82
      %p91 = scmp.eq.s32.totalorder %s29, 0
      %p92 = por %p90, %p91
      %p93 = scmp.ne.s32.totalorder %s81, %s82
      %p94 = scmp.eq.s32.totalorder %s30, 1
      %p95 = por %p93, %p94
      %p97 = scmp.ne.s32.totalorder %s82, %s96
      %p98 = scmp.eq.s32.totalorder %s30, 0
      %p99 = por %p97, %p98
      %s101 = sadd.s32 %s100, 1
      %p104 = scmp.eq.s32.totalorder %s24, 1
      %p105 = scmp.ne.s32.totalorder %s100, %s102
      %p106 = scmp.eq.s32.totalorder %s24, 0
      %p107 = por %p105, %p106
      %p108 = scmp.ne.s32.totalorder %s100, %s102
      %p109 = scmp.eq.s32.totalorder %s29, 1
      %p110 = por %p108, %p109
      %p111 = scmp.ne.s32.totalorder %s102, %s103
      %p112 = scmp.eq.s32.totalorder %s29, 0
      %p113 = por %p111, %p112
      %p114 = scmp.ne.s32.totalorder %s102, %s103
      %p115 = scmp.eq.s32.totalorder %s30, 1
      %p116 = por %p114, %p115
      %p118 = scmp.ne.s32.totalorder %s103, %s117
      %p119 = scmp.eq.s32.totalorder %s30, 0
      %p120 = por %p118, %p119
      %s122 = sadd.s32 %s121, 1
      %p125 = scmp.eq.s32.totalorder %s24, 1
      %p126 = scmp.ne.s32.totalorder %s121, %s123
      %p127 = scmp.eq.s32.totalorder %s24, 0
      %p128 = por %p126, %p127
      %p129 = scmp.ne.s32.totalorder %s121, %s123
      %p130 = scmp.eq.s32.totalorder %s29, 1
      %p131 = por %p129, %p130
      %p132 = scmp.ne.s32.totalorder %s123, %s124
      %p133 = scmp.eq.s32.totalorder %s29, 0
      %p134 = por %p132, %p133
      %p135 = scmp.ne.s32.totalorder %s123, %s124
      %p136 = scmp.eq.s32.totalorder %s30, 1
      %p137 = por %p135, %p136
      %p139 = scmp.ne.s32.totalorder %s124, %s138
      %p140 = scmp.eq.s32.totalorder %s30, 0
      %p141 = por %p139, %p140
      %s143 = sadd.s32 %s142, 1
      %p146 = scmp.eq.s32.totalorder %s24, 1
      %p147 = scmp.ne.s32.totalorder %s142, %s144
      %p148 = scmp.eq.s32.totalorder %s24, 0
      %p149 = por %p147, %p148
      %p150 = scmp.ne.s32.totalorder %s142, %s144
      %p151 = scmp.eq.s32.totalorder %s29, 1
      %p152 = por %p150, %p151
      %p153 = scmp.ne.s32.totalorder %s144, %s145
      %p154 = scmp.eq.s32.totalorder %s29, 0
      %p155 = por %p153, %p154
      %p156 = scmp.ne.s32.totalorder %s144, %s145
      %p157 = scmp.eq.s32.totalorder %s30, 1
      %p158 = por %p156, %p157
      %p160 = scmp.ne.s32.totalorder %s145, %s159
      %p161 = scmp.eq.s32.totalorder %s30, 0
      %p162 = por %p160, %p161
      %s164 = sadd.s32 %s163, 1
      %p167 = scmp.eq.s32.totalorder %s24, 1
      %p168 = scmp.ne.s32.totalorder %s163, %s165
      %p169 = scmp.eq.s32.totalorder %s24, 0
      %p170 = por %p168, %p169
      %p171 = scmp.ne.s32.totalorder %s163, %s165
      %p172 = scmp.eq.s32.totalorder %s29, 1
      %p173 = por %p171, %p172
      %p174 = scmp.ne.s32.totalorder %s165, %s166
      %p175 = scmp.eq.s32.totalorder %s29, 0
      %p176 = por %p174, %p175
      %p177 = scmp.ne.s32.totalorder %s165, %s166
      %p178 = scmp.eq.s32.totalorder %s30, 1
      %p179 = por %p177, %p178
      %p181 = scmp.ne.s32.totalorder %s166, %s180
      %p182 = scmp.eq.s32.totalorder %s30, 0
      %p183 = por %p181, %p182
      %s185 = sadd.s32 %s184, 1
      %p188 = scmp.eq.s32.totalorder %s24, 1
      %p189 = scmp.ne.s32.totalorder %s184, %s186
      %p190 = scmp.eq.s32.totalorder %s24, 0
      %p191 = por %p189, %p190
      %p192 = scmp.ne.s32.totalorder %s184, %s186
      %p193 = scmp.eq.s32.totalorder %s29, 1
      %p194 = por %p192, %p193
      %p195 = scmp.ne.s32.totalorder %s186, %s187
      %p196 = scmp.eq.s32.totalorder %s29, 0
      %p197 = por %p195, %p196
      %p198 = scmp.ne.s32.totalorder %s186, %s187
      %p199 = scmp.eq.s32.totalorder %s30, 1
      %p200 = por %p198, %p199
      %p202 = scmp.ne.s32.totalorder %s187, %s201
      %p203 = scmp.eq.s32.totalorder %s30, 0
      %p204 = por %p202, %p203
      %s206 = sadd.s32 %s205, 1
      %p209 = scmp.eq.s32.totalorder %s24, 1
      %p210 = scmp.ne.s32.totalorder %s205, %s207
      %p211 = scmp.eq.s32.totalorder %s24, 0
      %p212 = por %p210, %p211
      %p213 = scmp.ne.s32.totalorder %s205, %s207
      %p214 = scmp.eq.s32.totalorder %s29, 1
      %p215 = por %p213, %p214
      %p216 = scmp.ne.s32.totalorder %s207, %s208
      %p217 = scmp.eq.s32.totalorder %s29, 0
      %p218 = por %p216, %p217
      %p219 = scmp.ne.s32.totalorder %s207, %s208
      %p220 = scmp.eq.s32.totalorder %s30, 1
      %p221 = por %p219, %p220
      %p223 = scmp.ne.s32.totalorder %s208, %s222
      %p224 = scmp.eq.s32.totalorder %s30, 0
      %p225 = por %p223, %p224
      %s227 = sadd.s32 %s226, 1
      %p230 = scmp.eq.s32.totalorder %s24, 1
      %p231 = scmp.ne.s32.totalorder %s226, %s228
      %p232 = scmp.eq.s32.totalorder %s24, 0
      %p233 = por %p231, %p232
      %p234 = scmp.ne.s32.totalorder %s226, %s228
      %p235 = scmp.eq.s32.totalorder %s29, 1
      %p236 = por %p234, %p235
      %p237 = scmp.ne.s32.totalorder %s228, %s229
      %p238 = scmp.eq.s32.totalorder %s29, 0
      %p239 = por %p237, %p238
      %p240 = scmp.ne.s32.totalorder %s228, %s229
      %p241 = scmp.eq.s32.totalorder %s30, 1
      %p242 = por %p240, %p241
      %p244 = scmp.ne.s32.totalorder %s229, %s243
      %p245 = scmp.eq.s32.totalorder %s30, 0
      %p246 = por %p244, %p245
      %s248 = sadd.s32 %s247, 1
      %p251 = scmp.eq.s32.totalorder %s24, 1
      %p252 = scmp.ne.s32.totalorder %s247, %s249
      %p253 = scmp.eq.s32.totalorder %s24, 0
      %p254 = por %p252, %p253
      %p255 = scmp.ne.s32.totalorder %s247, %s249
      %p256 = scmp.eq.s32.totalorder %s29, 1
      %p257 = por %p255, %p256
      %p258 = scmp.ne.s32.totalorder %s249, %s250
      %p259 = scmp.eq.s32.totalorder %s29, 0
      %p260 = por %p258, %p259
      %p261 = scmp.ne.s32.totalorder %s249, %s250
      %p262 = scmp.eq.s32.totalorder %s30, 1
      %p263 = por %p261, %p262
      %p265 = scmp.ne.s32.totalorder %s250, %s264
      %p266 = scmp.eq.s32.totalorder %s30, 0
      %p267 = por %p265, %p266
      %s269 = sadd.s32 %s268, 1
      %p272 = scmp.eq.s32.totalorder %s24, 1
      %p273 = scmp.ne.s32.totalorder %s268, %s270
      %p274 = scmp.eq.s32.totalorder %s24, 0
      %p275 = por %p273, %p274
      %p276 = scmp.ne.s32.totalorder %s268, %s270
      %p277 = scmp.eq.s32.totalorder %s29, 1
      %p278 = por %p276, %p277
      %p279 = scmp.ne.s32.totalorder %s270, %s271
      %p280 = scmp.eq.s32.totalorder %s29, 0
      %p281 = por %p279, %p280
      %p282 = scmp.ne.s32.totalorder %s270, %s271
      %p283 = scmp.eq.s32.totalorder %s30, 1
      %p284 = por %p282, %p283
      %p286 = scmp.ne.s32.totalorder %s271, %s285
      %p287 = scmp.eq.s32.totalorder %s30, 0
      %p288 = por %p286, %p287
      %s290 = sadd.s32 %s289, 1
      %p293 = scmp.eq.s32.totalorder %s24, 1
      %p294 = scmp.ne.s32.totalorder %s289, %s291
      %p295 = scmp.eq.s32.totalorder %s24, 0
      %p296 = por %p294, %p295
      %p297 = scmp.ne.s32.totalorder %s289, %s291
      %p298 = scmp.eq.s32.totalorder %s29, 1
      %p299 = por %p297, %p298
      %p300 = scmp.ne.s32.totalorder %s291, %s292
      %p301 = scmp.eq.s32.totalorder %s29, 0
      %p302 = por %p300, %p301
      %p303 = scmp.ne.s32.totalorder %s291, %s292
      %p304 = scmp.eq.s32.totalorder %s30, 1
      %p305 = por %p303, %p304
      %p307 = scmp.ne.s32.totalorder %s292, %s306
      %p308 = scmp.eq.s32.totalorder %s30, 0
      %p309 = por %p307, %p308
      %s311 = sadd.s32 %s310, 1
      %p314 = scmp.eq.s32.totalorder %s24, 1
      %p315 = scmp.ne.s32.totalorder %s310, %s312
      %p316 = scmp.eq.s32.totalorder %s24, 0
      %p317 = por %p315, %p316
      %p318 = scmp.ne.s32.totalorder %s310, %s312
      %p319 = scmp.eq.s32.totalorder %s29, 1
      %p320 = por %p318, %p319
      %p321 = scmp.ne.s32.totalorder %s312, %s313
      %p322 = scmp.eq.s32.totalorder %s29, 0
      %p323 = por %p321, %p322
      %p324 = scmp.ne.s32.totalorder %s312, %s313
      %p325 = scmp.eq.s32.totalorder %s30, 1
      %p326 = por %p324, %p325
      %p328 = scmp.ne.s32.totalorder %s313, %s327
      %p329 = scmp.eq.s32.totalorder %s30, 0
      %p330 = por %p328, %p329
      %s332 = sadd.s32 %s331, 1
      %p335 = scmp.eq.s32.totalorder %s24, 1
      %p336 = scmp.ne.s32.totalorder %s331, %s333
      %p337 = scmp.eq.s32.totalorder %s24, 0
      %p338 = por %p336, %p337
      %p339 = scmp.ne.s32.totalorder %s331, %s333
      %p340 = scmp.eq.s32.totalorder %s29, 1
      %p341 = por %p339, %p340
      %p342 = scmp.ne.s32.totalorder %s333, %s334
      %p343 = scmp.eq.s32.totalorder %s29, 0
      %p344 = por %p342, %p343
      %p345 = scmp.ne.s32.totalorder %s333, %s334
      %p346 = scmp.eq.s32.totalorder %s30, 1
      %p347 = por %p345, %p346
      %p349 = scmp.ne.s32.totalorder %s334, %s348
      %p350 = scmp.eq.s32.totalorder %s30, 0
      %p351 = por %p349, %p350
      %s353 = sadd.s32 %s352, 1
      %p356 = scmp.eq.s32.totalorder %s24, 1
      %p357 = scmp.ne.s32.totalorder %s352, %s354
      %p358 = scmp.eq.s32.totalorder %s24, 0
      %p359 = por %p357, %p358
      %p360 = scmp.ne.s32.totalorder %s352, %s354
      %p361 = scmp.eq.s32.totalorder %s29, 1
      %p362 = por %p360, %p361
      %p363 = scmp.ne.s32.totalorder %s354, %s355
      %p364 = scmp.eq.s32.totalorder %s29, 0
      %p365 = por %p363, %p364
      %p366 = scmp.ne.s32.totalorder %s354, %s355
      %p367 = scmp.eq.s32.totalorder %s30, 1
      %p368 = por %p366, %p367
      %p370 = scmp.ne.s32.totalorder %s355, %s369
      %p371 = scmp.eq.s32.totalorder %s30, 0
      %p372 = por %p370, %p371
      %s374 = sadd.s32 %s373, 1
      %p377 = scmp.eq.s32.totalorder %s24, 1
      %p378 = scmp.ne.s32.totalorder %s373, %s375
      %p379 = scmp.eq.s32.totalorder %s24, 0
      %p380 = por %p378, %p379
      %p381 = scmp.ne.s32.totalorder %s373, %s375
      %p382 = scmp.eq.s32.totalorder %s29, 1
      %p383 = por %p381, %p382
      %p384 = scmp.ne.s32.totalorder %s375, %s376
      %p385 = scmp.eq.s32.totalorder %s29, 0
      %p386 = por %p384, %p385
      %p387 = scmp.ne.s32.totalorder %s375, %s376
      %p388 = scmp.eq.s32.totalorder %s30, 1
      %p389 = por %p387, %p388
      %p391 = scmp.ne.s32.totalorder %s376, %s390
      %p392 = scmp.eq.s32.totalorder %s30, 0
      %p393 = por %p391, %p392
      %s394 = ssub.s32 %s24, %s31
      %p395 = scmp.eq.s32.totalorder %s394, 0
      %s397 = sadd.s32 %s396, 1
      %s398 = scalar_select %p395, %s396, %s397
      %p401 = pneg %p395
      %p402 = scmp.eq.s32.totalorder %s24, 1
      %p403 = por %p401, %p402
      %p404 = scmp.ne.s32.totalorder %s396, %s399
      %p405 = scmp.eq.s32.totalorder %s24, 0
      %p406 = por %p404, %p405
      %p407 = scmp.ne.s32.totalorder %s396, %s399
      %p408 = scmp.eq.s32.totalorder %s29, 1
      %p409 = por %p407, %p408
      %p410 = scmp.ne.s32.totalorder %s399, %s400
      %p411 = scmp.eq.s32.totalorder %s29, 0
      %p412 = por %p410, %p411
      %p413 = scmp.ne.s32.totalorder %s399, %s400
      %p414 = scmp.eq.s32.totalorder %s30, 1
      %p415 = por %p413, %p414
      %p417 = scmp.ne.s32.totalorder %s400, %s416
      %p418 = scmp.eq.s32.totalorder %s30, 0
      %p419 = por %p417, %p418
      %p420 = scmp.le.s32.totalorder 1, %s24
      %p421 = scmp.lt.s32.totalorder %s24, 3
      %p422 = pnand %p420, %p421
      %p423 = pneg %p422
      // Predicated region
      $region9: #{cnn5x5_bc_forward.1} parent=5 // pred_check
        _
      $region10: #{cnn5x5_bc_forward.1} parent=5 // pred_check_branch
        %425 = sbr.rel (%p422) target = $region12
      $region11: #{cnn5x5_bc_forward.1} parent=5 // pred_region
        %s426 = ssub.s32 %s24, 1
        // Predicated region
        $region13: #{cnn5x5_bc_forward.1} parent=11 // pred_check
          %p427 = pneg %p71
        $region14: #{cnn5x5_bc_forward.1} parent=11 // pred_check_branch
          %429 = sbr.rel (%p427) target = $region16
        $region15: #{cnn5x5_bc_forward.1} parent=11 // pred_region
          _
        $region16: #{cnn5x5_bc_forward.1} parent=11 // pred_fallthru
          _
        // Predicated region
        $region17: #{cnn5x5_bc_forward.1} parent=11 // pred_check
          %p430 = pneg %p92
        $region18: #{cnn5x5_bc_forward.1} parent=11 // pred_check_branch
          %432 = sbr.rel (%p430) target = $region20
        $region19: #{cnn5x5_bc_forward.1} parent=11 // pred_region
          _
        $region20: #{cnn5x5_bc_forward.1} parent=11 // pred_fallthru
          _
        // Predicated region
        $region21: #{cnn5x5_bc_forward.1} parent=11 // pred_check
          %p433 = pneg %p113
        $region22: #{cnn5x5_bc_forward.1} parent=11 // pred_check_branch
          %435 = sbr.rel (%p433) target = $region24
        $region23: #{cnn5x5_bc_forward.1} parent=11 // pred_region
          _
        $region24: #{cnn5x5_bc_forward.1} parent=11 // pred_fallthru
          _
        // Predicated region
        $region25: #{cnn5x5_bc_forward.1} parent=11 // pred_check
          %p436 = pneg %p134
        $region26: #{cnn5x5_bc_forward.1} parent=11 // pred_check_branch
          %438 = sbr.rel (%p436) target = $region28
        $region27: #{cnn5x5_bc_forward.1} parent=11 // pred_region
          _
        $region28: #{cnn5x5_bc_forward.1} parent=11 // pred_fallthru
          _
        // Predicated region
        $region29: #{cnn5x5_bc_forward.1} parent=11 // pred_check
          %p439 = pneg %p155
        $region30: #{cnn5x5_bc_forward.1} parent=11 // pred_check_branch
          %441 = sbr.rel (%p439) target = $region32
        $region31: #{cnn5x5_bc_forward.1} parent=11 // pred_region
          _
        $region32: #{cnn5x5_bc_forward.1} parent=11 // pred_fallthru
          _
        // Predicated region
        $region33: #{cnn5x5_bc_forward.1} parent=11 // pred_check
          %p442 = pneg %p176
        $region34: #{cnn5x5_bc_forward.1} parent=11 // pred_check_branch
          %444 = sbr.rel (%p442) target = $region36
        $region35: #{cnn5x5_bc_forward.1} parent=11 // pred_region
          _
        $region36: #{cnn5x5_bc_forward.1} parent=11 // pred_fallthru
          _
        // Predicated region
        $region37: #{cnn5x5_bc_forward.1} parent=11 // pred_check
          %p445 = pneg %p197
        $region38: #{cnn5x5_bc_forward.1} parent=11 // pred_check_branch
          %447 = sbr.rel (%p445) target = $region40
        $region39: #{cnn5x5_bc_forward.1} parent=11 // pred_region
          _
        $region40: #{cnn5x5_bc_forward.1} parent=11 // pred_fallthru
          _
        // Predicated region
        $region41: #{cnn5x5_bc_forward.1} parent=11 // pred_check
          %p448 = pneg %p218
        $region42: #{cnn5x5_bc_forward.1} parent=11 // pred_check_branch
          %450 = sbr.rel (%p448) target = $region44
        $region43: #{cnn5x5_bc_forward.1} parent=11 // pred_region
          _
        $region44: #{cnn5x5_bc_forward.1} parent=11 // pred_fallthru
          _
        // Predicated region
        $region45: #{cnn5x5_bc_forward.1} parent=11 // pred_check
          %p451 = pneg %p239
        $region46: #{cnn5x5_bc_forward.1} parent=11 // pred_check_branch
          %453 = sbr.rel (%p451) target = $region48
        $region47: #{cnn5x5_bc_forward.1} parent=11 // pred_region
          _
        $region48: #{cnn5x5_bc_forward.1} parent=11 // pred_fallthru
          _
        // Predicated region
        $region49: #{cnn5x5_bc_forward.1} parent=11 // pred_check
          %p454 = pneg %p260
        $region50: #{cnn5x5_bc_forward.1} parent=11 // pred_check_branch
          %456 = sbr.rel (%p454) target = $region52
        $region51: #{cnn5x5_bc_forward.1} parent=11 // pred_region
          _
        $region52: #{cnn5x5_bc_forward.1} parent=11 // pred_fallthru
          _
        // Predicated region
        $region53: #{cnn5x5_bc_forward.1} parent=11 // pred_check
          %p457 = pneg %p281
        $region54: #{cnn5x5_bc_forward.1} parent=11 // pred_check_branch
          %459 = sbr.rel (%p457) target = $region56
        $region55: #{cnn5x5_bc_forward.1} parent=11 // pred_region
          _
        $region56: #{cnn5x5_bc_forward.1} parent=11 // pred_fallthru
          _
        // Predicated region
        $region57: #{cnn5x5_bc_forward.1} parent=11 // pred_check
          %p460 = pneg %p302
        $region58: #{cnn5x5_bc_forward.1} parent=11 // pred_check_branch
          %462 = sbr.rel (%p460) target = $region60
        $region59: #{cnn5x5_bc_forward.1} parent=11 // pred_region
          _
        $region60: #{cnn5x5_bc_forward.1} parent=11 // pred_fallthru
          _
        // Predicated region
        $region61: #{cnn5x5_bc_forward.1} parent=11 // pred_check
          %p463 = pneg %p323
        $region62: #{cnn5x5_bc_forward.1} parent=11 // pred_check_branch
          %465 = sbr.rel (%p463) target = $region64
        $region63: #{cnn5x5_bc_forward.1} parent=11 // pred_region
          _
        $region64: #{cnn5x5_bc_forward.1} parent=11 // pred_fallthru
          _
        // Predicated region
        $region65: #{cnn5x5_bc_forward.1} parent=11 // pred_check
          %p466 = pneg %p344
        $region66: #{cnn5x5_bc_forward.1} parent=11 // pred_check_branch
          %468 = sbr.rel (%p466) target = $region68
        $region67: #{cnn5x5_bc_forward.1} parent=11 // pred_region
          _
        $region68: #{cnn5x5_bc_forward.1} parent=11 // pred_fallthru
          _
        // Predicated region
        $region69: #{cnn5x5_bc_forward.1} parent=11 // pred_check
          %p469 = pneg %p365
        $region70: #{cnn5x5_bc_forward.1} parent=11 // pred_check_branch
          %471 = sbr.rel (%p469) target = $region72
        $region71: #{cnn5x5_bc_forward.1} parent=11 // pred_region
          %473 = vsyncadd [#allocation4], 0
          %s474 = sshll.u32 %s15, 4
          %s475 = int_to_ptr.hbm [resolvable:$true] %s474
          %s476 = sshll.u32 [#allocation3], 4
          %s477 = int_to_ptr.vmem [resolvable:$true] %s476
          %482 = dma.hbm_to_vmem [thread:$0]  %s475, 2048, %s477, [#allocation4], 128, 128, 8
        $region72: #{cnn5x5_bc_forward.1} parent=11 // pred_fallthru
          _
        // Predicated region
        $region73: #{cnn5x5_bc_forward.1} parent=11 // pred_check
          %p483 = pneg %p386
        $region74: #{cnn5x5_bc_forward.1} parent=11 // pred_check_branch
          %485 = sbr.rel (%p483) target = $region76
        $region75: #{cnn5x5_bc_forward.1} parent=11 // pred_region
          _
        $region76: #{cnn5x5_bc_forward.1} parent=11 // pred_fallthru
          _
      $region12: #{cnn5x5_bc_forward.1} parent=5 // pred_fallthru
        _
      %p486 = scmp.lt.s32.totalorder %s24, 2
      // Predicated region
      $region77: #{cnn5x5_bc_forward.1} parent=5 // pred_check
        %p487 = pneg %p486
      $region78: #{cnn5x5_bc_forward.1} parent=5 // pred_check_branch
        %489 = sbr.rel (%p487) target = $region80
      $region79: #{cnn5x5_bc_forward.1} parent=5 // pred_region
        // Predicated region
        $region81: #{cnn5x5_bc_forward.1} parent=79 // pred_check
          %p490 = pneg %p44
        $region82: #{cnn5x5_bc_forward.1} parent=79 // pred_check_branch
          %492 = sbr.rel (%p490) target = $region84
        $region83: #{cnn5x5_bc_forward.1} parent=79 // pred_region
          %p493 = scmp.lt.s32.totalorder %s24, 1
          %s494 = scalar_select %p493, %s24, 1
          %s495 = smul.addr %s494, 25
          %s496 = smul.addr %s495, 8
          %s497 = scalar_lea.vmem %s0, %s496
        $region84: #{cnn5x5_bc_forward.1} parent=79 // pred_fallthru
          _
      $region80: #{cnn5x5_bc_forward.1} parent=5 // pred_fallthru
        _
      %p498 = scmp.le.s32.totalorder 1, %s24
      %p499 = scmp.lt.s32.totalorder %s24, 3
      %p500 = pnand %p498, %p499
      %p501 = pneg %p500
      // Predicated region
      $region85: #{cnn5x5_bc_forward.1} parent=5 // pred_check
        _
      $region86: #{cnn5x5_bc_forward.1} parent=5 // pred_check_branch
        %503 = sbr.rel (%p500) target = $region88
      $region87: #{cnn5x5_bc_forward.1} parent=5 // pred_region
        %s504 = ssub.s32 %s24, 1
        // Predicated region
        $region89: #{cnn5x5_bc_forward.1} parent=87 // pred_check
          %p505 = pneg %p365
        $region90: #{cnn5x5_bc_forward.1} parent=87 // pred_check_branch
          %507 = sbr.rel (%p505) target = $region92
        $region91: #{cnn5x5_bc_forward.1} parent=87 // pred_region
          %509 = dma.done [#allocation4], 2048
        $region92: #{cnn5x5_bc_forward.1} parent=87 // pred_fallthru
          _
        %p510 = scmp.lt.s32.totalorder %s29, 1
        %s511 = scalar_select %p510, %s29, 1
        %s512 = smul.addr %s511, 25
        %s513 = smul.addr %s512, 8
        %s514 = scalar_lea.vmem %s0, %s513
        %p515 = pneg %p50
        %p516 = pneg %p47
        %p517 = pneg %p71
        %p518 = pneg %p68
        %p519 = pneg %p92
        %p520 = pneg %p89
        %p521 = pneg %p113
        %p522 = pneg %p110
        %p523 = pneg %p134
        %p524 = pneg %p131
        %p525 = pneg %p155
        %p526 = pneg %p152
        %p527 = pneg %p176
        %p528 = pneg %p173
        %p529 = pneg %p197
        %p530 = pneg %p194
        %p531 = pneg %p218
        %p532 = pneg %p215
        %p533 = pneg %p239
        %p534 = pneg %p236
        %p535 = pneg %p260
        %p536 = pneg %p257
        %p537 = pneg %p281
        %p538 = pneg %p278
        %p539 = pneg %p302
        %p540 = pneg %p299
        %p541 = pneg %p323
        %p542 = pneg %p320
        %p543 = pneg %p344
        %p544 = pneg %p341
        %p545 = pneg %p365
        %p546 = pneg %p362
        %p547 = pneg %p386
        %p548 = pneg %p383
        %p549 = pneg %p412
        %p550 = pneg %p409
        %p551 = scmp.lt.s32.totalorder %s29, 1
        %s552 = scalar_select %p551, %s29, 1
        %s553 = smul.addr %s552, 21
        %s554 = smul.addr %s553, 8
        %s555 = scalar_lea.vmem %s17, %s554
        %p556 = scmp.lt.s32.totalorder %s29, 1
        %s557 = scalar_select %p556, %s29, 1
        %s558 = smul.addr %s557, 25
        %s559 = smul.addr %s558, 8
        %s560 = scalar_lea.vmem %s0, %s559
        %p561 = scmp.lt.s32.totalorder %s29, 1
        %s562 = scalar_select %p561, %s29, 1
        %s563 = smul.addr %s562, 21
        %s564 = smul.addr %s563, 8
        %s565 = scalar_lea.vmem %s17, %s564
        %v566 = vld [vmem:[%s560] sm:$0xff]
        %v567 = vld [vmem:[%s560 + $0x8] sm:$0xff]
        %v568 = vld [vmem:[%s560 + $0x10] sm:$0xff]
        %v569 = vld [vmem:[%s560 + $0x18] sm:$0xff]
        %v570 = vld [vmem:[%s560 + $0x20] sm:$0xff]
        %v571 = vld [vmem:[%s560 + $0x28] sm:$0xff]
        %v572 = vld [vmem:[%s560 + $0x30] sm:$0xff]
        %v573 = vld [vmem:[%s560 + $0x38] sm:$0xff]
        %v574 = vld [vmem:[%s560 + $0x40] sm:$0xff]
        %v575 = vld [vmem:[%s560 + $0x48] sm:$0xff]
        %v576 = vld [vmem:[%s560 + $0x50] sm:$0xff]
        %v577 = vld [vmem:[%s560 + $0x58] sm:$0xff]
        %v578 = vld [vmem:[%s560 + $0x60] sm:$0xff]
        %v579 = vld [vmem:[%s560 + $0x68] sm:$0xff]
        %v580 = vld [vmem:[%s560 + $0x70] sm:$0xff]
        %v581 = vld [vmem:[%s560 + $0x78] sm:$0xff]
        %v582 = vld [vmem:[%s560 + $0x80] sm:$0xff]
        %v583 = vld [vmem:[%s560 + $0x88] sm:$0xff]
        %v584 = vld [vmem:[%s560 + $0x90] sm:$0xff]
        %v585 = vld [vmem:[%s560 + $0x98] sm:$0xff]
        %v586 = vld [vmem:[%s560 + $0xa0] sm:$0xff]
        %v587 = vld [vmem:[%s560 + $0xa8] sm:$0xff]
        %v588 = vld [vmem:[%s560 + $0xb0] sm:$0xff]
        %v589 = vld [vmem:[%s560 + $0xb8] sm:$0xff]
        %v590 = vld [vmem:[%s560 + $0xc0] sm:$0xff]
        %v591 = vld [vmem:[%s1] sm:$0xff]
        %v592 = vld [vmem:[%s1 + $0x8] sm:$0xff]
        %v593 = vld [vmem:[%s1 + $0x10] sm:$0xff]
        %v594 = vld [vmem:[%s1 + $0x18] sm:$0xff]
        %v595 = vld [vmem:[%s1 + $0x20] sm:$0xff]
        %v596 = vld [vmem:[%s1 + $0x28] sm:$0xff]
        %v597 = vld [vmem:[%s1 + $0x30] sm:$0xff]
        %v598 = vld [vmem:[%s1 + $0x38] sm:$0xff]
        %v599 = vld [vmem:[%s1 + $0x40] sm:$0xff]
        %v600 = vld [vmem:[%s1 + $0x48] sm:$0xff]
        %v601 = vld [vmem:[%s1 + $0x50] sm:$0xff]
        %v602 = vld [vmem:[%s1 + $0x58] sm:$0xff]
        %v603 = vld [vmem:[%s1 + $0x60] sm:$0xff]
        %v604 = vld [vmem:[%s1 + $0x68] sm:$0xff]
        %v605 = vld [vmem:[%s1 + $0x70] sm:$0xff]
        %v606 = vld [vmem:[%s1 + $0x78] sm:$0xff]
        %v607 = vld [vmem:[%s1 + $0x80] sm:$0xff]
        %v608 = vld [vmem:[%s1 + $0x88] sm:$0xff]
        %v609 = vld [vmem:[%s1 + $0x90] sm:$0xff]
        %v610 = vld [vmem:[%s1 + $0x98] sm:$0xff]
        %v611 = vld [vmem:[%s1 + $0xa0] sm:$0xff]
        %v612 = vld [vmem:[%s1 + $0xa8] sm:$0xff]
        %v613 = vld [vmem:[%s1 + $0xb0] sm:$0xff]
        %v614 = vld [vmem:[%s1 + $0xb8] sm:$0xff]
        %v615 = vld [vmem:[%s1 + $0xc0] sm:$0xff]
        %v616 = vld [vmem:[%s1 + $0xc8] sm:$0xff]
        %v617 = vld [vmem:[%s1 + $0xd0] sm:$0xff]
        %v618 = vld [vmem:[%s1 + $0xd8] sm:$0xff]
        %v619 = vld [vmem:[%s1 + $0xe0] sm:$0xff]
        %v620 = vld [vmem:[%s1 + $0xe8] sm:$0xff]
        %v621 = vld [vmem:[%s1 + $0xf0] sm:$0xff]
        %v622 = vld [vmem:[%s1 + $0xf8] sm:$0xff]
        %v623 = vld [vmem:[%s2] sm:$0x3]
        %v625 = vperm.slane %v623, 0
        %v626 = vperm.slane %v623, 1
        %629 = vmatpush.xpose.msra.mxu0 %v606
        %630 = vmatpush.xpose.msra.mxu0 %v605
        %631 = vmatpush.xpose.msra.mxu0 %v604
        %632 = vmatpush.xpose.msra.mxu0 %v603
        %633 = vmatpush.xpose.msra.mxu0 %v602
        %634 = vmatpush.xpose.msra.mxu0 %v601
        %635 = vmatpush.xpose.msra.mxu0 %v600
        %636 = vmatpush.xpose.msra.mxu0 %v599
        %637 = vmatpush.xpose.msra.mxu0 %v598
        %638 = vmatpush.xpose.msra.mxu0 %v597
        %639 = vmatpush.xpose.msra.mxu0 %v596
        %640 = vmatpush.xpose.msra.mxu0 %v595
        %641 = vmatpush.xpose.msra.mxu0 %v594
        %642 = vmatpush.xpose.msra.mxu0 %v593
        %643 = vmatpush.xpose.msra.mxu0 %v592
        %644 = vmatpush.xpose.msra.mxu0 %v591
        %645 = vmatmul.f32.gmra.mxu0 %v566
        %v646 = vpop.f32.mrf.mxu0
        %v647 = vadd.f32 %v625, %v646
        %648 = vmatmul.f32.gmra.mxu0 %v567
        %v649 = vpop.f32.mrf.mxu0
        %v650 = vadd.f32 %v625, %v649
        %651 = vmatmul.f32.gmra.mxu0 %v568
        %v652 = vpop.f32.mrf.mxu0
        %v653 = vadd.f32 %v625, %v652
        %654 = vmatmul.f32.gmra.mxu0 %v569
        %v655 = vpop.f32.mrf.mxu0
        %v656 = vadd.f32 %v625, %v655
        %657 = vmatmul.f32.gmra.mxu0 %v570
        %v658 = vpop.f32.mrf.mxu0
        %v659 = vadd.f32 %v625, %v658
        %660 = vmatmul.f32.gmra.mxu0 %v571
        %v661 = vpop.f32.mrf.mxu0
        %v662 = vadd.f32 %v625, %v661
        %663 = vmatmul.f32.gmra.mxu0 %v572
        %v664 = vpop.f32.mrf.mxu0
        %v665 = vadd.f32 %v625, %v664
        %666 = vmatmul.f32.gmra.mxu0 %v573
        %v667 = vpop.f32.mrf.mxu0
        %v668 = vadd.f32 %v625, %v667
        %669 = vmatmul.f32.gmra.mxu0 %v574
        %v670 = vpop.f32.mrf.mxu0
        %v671 = vadd.f32 %v625, %v670
        %672 = vmatmul.f32.gmra.mxu0 %v575
        %v673 = vpop.f32.mrf.mxu0
        %v674 = vadd.f32 %v625, %v673
        %675 = vmatmul.f32.gmra.mxu0 %v576
        %v676 = vpop.f32.mrf.mxu0
        %v677 = vadd.f32 %v625, %v676
        %678 = vmatmul.f32.gmra.mxu0 %v577
        %v679 = vpop.f32.mrf.mxu0
        %v680 = vadd.f32 %v625, %v679
        %681 = vmatmul.f32.gmra.mxu0 %v578
        %v682 = vpop.f32.mrf.mxu0
        %v683 = vadd.f32 %v625, %v682
        %684 = vmatmul.f32.gmra.mxu0 %v579
        %v685 = vpop.f32.mrf.mxu0
        %v686 = vadd.f32 %v625, %v685
        %687 = vmatmul.f32.gmra.mxu0 %v580
        %v688 = vpop.f32.mrf.mxu0
        %v689 = vadd.f32 %v625, %v688
        %690 = vmatmul.f32.gmra.mxu0 %v581
        %v691 = vpop.f32.mrf.mxu0
        %v692 = vadd.f32 %v625, %v691
        %693 = vmatmul.f32.gmra.mxu0 %v582
        %v694 = vpop.f32.mrf.mxu0
        %v695 = vadd.f32 %v625, %v694
        %696 = vmatmul.f32.gmra.mxu0 %v583
        %v697 = vpop.f32.mrf.mxu0
        %v698 = vadd.f32 %v625, %v697
        %699 = vmatmul.f32.gmra.mxu0 %v584
        %v700 = vpop.f32.mrf.mxu0
        %v701 = vadd.f32 %v625, %v700
        %702 = vmatmul.f32.gmra.mxu0 %v585
        %v703 = vpop.f32.mrf.mxu0
        %v704 = vadd.f32 %v625, %v703
        %705 = vmatmul.f32.gmra.mxu0 %v586
        %v706 = vpop.f32.mrf.mxu0
        %v707 = vadd.f32 %v625, %v706
        %708 = vmatmul.f32.gmra.mxu0 %v587
        %v709 = vpop.f32.mrf.mxu0
        %v710 = vadd.f32 %v625, %v709
        %711 = vmatmul.f32.gmra.mxu0 %v588
        %v712 = vpop.f32.mrf.mxu0
        %v713 = vadd.f32 %v625, %v712
        %714 = vmatmul.f32.gmra.mxu0 %v589
        %v715 = vpop.f32.mrf.mxu0
        %v716 = vadd.f32 %v625, %v715
        %717 = vmatmul.f32.gmra.mxu0 %v590
        %v718 = vpop.f32.mrf.mxu0
        %v719 = vadd.f32 %v625, %v718
        %720 = vdwg.mxu0
        %721 = vmatpush.xpose.msra.mxu0 %v622
        %722 = vmatpush.xpose.msra.mxu0 %v621
        %723 = vmatpush.xpose.msra.mxu0 %v620
        %724 = vmatpush.xpose.msra.mxu0 %v619
        %725 = vmatpush.xpose.msra.mxu0 %v618
        %726 = vmatpush.xpose.msra.mxu0 %v617
        %727 = vmatpush.xpose.msra.mxu0 %v616
        %728 = vmatpush.xpose.msra.mxu0 %v615
        %729 = vmatpush.xpose.msra.mxu0 %v614
        %730 = vmatpush.xpose.msra.mxu0 %v613
        %731 = vmatpush.xpose.msra.mxu0 %v612
        %732 = vmatpush.xpose.msra.mxu0 %v611
        %733 = vmatpush.xpose.msra.mxu0 %v610
        %734 = vmatpush.xpose.msra.mxu0 %v609
        %735 = vmatpush.xpose.msra.mxu0 %v608
        %736 = vmatpush.xpose.msra.mxu0 %v607
        %737 = vmatmul.f32.gmra.mxu0 %v566
        %v738 = vpop.f32.mrf.mxu0
        %v739 = vadd.f32 %v626, %v738
        %740 = vmatmul.f32.gmra.mxu0 %v567
        %v741 = vpop.f32.mrf.mxu0
        %v742 = vadd.f32 %v626, %v741
        %743 = vmatmul.f32.gmra.mxu0 %v568
        %v744 = vpop.f32.mrf.mxu0
        %v745 = vadd.f32 %v626, %v744
        %746 = vmatmul.f32.gmra.mxu0 %v569
        %v747 = vpop.f32.mrf.mxu0
        %v748 = vadd.f32 %v626, %v747
        %749 = vmatmul.f32.gmra.mxu0 %v570
        %v750 = vpop.f32.mrf.mxu0
        %v751 = vadd.f32 %v626, %v750
        %752 = vmatmul.f32.gmra.mxu0 %v571
        %v753 = vpop.f32.mrf.mxu0
        %v754 = vadd.f32 %v626, %v753
        %755 = vmatmul.f32.gmra.mxu0 %v572
        %v756 = vpop.f32.mrf.mxu0
        %v757 = vadd.f32 %v626, %v756
        %758 = vmatmul.f32.gmra.mxu0 %v573
        %v759 = vpop.f32.mrf.mxu0
        %v760 = vadd.f32 %v626, %v759
        %761 = vmatmul.f32.gmra.mxu0 %v574
        %v762 = vpop.f32.mrf.mxu0
        %v763 = vadd.f32 %v626, %v762
        %764 = vmatmul.f32.gmra.mxu0 %v575
        %v765 = vpop.f32.mrf.mxu0
        %v766 = vadd.f32 %v626, %v765
        %767 = vmatmul.f32.gmra.mxu0 %v576
        %v768 = vpop.f32.mrf.mxu0
        %v769 = vadd.f32 %v626, %v768
        %770 = vmatmul.f32.gmra.mxu0 %v577
        %v771 = vpop.f32.mrf.mxu0
        %v772 = vadd.f32 %v626, %v771
        %773 = vmatmul.f32.gmra.mxu0 %v578
        %v774 = vpop.f32.mrf.mxu0
        %v775 = vadd.f32 %v626, %v774
        %776 = vmatmul.f32.gmra.mxu0 %v579
        %v777 = vpop.f32.mrf.mxu0
        %v778 = vadd.f32 %v626, %v777
        %779 = vmatmul.f32.gmra.mxu0 %v580
        %v780 = vpop.f32.mrf.mxu0
        %v781 = vadd.f32 %v626, %v780
        %782 = vmatmul.f32.gmra.mxu0 %v581
        %v783 = vpop.f32.mrf.mxu0
        %v784 = vadd.f32 %v626, %v783
        %785 = vmatmul.f32.gmra.mxu0 %v582
        %v786 = vpop.f32.mrf.mxu0
        %v787 = vadd.f32 %v626, %v786
        %788 = vmatmul.f32.gmra.mxu0 %v583
        %v789 = vpop.f32.mrf.mxu0
        %v790 = vadd.f32 %v626, %v789
        %791 = vmatmul.f32.gmra.mxu0 %v584
        %v792 = vpop.f32.mrf.mxu0
        %v793 = vadd.f32 %v626, %v792
        %794 = vmatmul.f32.gmra.mxu0 %v585
        %v795 = vpop.f32.mrf.mxu0
        %v796 = vadd.f32 %v626, %v795
        %797 = vmatmul.f32.gmra.mxu0 %v586
        %v798 = vpop.f32.mrf.mxu0
        %v799 = vadd.f32 %v626, %v798
        %800 = vmatmul.f32.gmra.mxu0 %v587
        %v801 = vpop.f32.mrf.mxu0
        %v802 = vadd.f32 %v626, %v801
        %803 = vmatmul.f32.gmra.mxu0 %v588
        %v804 = vpop.f32.mrf.mxu0
        %v805 = vadd.f32 %v626, %v804
        %806 = vmatmul.f32.gmra.mxu0 %v589
        %v807 = vpop.f32.mrf.mxu0
        %v808 = vadd.f32 %v626, %v807
        %809 = vmatmul.f32.gmra.mxu0 %v590
        %v810 = vpop.f32.mrf.mxu0
        %v811 = vadd.f32 %v626, %v810
        %812 = vdwg.mxu0
        %v813 = vmax.f32 %v647, 0.0
        %v814 = vmax.f32 %v739, 0.0
        %v815 = vmax.f32 %v650, 0.0
        %v816 = vmax.f32 %v742, 0.0
        %v817 = vmax.f32 %v653, 0.0
        %v818 = vmax.f32 %v745, 0.0
        %v819 = vmax.f32 %v656, 0.0
        %v820 = vmax.f32 %v748, 0.0
        %v821 = vmax.f32 %v659, 0.0
        %v822 = vmax.f32 %v751, 0.0
        %v823 = vmax.f32 %v662, 0.0
        %v824 = vmax.f32 %v754, 0.0
        %v825 = vmax.f32 %v665, 0.0
        %v826 = vmax.f32 %v757, 0.0
        %v827 = vmax.f32 %v668, 0.0
        %v828 = vmax.f32 %v760, 0.0
        %v829 = vmax.f32 %v671, 0.0
        %v830 = vmax.f32 %v763, 0.0
        %v831 = vmax.f32 %v674, 0.0
        %v832 = vmax.f32 %v766, 0.0
        %v833 = vmax.f32 %v677, 0.0
        %v834 = vmax.f32 %v769, 0.0
        %v835 = vmax.f32 %v680, 0.0
        %v836 = vmax.f32 %v772, 0.0
        %v837 = vmax.f32 %v683, 0.0
        %v838 = vmax.f32 %v775, 0.0
        %v839 = vmax.f32 %v686, 0.0
        %v840 = vmax.f32 %v778, 0.0
        %v841 = vmax.f32 %v689, 0.0
        %v842 = vmax.f32 %v781, 0.0
        %v843 = vmax.f32 %v692, 0.0
        %v844 = vmax.f32 %v784, 0.0
        %v845 = vmax.f32 %v695, 0.0
        %v846 = vmax.f32 %v787, 0.0
        %v847 = vmax.f32 %v698, 0.0
        %v848 = vmax.f32 %v790, 0.0
        %v849 = vmax.f32 %v701, 0.0
        %v850 = vmax.f32 %v793, 0.0
        %v851 = vmax.f32 %v704, 0.0
        %v852 = vmax.f32 %v796, 0.0
        %v853 = vmax.f32 %v707, 0.0
        %v854 = vmax.f32 %v799, 0.0
        %v855 = vmax.f32 %v710, 0.0
        %v856 = vmax.f32 %v802, 0.0
        %v857 = vmax.f32 %v713, 0.0
        %v858 = vmax.f32 %v805, 0.0
        %v859 = vmax.f32 %v716, 0.0
        %v860 = vmax.f32 %v808, 0.0
        %v861 = vmax.f32 %v719, 0.0
        %v862 = vmax.f32 %v811, 0.0
        %863 = vst [vmem:[#allocation2] sm:$0xff] %v813
        %864 = vst [vmem:[#allocation2 + $0x8] sm:$0xff] %v814
        %865 = vst [vmem:[#allocation2 + $0x10] sm:$0xff] %v815
        %866 = vst [vmem:[#allocation2 + $0x18] sm:$0xff] %v816
        %867 = vst [vmem:[#allocation2 + $0x20] sm:$0xff] %v817
        %868 = vst [vmem:[#allocation2 + $0x28] sm:$0xff] %v818
        %869 = vst [vmem:[#allocation2 + $0x30] sm:$0xff] %v819
        %870 = vst [vmem:[#allocation2 + $0x38] sm:$0xff] %v820
        %871 = vst [vmem:[#allocation2 + $0x40] sm:$0xff] %v821
        %872 = vst [vmem:[#allocation2 + $0x48] sm:$0xff] %v822
        %873 = vst [vmem:[#allocation2 + $0x50] sm:$0xff] %v823
        %874 = vst [vmem:[#allocation2 + $0x58] sm:$0xff] %v824
        %875 = vst [vmem:[#allocation2 + $0x60] sm:$0xff] %v825
        %876 = vst [vmem:[#allocation2 + $0x68] sm:$0xff] %v826
        %877 = vst [vmem:[#allocation2 + $0x70] sm:$0xff] %v827
        %878 = vst [vmem:[#allocation2 + $0x78] sm:$0xff] %v828
        %879 = vst [vmem:[#allocation2 + $0x80] sm:$0xff] %v829
        %880 = vst [vmem:[#allocation2 + $0x88] sm:$0xff] %v830
        %881 = vst [vmem:[#allocation2 + $0x90] sm:$0xff] %v831
        %882 = vst [vmem:[#allocation2 + $0x98] sm:$0xff] %v832
        %883 = vst [vmem:[#allocation2 + $0xa0] sm:$0xff] %v833
        %884 = vst [vmem:[#allocation2 + $0xa8] sm:$0xff] %v834
        %885 = vst [vmem:[#allocation2 + $0xb0] sm:$0xff] %v835
        %886 = vst [vmem:[#allocation2 + $0xb8] sm:$0xff] %v836
        %887 = vst [vmem:[#allocation2 + $0xc0] sm:$0xff] %v837
        %888 = vst [vmem:[#allocation2 + $0xc8] sm:$0xff] %v838
        %889 = vst [vmem:[#allocation2 + $0xd0] sm:$0xff] %v839
        %890 = vst [vmem:[#allocation2 + $0xd8] sm:$0xff] %v840
        %891 = vst [vmem:[#allocation2 + $0xe0] sm:$0xff] %v841
        %892 = vst [vmem:[#allocation2 + $0xe8] sm:$0xff] %v842
        %893 = vst [vmem:[#allocation2 + $0xf0] sm:$0xff] %v843
        %894 = vst [vmem:[#allocation2 + $0xf8] sm:$0xff] %v844
        %895 = vst [vmem:[#allocation2 + $0x100] sm:$0xff] %v845
        %896 = vst [vmem:[#allocation2 + $0x108] sm:$0xff] %v846
        %897 = vst [vmem:[#allocation2 + $0x110] sm:$0xff] %v847
        %898 = vst [vmem:[#allocation2 + $0x118] sm:$0xff] %v848
        %899 = vst [vmem:[#allocation2 + $0x120] sm:$0xff] %v849
        %900 = vst [vmem:[#allocation2 + $0x128] sm:$0xff] %v850
        %901 = vst [vmem:[#allocation2 + $0x130] sm:$0xff] %v851
        %902 = vst [vmem:[#allocation2 + $0x138] sm:$0xff] %v852
        %903 = vst [vmem:[#allocation2 + $0x140] sm:$0xff] %v853
        %904 = vst [vmem:[#allocation2 + $0x148] sm:$0xff] %v854
        %905 = vst [vmem:[#allocation2 + $0x150] sm:$0xff] %v855
        %906 = vst [vmem:[#allocation2 + $0x158] sm:$0xff] %v856
        %907 = vst [vmem:[#allocation2 + $0x160] sm:$0xff] %v857
        %908 = vst [vmem:[#allocation2 + $0x168] sm:$0xff] %v858
        %909 = vst [vmem:[#allocation2 + $0x170] sm:$0xff] %v859
        %910 = vst [vmem:[#allocation2 + $0x178] sm:$0xff] %v860
        %911 = vst [vmem:[#allocation2 + $0x180] sm:$0xff] %v861
        %912 = vst [vmem:[#allocation2 + $0x188] sm:$0xff] %v862
        %v913 = vld [vmem:[#allocation2] sm:$0xff]
        %v914 = vld [vmem:[#allocation2 + $0x8] sm:$0xff]
        %v915 = vld [vmem:[#allocation2 + $0x10] sm:$0xff]
        %v916 = vld [vmem:[#allocation2 + $0x18] sm:$0xff]
        %v917 = vld [vmem:[#allocation2 + $0x20] sm:$0xff]
        %v918 = vld [vmem:[#allocation2 + $0x28] sm:$0xff]
        %v919 = vld [vmem:[#allocation2 + $0x30] sm:$0xff]
        %v920 = vld [vmem:[#allocation2 + $0x38] sm:$0xff]
        %v921 = vld [vmem:[#allocation2 + $0x40] sm:$0xff]
        %v922 = vld [vmem:[#allocation2 + $0x48] sm:$0xff]
        %v923 = vld [vmem:[#allocation2 + $0x50] sm:$0xff]
        %v924 = vld [vmem:[#allocation2 + $0x58] sm:$0xff]
        %v925 = vld [vmem:[#allocation2 + $0x60] sm:$0xff]
        %v926 = vld [vmem:[#allocation2 + $0x68] sm:$0xff]
        %v927 = vld [vmem:[#allocation2 + $0x70] sm:$0xff]
        %v928 = vld [vmem:[#allocation2 + $0x78] sm:$0xff]
        %v929 = vld [vmem:[#allocation2 + $0x80] sm:$0xff]
        %v930 = vld [vmem:[#allocation2 + $0x88] sm:$0xff]
        %v931 = vld [vmem:[#allocation2 + $0x90] sm:$0xff]
        %v932 = vld [vmem:[#allocation2 + $0x98] sm:$0xff]
        %v933 = vld [vmem:[#allocation2 + $0xa0] sm:$0xff]
        %v934 = vld [vmem:[#allocation2 + $0xa8] sm:$0xff]
        %v935 = vld [vmem:[#allocation2 + $0xb0] sm:$0xff]
        %v936 = vld [vmem:[#allocation2 + $0xb8] sm:$0xff]
        %v937 = vld [vmem:[#allocation2 + $0xc0] sm:$0xff]
        %v938 = vld [vmem:[#allocation2 + $0xc8] sm:$0xff]
        %v939 = vld [vmem:[#allocation2 + $0xd0] sm:$0xff]
        %v940 = vld [vmem:[#allocation2 + $0xd8] sm:$0xff]
        %v941 = vld [vmem:[#allocation2 + $0xe0] sm:$0xff]
        %v942 = vld [vmem:[#allocation2 + $0xe8] sm:$0xff]
        %v943 = vld [vmem:[#allocation2 + $0xf0] sm:$0xff]
        %v944 = vld [vmem:[#allocation2 + $0xf8] sm:$0xff]
        %v945 = vld [vmem:[#allocation2 + $0x100] sm:$0xff]
        %v946 = vld [vmem:[#allocation2 + $0x108] sm:$0xff]
        %v947 = vld [vmem:[#allocation2 + $0x110] sm:$0xff]
        %v948 = vld [vmem:[#allocation2 + $0x118] sm:$0xff]
        %v949 = vld [vmem:[#allocation2 + $0x120] sm:$0xff]
        %v950 = vld [vmem:[#allocation2 + $0x128] sm:$0xff]
        %v951 = vld [vmem:[#allocation2 + $0x130] sm:$0xff]
        %v952 = vld [vmem:[#allocation2 + $0x138] sm:$0xff]
        %v953 = vld [vmem:[#allocation2 + $0x140] sm:$0xff]
        %v954 = vld [vmem:[#allocation2 + $0x148] sm:$0xff]
        %v955 = vld [vmem:[%s3] sm:$0xff]
        %v956 = vld [vmem:[%s3 + $0x8] sm:$0xff]
        %v957 = vld [vmem:[%s3 + $0x10] sm:$0xff]
        %v958 = vld [vmem:[%s3 + $0x18] sm:$0xff]
        %v959 = vld [vmem:[%s3 + $0x20] sm:$0xff]
        %v960 = vld [vmem:[%s3 + $0x28] sm:$0xff]
        %v961 = vld [vmem:[%s3 + $0x30] sm:$0xff]
        %v962 = vld [vmem:[%s3 + $0x38] sm:$0xff]
        %v963 = vld [vmem:[%s3 + $0x40] sm:$0xff]
        %v964 = vld [vmem:[%s3 + $0x48] sm:$0xff]
        %v965 = vld [vmem:[%s3 + $0x50] sm:$0xff]
        %v966 = vld [vmem:[%s3 + $0x58] sm:$0xff]
        %v967 = vld [vmem:[%s3 + $0x60] sm:$0xff]
        %v968 = vld [vmem:[%s3 + $0x68] sm:$0xff]
        %v969 = vld [vmem:[%s3 + $0x70] sm:$0xff]
        %v970 = vld [vmem:[%s3 + $0x78] sm:$0xff]
        %v971 = vld [vmem:[%s3 + $0x80] sm:$0xff]
        %v972 = vld [vmem:[%s3 + $0x88] sm:$0xff]
        %v973 = vld [vmem:[%s3 + $0x90] sm:$0xff]
        %v974 = vld [vmem:[%s3 + $0x98] sm:$0xff]
        %v975 = vld [vmem:[%s3 + $0xa0] sm:$0xff]
        %v976 = vld [vmem:[%s3 + $0xa8] sm:$0xff]
        %v977 = vld [vmem:[%s3 + $0xb0] sm:$0xff]
        %v978 = vld [vmem:[%s3 + $0xb8] sm:$0xff]
        %v979 = vld [vmem:[%s3 + $0xc0] sm:$0xff]
        %v980 = vld [vmem:[%s3 + $0xc8] sm:$0xff]
        %v981 = vld [vmem:[%s3 + $0xd0] sm:$0xff]
        %v982 = vld [vmem:[%s3 + $0xd8] sm:$0xff]
        %v983 = vld [vmem:[%s3 + $0xe0] sm:$0xff]
        %v984 = vld [vmem:[%s3 + $0xe8] sm:$0xff]
        %v985 = vld [vmem:[%s3 + $0xf0] sm:$0xff]
        %v986 = vld [vmem:[%s3 + $0xf8] sm:$0xff]
        %v987 = vld [vmem:[#allocation2] sm:$0xfe]
        %v988 = vld [vmem:[#allocation2 + $0x8] sm:$0xfe]
        %v989 = vld [vmem:[#allocation2 + $0x150] sm:$0x1]
        %v990 = vld [vmem:[#allocation2 + $0x158] sm:$0x1]
        %s991 = scalar_lea.vmem %s3, 256
        %v992 = vld [vmem:[%s991] sm:$0xff]
        %v993 = vld [vmem:[%s991 + $0x8] sm:$0xff]
        %v994 = vld [vmem:[%s991 + $0x10] sm:$0xff]
        %v995 = vld [vmem:[%s991 + $0x18] sm:$0xff]
        %v996 = vld [vmem:[%s991 + $0x20] sm:$0xff]
        %v997 = vld [vmem:[%s991 + $0x28] sm:$0xff]
        %v998 = vld [vmem:[%s991 + $0x30] sm:$0xff]
        %v999 = vld [vmem:[%s991 + $0x38] sm:$0xff]
        %v1000 = vld [vmem:[%s991 + $0x40] sm:$0xff]
        %v1001 = vld [vmem:[%s991 + $0x48] sm:$0xff]
        %v1002 = vld [vmem:[%s991 + $0x50] sm:$0xff]
        %v1003 = vld [vmem:[%s991 + $0x58] sm:$0xff]
        %v1004 = vld [vmem:[%s991 + $0x60] sm:$0xff]
        %v1005 = vld [vmem:[%s991 + $0x68] sm:$0xff]
        %v1006 = vld [vmem:[%s991 + $0x70] sm:$0xff]
        %v1007 = vld [vmem:[%s991 + $0x78] sm:$0xff]
        %v1008 = vld [vmem:[%s991 + $0x80] sm:$0xff]
        %v1009 = vld [vmem:[%s991 + $0x88] sm:$0xff]
        %v1010 = vld [vmem:[%s991 + $0x90] sm:$0xff]
        %v1011 = vld [vmem:[%s991 + $0x98] sm:$0xff]
        %v1012 = vld [vmem:[%s991 + $0xa0] sm:$0xff]
        %v1013 = vld [vmem:[%s991 + $0xa8] sm:$0xff]
        %v1014 = vld [vmem:[%s991 + $0xb0] sm:$0xff]
        %v1015 = vld [vmem:[%s991 + $0xb8] sm:$0xff]
        %v1016 = vld [vmem:[%s991 + $0xc0] sm:$0xff]
        %v1017 = vld [vmem:[%s991 + $0xc8] sm:$0xff]
        %v1018 = vld [vmem:[%s991 + $0xd0] sm:$0xff]
        %v1019 = vld [vmem:[%s991 + $0xd8] sm:$0xff]
        %v1020 = vld [vmem:[%s991 + $0xe0] sm:$0xff]
        %v1021 = vld [vmem:[%s991 + $0xe8] sm:$0xff]
        %v1022 = vld [vmem:[%s991 + $0xf0] sm:$0xff]
        %v1023 = vld [vmem:[%s991 + $0xf8] sm:$0xff]
        %vm1068 = vcmask 1046528
        %v1069 = vrot.slane %v987, 1
        %v1070 = vrot.slane %v915, 1
        %v1071 = vsel %vm1068, %v1069, %v1070
        %v1072 = vrot.slane %v988, 1
        %v1073 = vrot.slane %v916, 1
        %v1074 = vsel %vm1068, %v1072, %v1073
        %v1075 = vrot.slane %v917, 1
        %v1076 = vsel %vm1068, %v1070, %v1075
        %v1077 = vrot.slane %v918, 1
        %v1078 = vsel %vm1068, %v1073, %v1077
        %v1079 = vrot.slane %v919, 1
        %v1080 = vsel %vm1068, %v1075, %v1079
        %v1081 = vrot.slane %v920, 1
        %v1082 = vsel %vm1068, %v1077, %v1081
        %v1083 = vrot.slane %v921, 1
        %v1084 = vsel %vm1068, %v1079, %v1083
        %v1085 = vrot.slane %v922, 1
        %v1086 = vsel %vm1068, %v1081, %v1085
        %v1087 = vrot.slane %v923, 1
        %v1088 = vsel %vm1068, %v1083, %v1087
        %v1089 = vrot.slane %v924, 1
        %v1090 = vsel %vm1068, %v1085, %v1089
        %v1091 = vrot.slane %v925, 1
        %v1092 = vsel %vm1068, %v1087, %v1091
        %v1093 = vrot.slane %v926, 1
        %v1094 = vsel %vm1068, %v1089, %v1093
        %v1095 = vrot.slane %v927, 1
        %v1096 = vsel %vm1068, %v1091, %v1095
        %v1097 = vrot.slane %v928, 1
        %v1098 = vsel %vm1068, %v1093, %v1097
        %v1099 = vrot.slane %v929, 1
        %v1100 = vsel %vm1068, %v1095, %v1099
        %v1101 = vrot.slane %v930, 1
        %v1102 = vsel %vm1068, %v1097, %v1101
        %v1103 = vrot.slane %v931, 1
        %v1104 = vsel %vm1068, %v1099, %v1103
        %v1105 = vrot.slane %v932, 1
        %v1106 = vsel %vm1068, %v1101, %v1105
        %v1107 = vrot.slane %v933, 1
        %v1108 = vsel %vm1068, %v1103, %v1107
        %v1109 = vrot.slane %v934, 1
        %v1110 = vsel %vm1068, %v1105, %v1109
        %v1111 = vrot.slane %v935, 1
        %v1112 = vsel %vm1068, %v1107, %v1111
        %v1113 = vrot.slane %v936, 1
        %v1114 = vsel %vm1068, %v1109, %v1113
        %v1115 = vrot.slane %v937, 1
        %v1116 = vsel %vm1068, %v1111, %v1115
        %v1117 = vrot.slane %v938, 1
        %v1118 = vsel %vm1068, %v1113, %v1117
        %v1119 = vrot.slane %v939, 1
        %v1120 = vsel %vm1068, %v1115, %v1119
        %v1121 = vrot.slane %v940, 1
        %v1122 = vsel %vm1068, %v1117, %v1121
        %v1123 = vrot.slane %v941, 1
        %v1124 = vsel %vm1068, %v1119, %v1123
        %v1125 = vrot.slane %v942, 1
        %v1126 = vsel %vm1068, %v1121, %v1125
        %v1127 = vrot.slane %v943, 1
        %v1128 = vsel %vm1068, %v1123, %v1127
        %v1129 = vrot.slane %v944, 1
        %v1130 = vsel %vm1068, %v1125, %v1129
        %v1131 = vrot.slane %v945, 1
        %v1132 = vsel %vm1068, %v1127, %v1131
        %v1133 = vrot.slane %v946, 1
        %v1134 = vsel %vm1068, %v1129, %v1133
        %v1135 = vrot.slane %v947, 1
        %v1136 = vsel %vm1068, %v1131, %v1135
        %v1137 = vrot.slane %v948, 1
        %v1138 = vsel %vm1068, %v1133, %v1137
        %v1139 = vrot.slane %v949, 1
        %v1140 = vsel %vm1068, %v1135, %v1139
        %v1141 = vrot.slane %v950, 1
        %v1142 = vsel %vm1068, %v1137, %v1141
        %v1143 = vrot.slane %v951, 1
        %v1144 = vsel %vm1068, %v1139, %v1143
        %v1145 = vrot.slane %v952, 1
        %v1146 = vsel %vm1068, %v1141, %v1145
        %v1147 = vrot.slane %v953, 1
        %v1148 = vsel %vm1068, %v1143, %v1147
        %v1149 = vrot.slane %v954, 1
        %v1150 = vsel %vm1068, %v1145, %v1149
        %v1151 = vrot.slane %v989, 1
        %v1152 = vsel %vm1068, %v1147, %v1151
        %v1153 = vrot.slane %v990, 1
        %v1154 = vsel %vm1068, %v1149, %v1153
        %1197 = vmatpush.xpose.msra.mxu0 %v1022
        %1198 = vmatpush.xpose.msra.mxu0 %v1020
        %1199 = vmatpush.xpose.msra.mxu0 %v1018
        %1200 = vmatpush.xpose.msra.mxu0 %v1016
        %1201 = vmatpush.xpose.msra.mxu0 %v1014
        %1202 = vmatpush.xpose.msra.mxu0 %v1012
        %1203 = vmatpush.xpose.msra.mxu0 %v1010
        %1204 = vmatpush.xpose.msra.mxu0 %v1008
        %1205 = vmatpush.xpose.msra.mxu0 %v1006
        %1206 = vmatpush.xpose.msra.mxu0 %v1004
        %1207 = vmatpush.xpose.msra.mxu0 %v1002
        %1208 = vmatpush.xpose.msra.mxu0 %v1000
        %1209 = vmatpush.xpose.msra.mxu0 %v998
        %1210 = vmatpush.xpose.msra.mxu0 %v996
        %1211 = vmatpush.xpose.msra.mxu0 %v994
        %1212 = vmatpush.xpose.msra.mxu0 %v992
        %1213 = vmatmul.f32.gmra.mxu0 %v1071
        %v1214 = vpop.f32.mrf.mxu0
        %v1215 = vadd.f32 0.0, %v1214
        %1216 = vmatmul.f32.gmra.mxu0 %v1076
        %v1217 = vpop.f32.mrf.mxu0
        %v1218 = vadd.f32 0.0, %v1217
        %1219 = vmatmul.f32.gmra.mxu0 %v1080
        %v1220 = vpop.f32.mrf.mxu0
        %v1221 = vadd.f32 0.0, %v1220
        %1222 = vmatmul.f32.gmra.mxu0 %v1084
        %v1223 = vpop.f32.mrf.mxu0
        %v1224 = vadd.f32 0.0, %v1223
        %1225 = vmatmul.f32.gmra.mxu0 %v1088
        %v1226 = vpop.f32.mrf.mxu0
        %v1227 = vadd.f32 0.0, %v1226
        %1228 = vmatmul.f32.gmra.mxu0 %v1092
        %v1229 = vpop.f32.mrf.mxu0
        %v1230 = vadd.f32 0.0, %v1229
        %1231 = vmatmul.f32.gmra.mxu0 %v1096
        %v1232 = vpop.f32.mrf.mxu0
        %v1233 = vadd.f32 0.0, %v1232
        %1234 = vmatmul.f32.gmra.mxu0 %v1100
        %v1235 = vpop.f32.mrf.mxu0
        %v1236 = vadd.f32 0.0, %v1235
        %1237 = vmatmul.f32.gmra.mxu0 %v1104
        %v1238 = vpop.f32.mrf.mxu0
        %v1239 = vadd.f32 0.0, %v1238
        %1240 = vmatmul.f32.gmra.mxu0 %v1108
        %v1241 = vpop.f32.mrf.mxu0
        %v1242 = vadd.f32 0.0, %v1241
        %1243 = vmatmul.f32.gmra.mxu0 %v1112
        %v1244 = vpop.f32.mrf.mxu0
        %v1245 = vadd.f32 0.0, %v1244
        %1246 = vmatmul.f32.gmra.mxu0 %v1116
        %v1247 = vpop.f32.mrf.mxu0
        %v1248 = vadd.f32 0.0, %v1247
        %1249 = vmatmul.f32.gmra.mxu0 %v1120
        %v1250 = vpop.f32.mrf.mxu0
        %v1251 = vadd.f32 0.0, %v1250
        %1252 = vmatmul.f32.gmra.mxu0 %v1124
        %v1253 = vpop.f32.mrf.mxu0
        %v1254 = vadd.f32 0.0, %v1253
        %1255 = vmatmul.f32.gmra.mxu0 %v1128
        %v1256 = vpop.f32.mrf.mxu0
        %v1257 = vadd.f32 0.0, %v1256
        %1258 = vmatmul.f32.gmra.mxu0 %v1132
        %v1259 = vpop.f32.mrf.mxu0
        %v1260 = vadd.f32 0.0, %v1259
        %1261 = vmatmul.f32.gmra.mxu0 %v1136
        %v1262 = vpop.f32.mrf.mxu0
        %v1263 = vadd.f32 0.0, %v1262
        %1264 = vmatmul.f32.gmra.mxu0 %v1140
        %v1265 = vpop.f32.mrf.mxu0
        %v1266 = vadd.f32 0.0, %v1265
        %1267 = vmatmul.f32.gmra.mxu0 %v1144
        %v1268 = vpop.f32.mrf.mxu0
        %v1269 = vadd.f32 0.0, %v1268
        %1270 = vmatmul.f32.gmra.mxu0 %v1148
        %v1271 = vpop.f32.mrf.mxu0
        %v1272 = vadd.f32 0.0, %v1271
        %1273 = vmatmul.f32.gmra.mxu0 %v1152
        %v1274 = vpop.f32.mrf.mxu0
        %v1275 = vadd.f32 0.0, %v1274
        %1276 = vdwg.mxu0
        %1277 = vmatpush.xpose.msra.mxu0 %v1023
        %1278 = vmatpush.xpose.msra.mxu0 %v1021
        %1279 = vmatpush.xpose.msra.mxu0 %v1019
        %1280 = vmatpush.xpose.msra.mxu0 %v1017
        %1281 = vmatpush.xpose.msra.mxu0 %v1015
        %1282 = vmatpush.xpose.msra.mxu0 %v1013
        %1283 = vmatpush.xpose.msra.mxu0 %v1011
        %1284 = vmatpush.xpose.msra.mxu0 %v1009
        %1285 = vmatpush.xpose.msra.mxu0 %v1007
        %1286 = vmatpush.xpose.msra.mxu0 %v1005
        %1287 = vmatpush.xpose.msra.mxu0 %v1003
        %1288 = vmatpush.xpose.msra.mxu0 %v1001
        %1289 = vmatpush.xpose.msra.mxu0 %v999
        %1290 = vmatpush.xpose.msra.mxu0 %v997
        %1291 = vmatpush.xpose.msra.mxu0 %v995
        %1292 = vmatpush.xpose.msra.mxu0 %v993
        %1293 = vmatmul.f32.gmra.mxu0 %v1074
        %v1294 = vpop.f32.mrf.mxu0
        %v1295 = vadd.f32 %v1215, %v1294
        %1296 = vmatmul.f32.gmra.mxu0 %v1078
        %v1297 = vpop.f32.mrf.mxu0
        %v1298 = vadd.f32 %v1218, %v1297
        %1299 = vmatmul.f32.gmra.mxu0 %v1082
        %v1300 = vpop.f32.mrf.mxu0
        %v1301 = vadd.f32 %v1221, %v1300
        %1302 = vmatmul.f32.gmra.mxu0 %v1086
        %v1303 = vpop.f32.mrf.mxu0
        %v1304 = vadd.f32 %v1224, %v1303
        %1305 = vmatmul.f32.gmra.mxu0 %v1090
        %v1306 = vpop.f32.mrf.mxu0
        %v1307 = vadd.f32 %v1227, %v1306
        %1308 = vmatmul.f32.gmra.mxu0 %v1094
        %v1309 = vpop.f32.mrf.mxu0
        %v1310 = vadd.f32 %v1230, %v1309
        %1311 = vmatmul.f32.gmra.mxu0 %v1098
        %v1312 = vpop.f32.mrf.mxu0
        %v1313 = vadd.f32 %v1233, %v1312
        %1314 = vmatmul.f32.gmra.mxu0 %v1102
        %v1315 = vpop.f32.mrf.mxu0
        %v1316 = vadd.f32 %v1236, %v1315
        %1317 = vmatmul.f32.gmra.mxu0 %v1106
        %v1318 = vpop.f32.mrf.mxu0
        %v1319 = vadd.f32 %v1239, %v1318
        %1320 = vmatmul.f32.gmra.mxu0 %v1110
        %v1321 = vpop.f32.mrf.mxu0
        %v1322 = vadd.f32 %v1242, %v1321
        %1323 = vmatmul.f32.gmra.mxu0 %v1114
        %v1324 = vpop.f32.mrf.mxu0
        %v1325 = vadd.f32 %v1245, %v1324
        %1326 = vmatmul.f32.gmra.mxu0 %v1118
        %v1327 = vpop.f32.mrf.mxu0
        %v1328 = vadd.f32 %v1248, %v1327
        %1329 = vmatmul.f32.gmra.mxu0 %v1122
        %v1330 = vpop.f32.mrf.mxu0
        %v1331 = vadd.f32 %v1251, %v1330
        %1332 = vmatmul.f32.gmra.mxu0 %v1126
        %v1333 = vpop.f32.mrf.mxu0
        %v1334 = vadd.f32 %v1254, %v1333
        %1335 = vmatmul.f32.gmra.mxu0 %v1130
        %v1336 = vpop.f32.mrf.mxu0
        %v1337 = vadd.f32 %v1257, %v1336
        %1338 = vmatmul.f32.gmra.mxu0 %v1134
        %v1339 = vpop.f32.mrf.mxu0
        %v1340 = vadd.f32 %v1260, %v1339
        %1341 = vmatmul.f32.gmra.mxu0 %v1138
        %v1342 = vpop.f32.mrf.mxu0
        %v1343 = vadd.f32 %v1263, %v1342
        %1344 = vmatmul.f32.gmra.mxu0 %v1142
        %v1345 = vpop.f32.mrf.mxu0
        %v1346 = vadd.f32 %v1266, %v1345
        %1347 = vmatmul.f32.gmra.mxu0 %v1146
        %v1348 = vpop.f32.mrf.mxu0
        %v1349 = vadd.f32 %v1269, %v1348
        %1350 = vmatmul.f32.gmra.mxu0 %v1150
        %v1351 = vpop.f32.mrf.mxu0
        %v1352 = vadd.f32 %v1272, %v1351
        %1353 = vmatmul.f32.gmra.mxu0 %v1154
        %v1354 = vpop.f32.mrf.mxu0
        %v1355 = vadd.f32 %v1275, %v1354
        %1356 = vdwg.mxu0
        %1357 = vmatpush.xpose.msra.mxu0 %v985
        %1358 = vmatpush.xpose.msra.mxu0 %v983
        %1359 = vmatpush.xpose.msra.mxu0 %v981
        %1360 = vmatpush.xpose.msra.mxu0 %v979
        %1361 = vmatpush.xpose.msra.mxu0 %v977
        %1362 = vmatpush.xpose.msra.mxu0 %v975
        %1363 = vmatpush.xpose.msra.mxu0 %v973
        %1364 = vmatpush.xpose.msra.mxu0 %v971
        %1365 = vmatpush.xpose.msra.mxu0 %v969
        %1366 = vmatpush.xpose.msra.mxu0 %v967
        %1367 = vmatpush.xpose.msra.mxu0 %v965
        %1368 = vmatpush.xpose.msra.mxu0 %v963
        %1369 = vmatpush.xpose.msra.mxu0 %v961
        %1370 = vmatpush.xpose.msra.mxu0 %v959
        %1371 = vmatpush.xpose.msra.mxu0 %v957
        %1372 = vmatpush.xpose.msra.mxu0 %v955
        %1373 = vmatmul.f32.gmra.mxu0 %v913
        %v1374 = vpop.f32.mrf.mxu0
        %v1375 = vadd.f32 %v1295, %v1374
        %1376 = vmatmul.f32.gmra.mxu0 %v915
        %v1377 = vpop.f32.mrf.mxu0
        %v1378 = vadd.f32 %v1298, %v1377
        %1379 = vmatmul.f32.gmra.mxu0 %v917
        %v1380 = vpop.f32.mrf.mxu0
        %v1381 = vadd.f32 %v1301, %v1380
        %1382 = vmatmul.f32.gmra.mxu0 %v919
        %v1383 = vpop.f32.mrf.mxu0
        %v1384 = vadd.f32 %v1304, %v1383
        %1385 = vmatmul.f32.gmra.mxu0 %v921
        %v1386 = vpop.f32.mrf.mxu0
        %v1387 = vadd.f32 %v1307, %v1386
        %1388 = vmatmul.f32.gmra.mxu0 %v923
        %v1389 = vpop.f32.mrf.mxu0
        %v1390 = vadd.f32 %v1310, %v1389
        %1391 = vmatmul.f32.gmra.mxu0 %v925
        %v1392 = vpop.f32.mrf.mxu0
        %v1393 = vadd.f32 %v1313, %v1392
        %1394 = vmatmul.f32.gmra.mxu0 %v927
        %v1395 = vpop.f32.mrf.mxu0
        %v1396 = vadd.f32 %v1316, %v1395
        %1397 = vmatmul.f32.gmra.mxu0 %v929
        %v1398 = vpop.f32.mrf.mxu0
        %v1399 = vadd.f32 %v1319, %v1398
        %1400 = vmatmul.f32.gmra.mxu0 %v931
        %v1401 = vpop.f32.mrf.mxu0
        %v1402 = vadd.f32 %v1322, %v1401
        %1403 = vmatmul.f32.gmra.mxu0 %v933
        %v1404 = vpop.f32.mrf.mxu0
        %v1405 = vadd.f32 %v1325, %v1404
        %1406 = vmatmul.f32.gmra.mxu0 %v935
        %v1407 = vpop.f32.mrf.mxu0
        %v1408 = vadd.f32 %v1328, %v1407
        %1409 = vmatmul.f32.gmra.mxu0 %v937
        %v1410 = vpop.f32.mrf.mxu0
        %v1411 = vadd.f32 %v1331, %v1410
        %1412 = vmatmul.f32.gmra.mxu0 %v939
        %v1413 = vpop.f32.mrf.mxu0
        %v1414 = vadd.f32 %v1334, %v1413
        %1415 = vmatmul.f32.gmra.mxu0 %v941
        %v1416 = vpop.f32.mrf.mxu0
        %v1417 = vadd.f32 %v1337, %v1416
        %1418 = vmatmul.f32.gmra.mxu0 %v943
        %v1419 = vpop.f32.mrf.mxu0
        %v1420 = vadd.f32 %v1340, %v1419
        %1421 = vmatmul.f32.gmra.mxu0 %v945
        %v1422 = vpop.f32.mrf.mxu0
        %v1423 = vadd.f32 %v1343, %v1422
        %1424 = vmatmul.f32.gmra.mxu0 %v947
        %v1425 = vpop.f32.mrf.mxu0
        %v1426 = vadd.f32 %v1346, %v1425
        %1427 = vmatmul.f32.gmra.mxu0 %v949
        %v1428 = vpop.f32.mrf.mxu0
        %v1429 = vadd.f32 %v1349, %v1428
        %1430 = vmatmul.f32.gmra.mxu0 %v951
        %v1431 = vpop.f32.mrf.mxu0
        %v1432 = vadd.f32 %v1352, %v1431
        %1433 = vmatmul.f32.gmra.mxu0 %v953
        %v1434 = vpop.f32.mrf.mxu0
        %v1435 = vadd.f32 %v1355, %v1434
        %1436 = vdwg.mxu0
        %1437 = vmatpush.xpose.msra.mxu0 %v986
        %1438 = vmatpush.xpose.msra.mxu0 %v984
        %1439 = vmatpush.xpose.msra.mxu0 %v982
        %1440 = vmatpush.xpose.msra.mxu0 %v980
        %1441 = vmatpush.xpose.msra.mxu0 %v978
        %1442 = vmatpush.xpose.msra.mxu0 %v976
        %1443 = vmatpush.xpose.msra.mxu0 %v974
        %1444 = vmatpush.xpose.msra.mxu0 %v972
        %1445 = vmatpush.xpose.msra.mxu0 %v970
        %1446 = vmatpush.xpose.msra.mxu0 %v968
        %1447 = vmatpush.xpose.msra.mxu0 %v966
        %1448 = vmatpush.xpose.msra.mxu0 %v964
        %1449 = vmatpush.xpose.msra.mxu0 %v962
        %1450 = vmatpush.xpose.msra.mxu0 %v960
        %1451 = vmatpush.xpose.msra.mxu0 %v958
        %1452 = vmatpush.xpose.msra.mxu0 %v956
        %1453 = vmatmul.f32.gmra.mxu0 %v914
        %v1454 = vpop.f32.mrf.mxu0
        %v1455 = vadd.f32 %v1375, %v1454
        %1456 = vmatmul.f32.gmra.mxu0 %v916
        %v1457 = vpop.f32.mrf.mxu0
        %v1458 = vadd.f32 %v1378, %v1457
        %1459 = vmatmul.f32.gmra.mxu0 %v918
        %v1460 = vpop.f32.mrf.mxu0
        %v1461 = vadd.f32 %v1381, %v1460
        %1462 = vmatmul.f32.gmra.mxu0 %v920
        %v1463 = vpop.f32.mrf.mxu0
        %v1464 = vadd.f32 %v1384, %v1463
        %1465 = vmatmul.f32.gmra.mxu0 %v922
        %v1466 = vpop.f32.mrf.mxu0
        %v1467 = vadd.f32 %v1387, %v1466
        %1468 = vmatmul.f32.gmra.mxu0 %v924
        %v1469 = vpop.f32.mrf.mxu0
        %v1470 = vadd.f32 %v1390, %v1469
        %1471 = vmatmul.f32.gmra.mxu0 %v926
        %v1472 = vpop.f32.mrf.mxu0
        %v1473 = vadd.f32 %v1393, %v1472
        %1474 = vmatmul.f32.gmra.mxu0 %v928
        %v1475 = vpop.f32.mrf.mxu0
        %v1476 = vadd.f32 %v1396, %v1475
        %1477 = vmatmul.f32.gmra.mxu0 %v930
        %v1478 = vpop.f32.mrf.mxu0
        %v1479 = vadd.f32 %v1399, %v1478
        %1480 = vmatmul.f32.gmra.mxu0 %v932
        %v1481 = vpop.f32.mrf.mxu0
        %v1482 = vadd.f32 %v1402, %v1481
        %1483 = vmatmul.f32.gmra.mxu0 %v934
        %v1484 = vpop.f32.mrf.mxu0
        %v1485 = vadd.f32 %v1405, %v1484
        %1486 = vmatmul.f32.gmra.mxu0 %v936
        %v1487 = vpop.f32.mrf.mxu0
        %v1488 = vadd.f32 %v1408, %v1487
        %1489 = vmatmul.f32.gmra.mxu0 %v938
        %v1490 = vpop.f32.mrf.mxu0
        %v1491 = vadd.f32 %v1411, %v1490
        %1492 = vmatmul.f32.gmra.mxu0 %v940
        %v1493 = vpop.f32.mrf.mxu0
        %v1494 = vadd.f32 %v1414, %v1493
        %1495 = vmatmul.f32.gmra.mxu0 %v942
        %v1496 = vpop.f32.mrf.mxu0
        %v1497 = vadd.f32 %v1417, %v1496
        %1498 = vmatmul.f32.gmra.mxu0 %v944
        %v1499 = vpop.f32.mrf.mxu0
        %v1500 = vadd.f32 %v1420, %v1499
        %1501 = vmatmul.f32.gmra.mxu0 %v946
        %v1502 = vpop.f32.mrf.mxu0
        %v1503 = vadd.f32 %v1423, %v1502
        %1504 = vmatmul.f32.gmra.mxu0 %v948
        %v1505 = vpop.f32.mrf.mxu0
        %v1506 = vadd.f32 %v1426, %v1505
        %1507 = vmatmul.f32.gmra.mxu0 %v950
        %v1508 = vpop.f32.mrf.mxu0
        %v1509 = vadd.f32 %v1429, %v1508
        %1510 = vmatmul.f32.gmra.mxu0 %v952
        %v1511 = vpop.f32.mrf.mxu0
        %v1512 = vadd.f32 %v1432, %v1511
        %1513 = vmatmul.f32.gmra.mxu0 %v954
        %v1514 = vpop.f32.mrf.mxu0
        %v1515 = vadd.f32 %v1435, %v1514
        %1516 = vdwg.mxu0
        %v1517 = vld [vmem:[#allocation2] sm:$0xfc]
        %v1518 = vld [vmem:[#allocation2 + $0x8] sm:$0xfc]
        %v1519 = vld [vmem:[#allocation2 + $0x150] sm:$0x3]
        %v1520 = vld [vmem:[#allocation2 + $0x158] sm:$0x3]
        %s1521 = scalar_lea.vmem %s3, 512
        %v1522 = vld [vmem:[%s1521] sm:$0xff]
        %v1523 = vld [vmem:[%s1521 + $0x8] sm:$0xff]
        %v1524 = vld [vmem:[%s1521 + $0x10] sm:$0xff]
        %v1525 = vld [vmem:[%s1521 + $0x18] sm:$0xff]
        %v1526 = vld [vmem:[%s1521 + $0x20] sm:$0xff]
        %v1527 = vld [vmem:[%s1521 + $0x28] sm:$0xff]
        %v1528 = vld [vmem:[%s1521 + $0x30] sm:$0xff]
        %v1529 = vld [vmem:[%s1521 + $0x38] sm:$0xff]
        %v1530 = vld [vmem:[%s1521 + $0x40] sm:$0xff]
        %v1531 = vld [vmem:[%s1521 + $0x48] sm:$0xff]
        %v1532 = vld [vmem:[%s1521 + $0x50] sm:$0xff]
        %v1533 = vld [vmem:[%s1521 + $0x58] sm:$0xff]
        %v1534 = vld [vmem:[%s1521 + $0x60] sm:$0xff]
        %v1535 = vld [vmem:[%s1521 + $0x68] sm:$0xff]
        %v1536 = vld [vmem:[%s1521 + $0x70] sm:$0xff]
        %v1537 = vld [vmem:[%s1521 + $0x78] sm:$0xff]
        %v1538 = vld [vmem:[%s1521 + $0x80] sm:$0xff]
        %v1539 = vld [vmem:[%s1521 + $0x88] sm:$0xff]
        %v1540 = vld [vmem:[%s1521 + $0x90] sm:$0xff]
        %v1541 = vld [vmem:[%s1521 + $0x98] sm:$0xff]
        %v1542 = vld [vmem:[%s1521 + $0xa0] sm:$0xff]
        %v1543 = vld [vmem:[%s1521 + $0xa8] sm:$0xff]
        %v1544 = vld [vmem:[%s1521 + $0xb0] sm:$0xff]
        %v1545 = vld [vmem:[%s1521 + $0xb8] sm:$0xff]
        %v1546 = vld [vmem:[%s1521 + $0xc0] sm:$0xff]
        %v1547 = vld [vmem:[%s1521 + $0xc8] sm:$0xff]
        %v1548 = vld [vmem:[%s1521 + $0xd0] sm:$0xff]
        %v1549 = vld [vmem:[%s1521 + $0xd8] sm:$0xff]
        %v1550 = vld [vmem:[%s1521 + $0xe0] sm:$0xff]
        %v1551 = vld [vmem:[%s1521 + $0xe8] sm:$0xff]
        %v1552 = vld [vmem:[%s1521 + $0xf0] sm:$0xff]
        %v1553 = vld [vmem:[%s1521 + $0xf8] sm:$0xff]
        %vm1558 = vcmask 1045504
        %v1559 = vrot.slane %v1517, 2
        %v1560 = vrot.slane %v915, 2
        %v1561 = vsel %vm1558, %v1559, %v1560
        %v1562 = vrot.slane %v1518, 2
        %v1563 = vrot.slane %v916, 2
        %v1564 = vsel %vm1558, %v1562, %v1563
        %v1565 = vrot.slane %v917, 2
        %v1566 = vsel %vm1558, %v1560, %v1565
        %v1567 = vrot.slane %v918, 2
        %v1568 = vsel %vm1558, %v1563, %v1567
        %v1569 = vrot.slane %v919, 2
        %v1570 = vsel %vm1558, %v1565, %v1569
        %v1571 = vrot.slane %v920, 2
        %v1572 = vsel %vm1558, %v1567, %v1571
        %v1573 = vrot.slane %v921, 2
        %v1574 = vsel %vm1558, %v1569, %v1573
        %v1575 = vrot.slane %v922, 2
        %v1576 = vsel %vm1558, %v1571, %v1575
        %v1577 = vrot.slane %v923, 2
        %v1578 = vsel %vm1558, %v1573, %v1577
        %v1579 = vrot.slane %v924, 2
        %v1580 = vsel %vm1558, %v1575, %v1579
        %v1581 = vrot.slane %v925, 2
        %v1582 = vsel %vm1558, %v1577, %v1581
        %v1583 = vrot.slane %v926, 2
        %v1584 = vsel %vm1558, %v1579, %v1583
        %v1585 = vrot.slane %v927, 2
        %v1586 = vsel %vm1558, %v1581, %v1585
        %v1587 = vrot.slane %v928, 2
        %v1588 = vsel %vm1558, %v1583, %v1587
        %v1589 = vrot.slane %v929, 2
        %v1590 = vsel %vm1558, %v1585, %v1589
        %v1591 = vrot.slane %v930, 2
        %v1592 = vsel %vm1558, %v1587, %v1591
        %v1593 = vrot.slane %v931, 2
        %v1594 = vsel %vm1558, %v1589, %v1593
        %v1595 = vrot.slane %v932, 2
        %v1596 = vsel %vm1558, %v1591, %v1595
        %v1597 = vrot.slane %v933, 2
        %v1598 = vsel %vm1558, %v1593, %v1597
        %v1599 = vrot.slane %v934, 2
        %v1600 = vsel %vm1558, %v1595, %v1599
        %v1601 = vrot.slane %v935, 2
        %v1602 = vsel %vm1558, %v1597, %v1601
        %v1603 = vrot.slane %v936, 2
        %v1604 = vsel %vm1558, %v1599, %v1603
        %v1605 = vrot.slane %v937, 2
        %v1606 = vsel %vm1558, %v1601, %v1605
        %v1607 = vrot.slane %v938, 2
        %v1608 = vsel %vm1558, %v1603, %v1607
        %v1609 = vrot.slane %v939, 2
        %v1610 = vsel %vm1558, %v1605, %v1609
        %v1611 = vrot.slane %v940, 2
        %v1612 = vsel %vm1558, %v1607, %v1611
        %v1613 = vrot.slane %v941, 2
        %v1614 = vsel %vm1558, %v1609, %v1613
        %v1615 = vrot.slane %v942, 2
        %v1616 = vsel %vm1558, %v1611, %v1615
        %v1617 = vrot.slane %v943, 2
        %v1618 = vsel %vm1558, %v1613, %v1617
        %v1619 = vrot.slane %v944, 2
        %v1620 = vsel %vm1558, %v1615, %v1619
        %v1621 = vrot.slane %v945, 2
        %v1622 = vsel %vm1558, %v1617, %v1621
        %v1623 = vrot.slane %v946, 2
        %v1624 = vsel %vm1558, %v1619, %v1623
        %v1625 = vrot.slane %v947, 2
        %v1626 = vsel %vm1558, %v1621, %v1625
        %v1627 = vrot.slane %v948, 2
        %v1628 = vsel %vm1558, %v1623, %v1627
        %v1629 = vrot.slane %v949, 2
        %v1630 = vsel %vm1558, %v1625, %v1629
        %v1631 = vrot.slane %v950, 2
        %v1632 = vsel %vm1558, %v1627, %v1631
        %v1633 = vrot.slane %v951, 2
        %v1634 = vsel %vm1558, %v1629, %v1633
        %v1635 = vrot.slane %v952, 2
        %v1636 = vsel %vm1558, %v1631, %v1635
        %v1637 = vrot.slane %v953, 2
        %v1638 = vsel %vm1558, %v1633, %v1637
        %v1639 = vrot.slane %v954, 2
        %v1640 = vsel %vm1558, %v1635, %v1639
        %v1641 = vrot.slane %v1519, 2
        %v1642 = vsel %vm1558, %v1637, %v1641
        %v1643 = vrot.slane %v1520, 2
        %v1644 = vsel %vm1558, %v1639, %v1643
        %1687 = vmatpush.xpose.msra.mxu0 %v1552
        %1688 = vmatpush.xpose.msra.mxu0 %v1550
        %1689 = vmatpush.xpose.msra.mxu0 %v1548
        %1690 = vmatpush.xpose.msra.mxu0 %v1546
        %1691 = vmatpush.xpose.msra.mxu0 %v1544
        %1692 = vmatpush.xpose.msra.mxu0 %v1542
        %1693 = vmatpush.xpose.msra.mxu0 %v1540
        %1694 = vmatpush.xpose.msra.mxu0 %v1538
        %1695 = vmatpush.xpose.msra.mxu0 %v1536
        %1696 = vmatpush.xpose.msra.mxu0 %v1534
        %1697 = vmatpush.xpose.msra.mxu0 %v1532
        %1698 = vmatpush.xpose.msra.mxu0 %v1530
        %1699 = vmatpush.xpose.msra.mxu0 %v1528
        %1700 = vmatpush.xpose.msra.mxu0 %v1526
        %1701 = vmatpush.xpose.msra.mxu0 %v1524
        %1702 = vmatpush.xpose.msra.mxu0 %v1522
        %1703 = vmatmul.f32.gmra.mxu0 %v1561
        %v1704 = vpop.f32.mrf.mxu0
        %v1705 = vadd.f32 0.0, %v1704
        %1706 = vmatmul.f32.gmra.mxu0 %v1566
        %v1707 = vpop.f32.mrf.mxu0
        %v1708 = vadd.f32 0.0, %v1707
        %1709 = vmatmul.f32.gmra.mxu0 %v1570
        %v1710 = vpop.f32.mrf.mxu0
        %v1711 = vadd.f32 0.0, %v1710
        %1712 = vmatmul.f32.gmra.mxu0 %v1574
        %v1713 = vpop.f32.mrf.mxu0
        %v1714 = vadd.f32 0.0, %v1713
        %1715 = vmatmul.f32.gmra.mxu0 %v1578
        %v1716 = vpop.f32.mrf.mxu0
        %v1717 = vadd.f32 0.0, %v1716
        %1718 = vmatmul.f32.gmra.mxu0 %v1582
        %v1719 = vpop.f32.mrf.mxu0
        %v1720 = vadd.f32 0.0, %v1719
        %1721 = vmatmul.f32.gmra.mxu0 %v1586
        %v1722 = vpop.f32.mrf.mxu0
        %v1723 = vadd.f32 0.0, %v1722
        %1724 = vmatmul.f32.gmra.mxu0 %v1590
        %v1725 = vpop.f32.mrf.mxu0
        %v1726 = vadd.f32 0.0, %v1725
        %1727 = vmatmul.f32.gmra.mxu0 %v1594
        %v1728 = vpop.f32.mrf.mxu0
        %v1729 = vadd.f32 0.0, %v1728
        %1730 = vmatmul.f32.gmra.mxu0 %v1598
        %v1731 = vpop.f32.mrf.mxu0
        %v1732 = vadd.f32 0.0, %v1731
        %1733 = vmatmul.f32.gmra.mxu0 %v1602
        %v1734 = vpop.f32.mrf.mxu0
        %v1735 = vadd.f32 0.0, %v1734
        %1736 = vmatmul.f32.gmra.mxu0 %v1606
        %v1737 = vpop.f32.mrf.mxu0
        %v1738 = vadd.f32 0.0, %v1737
        %1739 = vmatmul.f32.gmra.mxu0 %v1610
        %v1740 = vpop.f32.mrf.mxu0
        %v1741 = vadd.f32 0.0, %v1740
        %1742 = vmatmul.f32.gmra.mxu0 %v1614
        %v1743 = vpop.f32.mrf.mxu0
        %v1744 = vadd.f32 0.0, %v1743
        %1745 = vmatmul.f32.gmra.mxu0 %v1618
        %v1746 = vpop.f32.mrf.mxu0
        %v1747 = vadd.f32 0.0, %v1746
        %1748 = vmatmul.f32.gmra.mxu0 %v1622
        %v1749 = vpop.f32.mrf.mxu0
        %v1750 = vadd.f32 0.0, %v1749
        %1751 = vmatmul.f32.gmra.mxu0 %v1626
        %v1752 = vpop.f32.mrf.mxu0
        %v1753 = vadd.f32 0.0, %v1752
        %1754 = vmatmul.f32.gmra.mxu0 %v1630
        %v1755 = vpop.f32.mrf.mxu0
        %v1756 = vadd.f32 0.0, %v1755
        %1757 = vmatmul.f32.gmra.mxu0 %v1634
        %v1758 = vpop.f32.mrf.mxu0
        %v1759 = vadd.f32 0.0, %v1758
        %1760 = vmatmul.f32.gmra.mxu0 %v1638
        %v1761 = vpop.f32.mrf.mxu0
        %v1762 = vadd.f32 0.0, %v1761
        %1763 = vmatmul.f32.gmra.mxu0 %v1642
        %v1764 = vpop.f32.mrf.mxu0
        %v1765 = vadd.f32 0.0, %v1764
        %1766 = vdwg.mxu0
        %1767 = vmatpush.xpose.msra.mxu0 %v1553
        %1768 = vmatpush.xpose.msra.mxu0 %v1551
        %1769 = vmatpush.xpose.msra.mxu0 %v1549
        %1770 = vmatpush.xpose.msra.mxu0 %v1547
        %1771 = vmatpush.xpose.msra.mxu0 %v1545
        %1772 = vmatpush.xpose.msra.mxu0 %v1543
        %1773 = vmatpush.xpose.msra.mxu0 %v1541
        %1774 = vmatpush.xpose.msra.mxu0 %v1539
        %1775 = vmatpush.xpose.msra.mxu0 %v1537
        %1776 = vmatpush.xpose.msra.mxu0 %v1535
        %1777 = vmatpush.xpose.msra.mxu0 %v1533
        %1778 = vmatpush.xpose.msra.mxu0 %v1531
        %1779 = vmatpush.xpose.msra.mxu0 %v1529
        %1780 = vmatpush.xpose.msra.mxu0 %v1527
        %1781 = vmatpush.xpose.msra.mxu0 %v1525
        %1782 = vmatpush.xpose.msra.mxu0 %v1523
        %1783 = vmatmul.f32.gmra.mxu0 %v1564
        %v1784 = vpop.f32.mrf.mxu0
        %v1785 = vadd.f32 %v1705, %v1784
        %1786 = vmatmul.f32.gmra.mxu0 %v1568
        %v1787 = vpop.f32.mrf.mxu0
        %v1788 = vadd.f32 %v1708, %v1787
        %1789 = vmatmul.f32.gmra.mxu0 %v1572
        %v1790 = vpop.f32.mrf.mxu0
        %v1791 = vadd.f32 %v1711, %v1790
        %1792 = vmatmul.f32.gmra.mxu0 %v1576
        %v1793 = vpop.f32.mrf.mxu0
        %v1794 = vadd.f32 %v1714, %v1793
        %1795 = vmatmul.f32.gmra.mxu0 %v1580
        %v1796 = vpop.f32.mrf.mxu0
        %v1797 = vadd.f32 %v1717, %v1796
        %1798 = vmatmul.f32.gmra.mxu0 %v1584
        %v1799 = vpop.f32.mrf.mxu0
        %v1800 = vadd.f32 %v1720, %v1799
        %1801 = vmatmul.f32.gmra.mxu0 %v1588
        %v1802 = vpop.f32.mrf.mxu0
        %v1803 = vadd.f32 %v1723, %v1802
        %1804 = vmatmul.f32.gmra.mxu0 %v1592
        %v1805 = vpop.f32.mrf.mxu0
        %v1806 = vadd.f32 %v1726, %v1805
        %1807 = vmatmul.f32.gmra.mxu0 %v1596
        %v1808 = vpop.f32.mrf.mxu0
        %v1809 = vadd.f32 %v1729, %v1808
        %1810 = vmatmul.f32.gmra.mxu0 %v1600
        %v1811 = vpop.f32.mrf.mxu0
        %v1812 = vadd.f32 %v1732, %v1811
        %1813 = vmatmul.f32.gmra.mxu0 %v1604
        %v1814 = vpop.f32.mrf.mxu0
        %v1815 = vadd.f32 %v1735, %v1814
        %1816 = vmatmul.f32.gmra.mxu0 %v1608
        %v1817 = vpop.f32.mrf.mxu0
        %v1818 = vadd.f32 %v1738, %v1817
        %1819 = vmatmul.f32.gmra.mxu0 %v1612
        %v1820 = vpop.f32.mrf.mxu0
        %v1821 = vadd.f32 %v1741, %v1820
        %1822 = vmatmul.f32.gmra.mxu0 %v1616
        %v1823 = vpop.f32.mrf.mxu0
        %v1824 = vadd.f32 %v1744, %v1823
        %1825 = vmatmul.f32.gmra.mxu0 %v1620
        %v1826 = vpop.f32.mrf.mxu0
        %v1827 = vadd.f32 %v1747, %v1826
        %1828 = vmatmul.f32.gmra.mxu0 %v1624
        %v1829 = vpop.f32.mrf.mxu0
        %v1830 = vadd.f32 %v1750, %v1829
        %1831 = vmatmul.f32.gmra.mxu0 %v1628
        %v1832 = vpop.f32.mrf.mxu0
        %v1833 = vadd.f32 %v1753, %v1832
        %1834 = vmatmul.f32.gmra.mxu0 %v1632
        %v1835 = vpop.f32.mrf.mxu0
        %v1836 = vadd.f32 %v1756, %v1835
        %1837 = vmatmul.f32.gmra.mxu0 %v1636
        %v1838 = vpop.f32.mrf.mxu0
        %v1839 = vadd.f32 %v1759, %v1838
        %1840 = vmatmul.f32.gmra.mxu0 %v1640
        %v1841 = vpop.f32.mrf.mxu0
        %v1842 = vadd.f32 %v1762, %v1841
        %1843 = vmatmul.f32.gmra.mxu0 %v1644
        %v1844 = vpop.f32.mrf.mxu0
        %v1845 = vadd.f32 %v1765, %v1844
        %1846 = vdwg.mxu0
        %v1847 = vadd.f32 %v1455, %v1785
        %v1848 = vadd.f32 %v1458, %v1788
        %v1849 = vadd.f32 %v1461, %v1791
        %v1850 = vadd.f32 %v1464, %v1794
        %v1851 = vadd.f32 %v1467, %v1797
        %v1852 = vadd.f32 %v1470, %v1800
        %v1853 = vadd.f32 %v1473, %v1803
        %v1854 = vadd.f32 %v1476, %v1806
        %v1855 = vadd.f32 %v1479, %v1809
        %v1856 = vadd.f32 %v1482, %v1812
        %v1857 = vadd.f32 %v1485, %v1815
        %v1858 = vadd.f32 %v1488, %v1818
        %v1859 = vadd.f32 %v1491, %v1821
        %v1860 = vadd.f32 %v1494, %v1824
        %v1861 = vadd.f32 %v1497, %v1827
        %v1862 = vadd.f32 %v1500, %v1830
        %v1863 = vadd.f32 %v1503, %v1833
        %v1864 = vadd.f32 %v1506, %v1836
        %v1865 = vadd.f32 %v1509, %v1839
        %v1866 = vadd.f32 %v1512, %v1842
        %v1867 = vadd.f32 %v1515, %v1845
        %v1868 = vld [vmem:[#allocation2 + $0x10] sm:$0xc0]
        %v1869 = vld [vmem:[#allocation2 + $0x18] sm:$0xc0]
        %v1870 = vld [vmem:[#allocation2 + $0x20] sm:$0xff]
        %v1871 = vld [vmem:[#allocation2 + $0x28] sm:$0xff]
        %v1872 = vld [vmem:[#allocation2 + $0x30] sm:$0xff]
        %v1873 = vld [vmem:[#allocation2 + $0x38] sm:$0xff]
        %v1874 = vld [vmem:[#allocation2 + $0x40] sm:$0xff]
        %v1875 = vld [vmem:[#allocation2 + $0x48] sm:$0xff]
        %v1876 = vld [vmem:[#allocation2 + $0x50] sm:$0xff]
        %v1877 = vld [vmem:[#allocation2 + $0x58] sm:$0xff]
        %v1878 = vld [vmem:[#allocation2 + $0x60] sm:$0xff]
        %v1879 = vld [vmem:[#allocation2 + $0x68] sm:$0xff]
        %v1880 = vld [vmem:[#allocation2 + $0x70] sm:$0xff]
        %v1881 = vld [vmem:[#allocation2 + $0x78] sm:$0xff]
        %v1882 = vld [vmem:[#allocation2 + $0x80] sm:$0xff]
        %v1883 = vld [vmem:[#allocation2 + $0x88] sm:$0xff]
        %v1884 = vld [vmem:[#allocation2 + $0x90] sm:$0xff]
        %v1885 = vld [vmem:[#allocation2 + $0x98] sm:$0xff]
        %v1886 = vld [vmem:[#allocation2 + $0xa0] sm:$0xff]
        %v1887 = vld [vmem:[#allocation2 + $0xa8] sm:$0xff]
        %v1888 = vld [vmem:[#allocation2 + $0xb0] sm:$0xff]
        %v1889 = vld [vmem:[#allocation2 + $0xb8] sm:$0xff]
        %v1890 = vld [vmem:[#allocation2 + $0xc0] sm:$0xff]
        %v1891 = vld [vmem:[#allocation2 + $0xc8] sm:$0xff]
        %v1892 = vld [vmem:[#allocation2 + $0xd0] sm:$0xff]
        %v1893 = vld [vmem:[#allocation2 + $0xd8] sm:$0xff]
        %v1894 = vld [vmem:[#allocation2 + $0xe0] sm:$0xff]
        %v1895 = vld [vmem:[#allocation2 + $0xe8] sm:$0xff]
        %v1896 = vld [vmem:[#allocation2 + $0xf0] sm:$0xff]
        %v1897 = vld [vmem:[#allocation2 + $0xf8] sm:$0xff]
        %v1898 = vld [vmem:[#allocation2 + $0x100] sm:$0xff]
        %v1899 = vld [vmem:[#allocation2 + $0x108] sm:$0xff]
        %v1900 = vld [vmem:[#allocation2 + $0x110] sm:$0xff]
        %v1901 = vld [vmem:[#allocation2 + $0x118] sm:$0xff]
        %v1902 = vld [vmem:[#allocation2 + $0x120] sm:$0xff]
        %v1903 = vld [vmem:[#allocation2 + $0x128] sm:$0xff]
        %v1904 = vld [vmem:[#allocation2 + $0x130] sm:$0xff]
        %v1905 = vld [vmem:[#allocation2 + $0x138] sm:$0xff]
        %v1906 = vld [vmem:[#allocation2 + $0x140] sm:$0xff]
        %v1907 = vld [vmem:[#allocation2 + $0x148] sm:$0xff]
        %v1908 = vld [vmem:[#allocation2 + $0x150] sm:$0xff]
        %v1909 = vld [vmem:[#allocation2 + $0x158] sm:$0xff]
        %v1910 = vld [vmem:[#allocation2 + $0x160] sm:$0x3f]
        %v1911 = vld [vmem:[#allocation2 + $0x168] sm:$0x3f]
        %s1912 = scalar_lea.vmem %s3, 768
        %v1913 = vld [vmem:[%s1912] sm:$0xff]
        %v1914 = vld [vmem:[%s1912 + $0x8] sm:$0xff]
        %v1915 = vld [vmem:[%s1912 + $0x10] sm:$0xff]
        %v1916 = vld [vmem:[%s1912 + $0x18] sm:$0xff]
        %v1917 = vld [vmem:[%s1912 + $0x20] sm:$0xff]
        %v1918 = vld [vmem:[%s1912 + $0x28] sm:$0xff]
        %v1919 = vld [vmem:[%s1912 + $0x30] sm:$0xff]
        %v1920 = vld [vmem:[%s1912 + $0x38] sm:$0xff]
        %v1921 = vld [vmem:[%s1912 + $0x40] sm:$0xff]
        %v1922 = vld [vmem:[%s1912 + $0x48] sm:$0xff]
        %v1923 = vld [vmem:[%s1912 + $0x50] sm:$0xff]
        %v1924 = vld [vmem:[%s1912 + $0x58] sm:$0xff]
        %v1925 = vld [vmem:[%s1912 + $0x60] sm:$0xff]
        %v1926 = vld [vmem:[%s1912 + $0x68] sm:$0xff]
        %v1927 = vld [vmem:[%s1912 + $0x70] sm:$0xff]
        %v1928 = vld [vmem:[%s1912 + $0x78] sm:$0xff]
        %v1929 = vld [vmem:[%s1912 + $0x80] sm:$0xff]
        %v1930 = vld [vmem:[%s1912 + $0x88] sm:$0xff]
        %v1931 = vld [vmem:[%s1912 + $0x90] sm:$0xff]
        %v1932 = vld [vmem:[%s1912 + $0x98] sm:$0xff]
        %v1933 = vld [vmem:[%s1912 + $0xa0] sm:$0xff]
        %v1934 = vld [vmem:[%s1912 + $0xa8] sm:$0xff]
        %v1935 = vld [vmem:[%s1912 + $0xb0] sm:$0xff]
        %v1936 = vld [vmem:[%s1912 + $0xb8] sm:$0xff]
        %v1937 = vld [vmem:[%s1912 + $0xc0] sm:$0xff]
        %v1938 = vld [vmem:[%s1912 + $0xc8] sm:$0xff]
        %v1939 = vld [vmem:[%s1912 + $0xd0] sm:$0xff]
        %v1940 = vld [vmem:[%s1912 + $0xd8] sm:$0xff]
        %v1941 = vld [vmem:[%s1912 + $0xe0] sm:$0xff]
        %v1942 = vld [vmem:[%s1912 + $0xe8] sm:$0xff]
        %v1943 = vld [vmem:[%s1912 + $0xf0] sm:$0xff]
        %v1944 = vld [vmem:[%s1912 + $0xf8] sm:$0xff]
        %vm1989 = vcmask 1041408
        %v1990 = vrot.slane %v1868, 6
        %v1991 = vrot.slane %v1870, 6
        %v1992 = vsel %vm1989, %v1990, %v1991
        %v1993 = vrot.slane %v1869, 6
        %v1994 = vrot.slane %v1871, 6
        %v1995 = vsel %vm1989, %v1993, %v1994
        %v1996 = vrot.slane %v1872, 6
        %v1997 = vsel %vm1989, %v1991, %v1996
        %v1998 = vrot.slane %v1873, 6
        %v1999 = vsel %vm1989, %v1994, %v1998
        %v2000 = vrot.slane %v1874, 6
        %v2001 = vsel %vm1989, %v1996, %v2000
        %v2002 = vrot.slane %v1875, 6
        %v2003 = vsel %vm1989, %v1998, %v2002
        %v2004 = vrot.slane %v1876, 6
        %v2005 = vsel %vm1989, %v2000, %v2004
        %v2006 = vrot.slane %v1877, 6
        %v2007 = vsel %vm1989, %v2002, %v2006
        %v2008 = vrot.slane %v1878, 6
        %v2009 = vsel %vm1989, %v2004, %v2008
        %v2010 = vrot.slane %v1879, 6
        %v2011 = vsel %vm1989, %v2006, %v2010
        %v2012 = vrot.slane %v1880, 6
        %v2013 = vsel %vm1989, %v2008, %v2012
        %v2014 = vrot.slane %v1881, 6
        %v2015 = vsel %vm1989, %v2010, %v2014
        %v2016 = vrot.slane %v1882, 6
        %v2017 = vsel %vm1989, %v2012, %v2016
        %v2018 = vrot.slane %v1883, 6
        %v2019 = vsel %vm1989, %v2014, %v2018
        %v2020 = vrot.slane %v1884, 6
        %v2021 = vsel %vm1989, %v2016, %v2020
        %v2022 = vrot.slane %v1885, 6
        %v2023 = vsel %vm1989, %v2018, %v2022
        %v2024 = vrot.slane %v1886, 6
        %v2025 = vsel %vm1989, %v2020, %v2024
        %v2026 = vrot.slane %v1887, 6
        %v2027 = vsel %vm1989, %v2022, %v2026
        %v2028 = vrot.slane %v1888, 6
        %v2029 = vsel %vm1989, %v2024, %v2028
        %v2030 = vrot.slane %v1889, 6
        %v2031 = vsel %vm1989, %v2026, %v2030
        %v2032 = vrot.slane %v1890, 6
        %v2033 = vsel %vm1989, %v2028, %v2032
        %v2034 = vrot.slane %v1891, 6
        %v2035 = vsel %vm1989, %v2030, %v2034
        %v2036 = vrot.slane %v1892, 6
        %v2037 = vsel %vm1989, %v2032, %v2036
        %v2038 = vrot.slane %v1893, 6
        %v2039 = vsel %vm1989, %v2034, %v2038
        %v2040 = vrot.slane %v1894, 6
        %v2041 = vsel %vm1989, %v2036, %v2040
        %v2042 = vrot.slane %v1895, 6
        %v2043 = vsel %vm1989, %v2038, %v2042
        %v2044 = vrot.slane %v1896, 6
        %v2045 = vsel %vm1989, %v2040, %v2044
        %v2046 = vrot.slane %v1897, 6
        %v2047 = vsel %vm1989, %v2042, %v2046
        %v2048 = vrot.slane %v1898, 6
        %v2049 = vsel %vm1989, %v2044, %v2048
        %v2050 = vrot.slane %v1899, 6
        %v2051 = vsel %vm1989, %v2046, %v2050
        %v2052 = vrot.slane %v1900, 6
        %v2053 = vsel %vm1989, %v2048, %v2052
        %v2054 = vrot.slane %v1901, 6
        %v2055 = vsel %vm1989, %v2050, %v2054
        %v2056 = vrot.slane %v1902, 6
        %v2057 = vsel %vm1989, %v2052, %v2056
        %v2058 = vrot.slane %v1903, 6
        %v2059 = vsel %vm1989, %v2054, %v2058
        %v2060 = vrot.slane %v1904, 6
        %v2061 = vsel %vm1989, %v2056, %v2060
        %v2062 = vrot.slane %v1905, 6
        %v2063 = vsel %vm1989, %v2058, %v2062
        %v2064 = vrot.slane %v1906, 6
        %v2065 = vsel %vm1989, %v2060, %v2064
        %v2066 = vrot.slane %v1907, 6
        %v2067 = vsel %vm1989, %v2062, %v2066
        %v2068 = vrot.slane %v1908, 6
        %v2069 = vsel %vm1989, %v2064, %v2068
        %v2070 = vrot.slane %v1909, 6
        %v2071 = vsel %vm1989, %v2066, %v2070
        %v2072 = vrot.slane %v1910, 6
        %v2073 = vsel %vm1989, %v2068, %v2072
        %v2074 = vrot.slane %v1911, 6
        %v2075 = vsel %vm1989, %v2070, %v2074
        %2118 = vmatpush.xpose.msra.mxu0 %v1943
        %2119 = vmatpush.xpose.msra.mxu0 %v1941
        %2120 = vmatpush.xpose.msra.mxu0 %v1939
        %2121 = vmatpush.xpose.msra.mxu0 %v1937
        %2122 = vmatpush.xpose.msra.mxu0 %v1935
        %2123 = vmatpush.xpose.msra.mxu0 %v1933
        %2124 = vmatpush.xpose.msra.mxu0 %v1931
        %2125 = vmatpush.xpose.msra.mxu0 %v1929
        %2126 = vmatpush.xpose.msra.mxu0 %v1927
        %2127 = vmatpush.xpose.msra.mxu0 %v1925
        %2128 = vmatpush.xpose.msra.mxu0 %v1923
        %2129 = vmatpush.xpose.msra.mxu0 %v1921
        %2130 = vmatpush.xpose.msra.mxu0 %v1919
        %2131 = vmatpush.xpose.msra.mxu0 %v1917
        %2132 = vmatpush.xpose.msra.mxu0 %v1915
        %2133 = vmatpush.xpose.msra.mxu0 %v1913
        %2134 = vmatmul.f32.gmra.mxu0 %v1992
        %v2135 = vpop.f32.mrf.mxu0
        %v2136 = vadd.f32 0.0, %v2135
        %2137 = vmatmul.f32.gmra.mxu0 %v1997
        %v2138 = vpop.f32.mrf.mxu0
        %v2139 = vadd.f32 0.0, %v2138
        %2140 = vmatmul.f32.gmra.mxu0 %v2001
        %v2141 = vpop.f32.mrf.mxu0
        %v2142 = vadd.f32 0.0, %v2141
        %2143 = vmatmul.f32.gmra.mxu0 %v2005
        %v2144 = vpop.f32.mrf.mxu0
        %v2145 = vadd.f32 0.0, %v2144
        %2146 = vmatmul.f32.gmra.mxu0 %v2009
        %v2147 = vpop.f32.mrf.mxu0
        %v2148 = vadd.f32 0.0, %v2147
        %2149 = vmatmul.f32.gmra.mxu0 %v2013
        %v2150 = vpop.f32.mrf.mxu0
        %v2151 = vadd.f32 0.0, %v2150
        %2152 = vmatmul.f32.gmra.mxu0 %v2017
        %v2153 = vpop.f32.mrf.mxu0
        %v2154 = vadd.f32 0.0, %v2153
        %2155 = vmatmul.f32.gmra.mxu0 %v2021
        %v2156 = vpop.f32.mrf.mxu0
        %v2157 = vadd.f32 0.0, %v2156
        %2158 = vmatmul.f32.gmra.mxu0 %v2025
        %v2159 = vpop.f32.mrf.mxu0
        %v2160 = vadd.f32 0.0, %v2159
        %2161 = vmatmul.f32.gmra.mxu0 %v2029
        %v2162 = vpop.f32.mrf.mxu0
        %v2163 = vadd.f32 0.0, %v2162
        %2164 = vmatmul.f32.gmra.mxu0 %v2033
        %v2165 = vpop.f32.mrf.mxu0
        %v2166 = vadd.f32 0.0, %v2165
        %2167 = vmatmul.f32.gmra.mxu0 %v2037
        %v2168 = vpop.f32.mrf.mxu0
        %v2169 = vadd.f32 0.0, %v2168
        %2170 = vmatmul.f32.gmra.mxu0 %v2041
        %v2171 = vpop.f32.mrf.mxu0
        %v2172 = vadd.f32 0.0, %v2171
        %2173 = vmatmul.f32.gmra.mxu0 %v2045
        %v2174 = vpop.f32.mrf.mxu0
        %v2175 = vadd.f32 0.0, %v2174
        %2176 = vmatmul.f32.gmra.mxu0 %v2049
        %v2177 = vpop.f32.mrf.mxu0
        %v2178 = vadd.f32 0.0, %v2177
        %2179 = vmatmul.f32.gmra.mxu0 %v2053
        %v2180 = vpop.f32.mrf.mxu0
        %v2181 = vadd.f32 0.0, %v2180
        %2182 = vmatmul.f32.gmra.mxu0 %v2057
        %v2183 = vpop.f32.mrf.mxu0
        %v2184 = vadd.f32 0.0, %v2183
        %2185 = vmatmul.f32.gmra.mxu0 %v2061
        %v2186 = vpop.f32.mrf.mxu0
        %v2187 = vadd.f32 0.0, %v2186
        %2188 = vmatmul.f32.gmra.mxu0 %v2065
        %v2189 = vpop.f32.mrf.mxu0
        %v2190 = vadd.f32 0.0, %v2189
        %2191 = vmatmul.f32.gmra.mxu0 %v2069
        %v2192 = vpop.f32.mrf.mxu0
        %v2193 = vadd.f32 0.0, %v2192
        %2194 = vmatmul.f32.gmra.mxu0 %v2073
        %v2195 = vpop.f32.mrf.mxu0
        %v2196 = vadd.f32 0.0, %v2195
        %2197 = vdwg.mxu0
        %2198 = vmatpush.xpose.msra.mxu0 %v1944
        %2199 = vmatpush.xpose.msra.mxu0 %v1942
        %2200 = vmatpush.xpose.msra.mxu0 %v1940
        %2201 = vmatpush.xpose.msra.mxu0 %v1938
        %2202 = vmatpush.xpose.msra.mxu0 %v1936
        %2203 = vmatpush.xpose.msra.mxu0 %v1934
        %2204 = vmatpush.xpose.msra.mxu0 %v1932
        %2205 = vmatpush.xpose.msra.mxu0 %v1930
        %2206 = vmatpush.xpose.msra.mxu0 %v1928
        %2207 = vmatpush.xpose.msra.mxu0 %v1926
        %2208 = vmatpush.xpose.msra.mxu0 %v1924
        %2209 = vmatpush.xpose.msra.mxu0 %v1922
        %2210 = vmatpush.xpose.msra.mxu0 %v1920
        %2211 = vmatpush.xpose.msra.mxu0 %v1918
        %2212 = vmatpush.xpose.msra.mxu0 %v1916
        %2213 = vmatpush.xpose.msra.mxu0 %v1914
        %2214 = vmatmul.f32.gmra.mxu0 %v1995
        %v2215 = vpop.f32.mrf.mxu0
        %v2216 = vadd.f32 %v2136, %v2215
        %2217 = vmatmul.f32.gmra.mxu0 %v1999
        %v2218 = vpop.f32.mrf.mxu0
        %v2219 = vadd.f32 %v2139, %v2218
        %2220 = vmatmul.f32.gmra.mxu0 %v2003
        %v2221 = vpop.f32.mrf.mxu0
        %v2222 = vadd.f32 %v2142, %v2221
        %2223 = vmatmul.f32.gmra.mxu0 %v2007
        %v2224 = vpop.f32.mrf.mxu0
        %v2225 = vadd.f32 %v2145, %v2224
        %2226 = vmatmul.f32.gmra.mxu0 %v2011
        %v2227 = vpop.f32.mrf.mxu0
        %v2228 = vadd.f32 %v2148, %v2227
        %2229 = vmatmul.f32.gmra.mxu0 %v2015
        %v2230 = vpop.f32.mrf.mxu0
        %v2231 = vadd.f32 %v2151, %v2230
        %2232 = vmatmul.f32.gmra.mxu0 %v2019
        %v2233 = vpop.f32.mrf.mxu0
        %v2234 = vadd.f32 %v2154, %v2233
        %2235 = vmatmul.f32.gmra.mxu0 %v2023
        %v2236 = vpop.f32.mrf.mxu0
        %v2237 = vadd.f32 %v2157, %v2236
        %2238 = vmatmul.f32.gmra.mxu0 %v2027
        %v2239 = vpop.f32.mrf.mxu0
        %v2240 = vadd.f32 %v2160, %v2239
        %2241 = vmatmul.f32.gmra.mxu0 %v2031
        %v2242 = vpop.f32.mrf.mxu0
        %v2243 = vadd.f32 %v2163, %v2242
        %2244 = vmatmul.f32.gmra.mxu0 %v2035
        %v2245 = vpop.f32.mrf.mxu0
        %v2246 = vadd.f32 %v2166, %v2245
        %2247 = vmatmul.f32.gmra.mxu0 %v2039
        %v2248 = vpop.f32.mrf.mxu0
        %v2249 = vadd.f32 %v2169, %v2248
        %2250 = vmatmul.f32.gmra.mxu0 %v2043
        %v2251 = vpop.f32.mrf.mxu0
        %v2252 = vadd.f32 %v2172, %v2251
        %2253 = vmatmul.f32.gmra.mxu0 %v2047
        %v2254 = vpop.f32.mrf.mxu0
        %v2255 = vadd.f32 %v2175, %v2254
        %2256 = vmatmul.f32.gmra.mxu0 %v2051
        %v2257 = vpop.f32.mrf.mxu0
        %v2258 = vadd.f32 %v2178, %v2257
        %2259 = vmatmul.f32.gmra.mxu0 %v2055
        %v2260 = vpop.f32.mrf.mxu0
        %v2261 = vadd.f32 %v2181, %v2260
        %2262 = vmatmul.f32.gmra.mxu0 %v2059
        %v2263 = vpop.f32.mrf.mxu0
        %v2264 = vadd.f32 %v2184, %v2263
        %2265 = vmatmul.f32.gmra.mxu0 %v2063
        %v2266 = vpop.f32.mrf.mxu0
        %v2267 = vadd.f32 %v2187, %v2266
        %2268 = vmatmul.f32.gmra.mxu0 %v2067
        %v2269 = vpop.f32.mrf.mxu0
        %v2270 = vadd.f32 %v2190, %v2269
        %2271 = vmatmul.f32.gmra.mxu0 %v2071
        %v2272 = vpop.f32.mrf.mxu0
        %v2273 = vadd.f32 %v2193, %v2272
        %2274 = vmatmul.f32.gmra.mxu0 %v2075
        %v2275 = vpop.f32.mrf.mxu0
        %v2276 = vadd.f32 %v2196, %v2275
        %2277 = vdwg.mxu0
        %v2278 = vadd.f32 %v1847, %v2216
        %v2279 = vadd.f32 %v1848, %v2219
        %v2280 = vadd.f32 %v1849, %v2222
        %v2281 = vadd.f32 %v1850, %v2225
        %v2282 = vadd.f32 %v1851, %v2228
        %v2283 = vadd.f32 %v1852, %v2231
        %v2284 = vadd.f32 %v1853, %v2234
        %v2285 = vadd.f32 %v1854, %v2237
        %v2286 = vadd.f32 %v1855, %v2240
        %v2287 = vadd.f32 %v1856, %v2243
        %v2288 = vadd.f32 %v1857, %v2246
        %v2289 = vadd.f32 %v1858, %v2249
        %v2290 = vadd.f32 %v1859, %v2252
        %v2291 = vadd.f32 %v1860, %v2255
        %v2292 = vadd.f32 %v1861, %v2258
        %v2293 = vadd.f32 %v1862, %v2261
        %v2294 = vadd.f32 %v1863, %v2264
        %v2295 = vadd.f32 %v1864, %v2267
        %v2296 = vadd.f32 %v1865, %v2270
        %v2297 = vadd.f32 %v1866, %v2273
        %v2298 = vadd.f32 %v1867, %v2276
        %v2299 = vld [vmem:[#allocation2 + $0x10] sm:$0x80]
        %v2300 = vld [vmem:[#allocation2 + $0x18] sm:$0x80]
        %v2301 = vld [vmem:[#allocation2 + $0x160] sm:$0x7f]
        %v2302 = vld [vmem:[#allocation2 + $0x168] sm:$0x7f]
        %s2303 = scalar_lea.vmem %s3, 1024
        %v2304 = vld [vmem:[%s2303] sm:$0xff]
        %v2305 = vld [vmem:[%s2303 + $0x8] sm:$0xff]
        %v2306 = vld [vmem:[%s2303 + $0x10] sm:$0xff]
        %v2307 = vld [vmem:[%s2303 + $0x18] sm:$0xff]
        %v2308 = vld [vmem:[%s2303 + $0x20] sm:$0xff]
        %v2309 = vld [vmem:[%s2303 + $0x28] sm:$0xff]
        %v2310 = vld [vmem:[%s2303 + $0x30] sm:$0xff]
        %v2311 = vld [vmem:[%s2303 + $0x38] sm:$0xff]
        %v2312 = vld [vmem:[%s2303 + $0x40] sm:$0xff]
        %v2313 = vld [vmem:[%s2303 + $0x48] sm:$0xff]
        %v2314 = vld [vmem:[%s2303 + $0x50] sm:$0xff]
        %v2315 = vld [vmem:[%s2303 + $0x58] sm:$0xff]
        %v2316 = vld [vmem:[%s2303 + $0x60] sm:$0xff]
        %v2317 = vld [vmem:[%s2303 + $0x68] sm:$0xff]
        %v2318 = vld [vmem:[%s2303 + $0x70] sm:$0xff]
        %v2319 = vld [vmem:[%s2303 + $0x78] sm:$0xff]
        %v2320 = vld [vmem:[%s2303 + $0x80] sm:$0xff]
        %v2321 = vld [vmem:[%s2303 + $0x88] sm:$0xff]
        %v2322 = vld [vmem:[%s2303 + $0x90] sm:$0xff]
        %v2323 = vld [vmem:[%s2303 + $0x98] sm:$0xff]
        %v2324 = vld [vmem:[%s2303 + $0xa0] sm:$0xff]
        %v2325 = vld [vmem:[%s2303 + $0xa8] sm:$0xff]
        %v2326 = vld [vmem:[%s2303 + $0xb0] sm:$0xff]
        %v2327 = vld [vmem:[%s2303 + $0xb8] sm:$0xff]
        %v2328 = vld [vmem:[%s2303 + $0xc0] sm:$0xff]
        %v2329 = vld [vmem:[%s2303 + $0xc8] sm:$0xff]
        %v2330 = vld [vmem:[%s2303 + $0xd0] sm:$0xff]
        %v2331 = vld [vmem:[%s2303 + $0xd8] sm:$0xff]
        %v2332 = vld [vmem:[%s2303 + $0xe0] sm:$0xff]
        %v2333 = vld [vmem:[%s2303 + $0xe8] sm:$0xff]
        %v2334 = vld [vmem:[%s2303 + $0xf0] sm:$0xff]
        %v2335 = vld [vmem:[%s2303 + $0xf8] sm:$0xff]
        %vm2340 = vcmask 1040384
        %v2341 = vrot.slane %v2299, 7
        %v2342 = vrot.slane %v1870, 7
        %v2343 = vsel %vm2340, %v2341, %v2342
        %v2344 = vrot.slane %v2300, 7
        %v2345 = vrot.slane %v1871, 7
        %v2346 = vsel %vm2340, %v2344, %v2345
        %v2347 = vrot.slane %v1872, 7
        %v2348 = vsel %vm2340, %v2342, %v2347
        %v2349 = vrot.slane %v1873, 7
        %v2350 = vsel %vm2340, %v2345, %v2349
        %v2351 = vrot.slane %v1874, 7
        %v2352 = vsel %vm2340, %v2347, %v2351
        %v2353 = vrot.slane %v1875, 7
        %v2354 = vsel %vm2340, %v2349, %v2353
        %v2355 = vrot.slane %v1876, 7
        %v2356 = vsel %vm2340, %v2351, %v2355
        %v2357 = vrot.slane %v1877, 7
        %v2358 = vsel %vm2340, %v2353, %v2357
        %v2359 = vrot.slane %v1878, 7
        %v2360 = vsel %vm2340, %v2355, %v2359
        %v2361 = vrot.slane %v1879, 7
        %v2362 = vsel %vm2340, %v2357, %v2361
        %v2363 = vrot.slane %v1880, 7
        %v2364 = vsel %vm2340, %v2359, %v2363
        %v2365 = vrot.slane %v1881, 7
        %v2366 = vsel %vm2340, %v2361, %v2365
        %v2367 = vrot.slane %v1882, 7
        %v2368 = vsel %vm2340, %v2363, %v2367
        %v2369 = vrot.slane %v1883, 7
        %v2370 = vsel %vm2340, %v2365, %v2369
        %v2371 = vrot.slane %v1884, 7
        %v2372 = vsel %vm2340, %v2367, %v2371
        %v2373 = vrot.slane %v1885, 7
        %v2374 = vsel %vm2340, %v2369, %v2373
        %v2375 = vrot.slane %v1886, 7
        %v2376 = vsel %vm2340, %v2371, %v2375
        %v2377 = vrot.slane %v1887, 7
        %v2378 = vsel %vm2340, %v2373, %v2377
        %v2379 = vrot.slane %v1888, 7
        %v2380 = vsel %vm2340, %v2375, %v2379
        %v2381 = vrot.slane %v1889, 7
        %v2382 = vsel %vm2340, %v2377, %v2381
        %v2383 = vrot.slane %v1890, 7
        %v2384 = vsel %vm2340, %v2379, %v2383
        %v2385 = vrot.slane %v1891, 7
        %v2386 = vsel %vm2340, %v2381, %v2385
        %v2387 = vrot.slane %v1892, 7
        %v2388 = vsel %vm2340, %v2383, %v2387
        %v2389 = vrot.slane %v1893, 7
        %v2390 = vsel %vm2340, %v2385, %v2389
        %v2391 = vrot.slane %v1894, 7
        %v2392 = vsel %vm2340, %v2387, %v2391
        %v2393 = vrot.slane %v1895, 7
        %v2394 = vsel %vm2340, %v2389, %v2393
        %v2395 = vrot.slane %v1896, 7
        %v2396 = vsel %vm2340, %v2391, %v2395
        %v2397 = vrot.slane %v1897, 7
        %v2398 = vsel %vm2340, %v2393, %v2397
        %v2399 = vrot.slane %v1898, 7
        %v2400 = vsel %vm2340, %v2395, %v2399
        %v2401 = vrot.slane %v1899, 7
        %v2402 = vsel %vm2340, %v2397, %v2401
        %v2403 = vrot.slane %v1900, 7
        %v2404 = vsel %vm2340, %v2399, %v2403
        %v2405 = vrot.slane %v1901, 7
        %v2406 = vsel %vm2340, %v2401, %v2405
        %v2407 = vrot.slane %v1902, 7
        %v2408 = vsel %vm2340, %v2403, %v2407
        %v2409 = vrot.slane %v1903, 7
        %v2410 = vsel %vm2340, %v2405, %v2409
        %v2411 = vrot.slane %v1904, 7
        %v2412 = vsel %vm2340, %v2407, %v2411
        %v2413 = vrot.slane %v1905, 7
        %v2414 = vsel %vm2340, %v2409, %v2413
        %v2415 = vrot.slane %v1906, 7
        %v2416 = vsel %vm2340, %v2411, %v2415
        %v2417 = vrot.slane %v1907, 7
        %v2418 = vsel %vm2340, %v2413, %v2417
        %v2419 = vrot.slane %v1908, 7
        %v2420 = vsel %vm2340, %v2415, %v2419
        %v2421 = vrot.slane %v1909, 7
        %v2422 = vsel %vm2340, %v2417, %v2421
        %v2423 = vrot.slane %v2301, 7
        %v2424 = vsel %vm2340, %v2419, %v2423
        %v2425 = vrot.slane %v2302, 7
        %v2426 = vsel %vm2340, %v2421, %v2425
        %2469 = vmatpush.xpose.msra.mxu0 %v2334
        %2470 = vmatpush.xpose.msra.mxu0 %v2332
        %2471 = vmatpush.xpose.msra.mxu0 %v2330
        %2472 = vmatpush.xpose.msra.mxu0 %v2328
        %2473 = vmatpush.xpose.msra.mxu0 %v2326
        %2474 = vmatpush.xpose.msra.mxu0 %v2324
        %2475 = vmatpush.xpose.msra.mxu0 %v2322
        %2476 = vmatpush.xpose.msra.mxu0 %v2320
        %2477 = vmatpush.xpose.msra.mxu0 %v2318
        %2478 = vmatpush.xpose.msra.mxu0 %v2316
        %2479 = vmatpush.xpose.msra.mxu0 %v2314
        %2480 = vmatpush.xpose.msra.mxu0 %v2312
        %2481 = vmatpush.xpose.msra.mxu0 %v2310
        %2482 = vmatpush.xpose.msra.mxu0 %v2308
        %2483 = vmatpush.xpose.msra.mxu0 %v2306
        %2484 = vmatpush.xpose.msra.mxu0 %v2304
        %2485 = vmatmul.f32.gmra.mxu0 %v2343
        %v2486 = vpop.f32.mrf.mxu0
        %v2487 = vadd.f32 0.0, %v2486
        %2488 = vmatmul.f32.gmra.mxu0 %v2348
        %v2489 = vpop.f32.mrf.mxu0
        %v2490 = vadd.f32 0.0, %v2489
        %2491 = vmatmul.f32.gmra.mxu0 %v2352
        %v2492 = vpop.f32.mrf.mxu0
        %v2493 = vadd.f32 0.0, %v2492
        %2494 = vmatmul.f32.gmra.mxu0 %v2356
        %v2495 = vpop.f32.mrf.mxu0
        %v2496 = vadd.f32 0.0, %v2495
        %2497 = vmatmul.f32.gmra.mxu0 %v2360
        %v2498 = vpop.f32.mrf.mxu0
        %v2499 = vadd.f32 0.0, %v2498
        %2500 = vmatmul.f32.gmra.mxu0 %v2364
        %v2501 = vpop.f32.mrf.mxu0
        %v2502 = vadd.f32 0.0, %v2501
        %2503 = vmatmul.f32.gmra.mxu0 %v2368
        %v2504 = vpop.f32.mrf.mxu0
        %v2505 = vadd.f32 0.0, %v2504
        %2506 = vmatmul.f32.gmra.mxu0 %v2372
        %v2507 = vpop.f32.mrf.mxu0
        %v2508 = vadd.f32 0.0, %v2507
        %2509 = vmatmul.f32.gmra.mxu0 %v2376
        %v2510 = vpop.f32.mrf.mxu0
        %v2511 = vadd.f32 0.0, %v2510
        %2512 = vmatmul.f32.gmra.mxu0 %v2380
        %v2513 = vpop.f32.mrf.mxu0
        %v2514 = vadd.f32 0.0, %v2513
        %2515 = vmatmul.f32.gmra.mxu0 %v2384
        %v2516 = vpop.f32.mrf.mxu0
        %v2517 = vadd.f32 0.0, %v2516
        %2518 = vmatmul.f32.gmra.mxu0 %v2388
        %v2519 = vpop.f32.mrf.mxu0
        %v2520 = vadd.f32 0.0, %v2519
        %2521 = vmatmul.f32.gmra.mxu0 %v2392
        %v2522 = vpop.f32.mrf.mxu0
        %v2523 = vadd.f32 0.0, %v2522
        %2524 = vmatmul.f32.gmra.mxu0 %v2396
        %v2525 = vpop.f32.mrf.mxu0
        %v2526 = vadd.f32 0.0, %v2525
        %2527 = vmatmul.f32.gmra.mxu0 %v2400
        %v2528 = vpop.f32.mrf.mxu0
        %v2529 = vadd.f32 0.0, %v2528
        %2530 = vmatmul.f32.gmra.mxu0 %v2404
        %v2531 = vpop.f32.mrf.mxu0
        %v2532 = vadd.f32 0.0, %v2531
        %2533 = vmatmul.f32.gmra.mxu0 %v2408
        %v2534 = vpop.f32.mrf.mxu0
        %v2535 = vadd.f32 0.0, %v2534
        %2536 = vmatmul.f32.gmra.mxu0 %v2412
        %v2537 = vpop.f32.mrf.mxu0
        %v2538 = vadd.f32 0.0, %v2537
        %2539 = vmatmul.f32.gmra.mxu0 %v2416
        %v2540 = vpop.f32.mrf.mxu0
        %v2541 = vadd.f32 0.0, %v2540
        %2542 = vmatmul.f32.gmra.mxu0 %v2420
        %v2543 = vpop.f32.mrf.mxu0
        %v2544 = vadd.f32 0.0, %v2543
        %2545 = vmatmul.f32.gmra.mxu0 %v2424
        %v2546 = vpop.f32.mrf.mxu0
        %v2547 = vadd.f32 0.0, %v2546
        %2548 = vdwg.mxu0
        %2549 = vmatpush.xpose.msra.mxu0 %v2335
        %2550 = vmatpush.xpose.msra.mxu0 %v2333
        %2551 = vmatpush.xpose.msra.mxu0 %v2331
        %2552 = vmatpush.xpose.msra.mxu0 %v2329
        %2553 = vmatpush.xpose.msra.mxu0 %v2327
        %2554 = vmatpush.xpose.msra.mxu0 %v2325
        %2555 = vmatpush.xpose.msra.mxu0 %v2323
        %2556 = vmatpush.xpose.msra.mxu0 %v2321
        %2557 = vmatpush.xpose.msra.mxu0 %v2319
        %2558 = vmatpush.xpose.msra.mxu0 %v2317
        %2559 = vmatpush.xpose.msra.mxu0 %v2315
        %2560 = vmatpush.xpose.msra.mxu0 %v2313
        %2561 = vmatpush.xpose.msra.mxu0 %v2311
        %2562 = vmatpush.xpose.msra.mxu0 %v2309
        %2563 = vmatpush.xpose.msra.mxu0 %v2307
        %2564 = vmatpush.xpose.msra.mxu0 %v2305
        %2565 = vmatmul.f32.gmra.mxu0 %v2346
        %v2566 = vpop.f32.mrf.mxu0
        %v2567 = vadd.f32 %v2487, %v2566
        %2568 = vmatmul.f32.gmra.mxu0 %v2350
        %v2569 = vpop.f32.mrf.mxu0
        %v2570 = vadd.f32 %v2490, %v2569
        %2571 = vmatmul.f32.gmra.mxu0 %v2354
        %v2572 = vpop.f32.mrf.mxu0
        %v2573 = vadd.f32 %v2493, %v2572
        %2574 = vmatmul.f32.gmra.mxu0 %v2358
        %v2575 = vpop.f32.mrf.mxu0
        %v2576 = vadd.f32 %v2496, %v2575
        %2577 = vmatmul.f32.gmra.mxu0 %v2362
        %v2578 = vpop.f32.mrf.mxu0
        %v2579 = vadd.f32 %v2499, %v2578
        %2580 = vmatmul.f32.gmra.mxu0 %v2366
        %v2581 = vpop.f32.mrf.mxu0
        %v2582 = vadd.f32 %v2502, %v2581
        %2583 = vmatmul.f32.gmra.mxu0 %v2370
        %v2584 = vpop.f32.mrf.mxu0
        %v2585 = vadd.f32 %v2505, %v2584
        %2586 = vmatmul.f32.gmra.mxu0 %v2374
        %v2587 = vpop.f32.mrf.mxu0
        %v2588 = vadd.f32 %v2508, %v2587
        %2589 = vmatmul.f32.gmra.mxu0 %v2378
        %v2590 = vpop.f32.mrf.mxu0
        %v2591 = vadd.f32 %v2511, %v2590
        %2592 = vmatmul.f32.gmra.mxu0 %v2382
        %v2593 = vpop.f32.mrf.mxu0
        %v2594 = vadd.f32 %v2514, %v2593
        %2595 = vmatmul.f32.gmra.mxu0 %v2386
        %v2596 = vpop.f32.mrf.mxu0
        %v2597 = vadd.f32 %v2517, %v2596
        %2598 = vmatmul.f32.gmra.mxu0 %v2390
        %v2599 = vpop.f32.mrf.mxu0
        %v2600 = vadd.f32 %v2520, %v2599
        %2601 = vmatmul.f32.gmra.mxu0 %v2394
        %v2602 = vpop.f32.mrf.mxu0
        %v2603 = vadd.f32 %v2523, %v2602
        %2604 = vmatmul.f32.gmra.mxu0 %v2398
        %v2605 = vpop.f32.mrf.mxu0
        %v2606 = vadd.f32 %v2526, %v2605
        %2607 = vmatmul.f32.gmra.mxu0 %v2402
        %v2608 = vpop.f32.mrf.mxu0
        %v2609 = vadd.f32 %v2529, %v2608
        %2610 = vmatmul.f32.gmra.mxu0 %v2406
        %v2611 = vpop.f32.mrf.mxu0
        %v2612 = vadd.f32 %v2532, %v2611
        %2613 = vmatmul.f32.gmra.mxu0 %v2410
        %v2614 = vpop.f32.mrf.mxu0
        %v2615 = vadd.f32 %v2535, %v2614
        %2616 = vmatmul.f32.gmra.mxu0 %v2414
        %v2617 = vpop.f32.mrf.mxu0
        %v2618 = vadd.f32 %v2538, %v2617
        %2619 = vmatmul.f32.gmra.mxu0 %v2418
        %v2620 = vpop.f32.mrf.mxu0
        %v2621 = vadd.f32 %v2541, %v2620
        %2622 = vmatmul.f32.gmra.mxu0 %v2422
        %v2623 = vpop.f32.mrf.mxu0
        %v2624 = vadd.f32 %v2544, %v2623
        %2625 = vmatmul.f32.gmra.mxu0 %v2426
        %v2626 = vpop.f32.mrf.mxu0
        %v2627 = vadd.f32 %v2547, %v2626
        %2628 = vdwg.mxu0
        %v2629 = vadd.f32 %v2278, %v2567
        %v2630 = vadd.f32 %v2279, %v2570
        %v2631 = vadd.f32 %v2280, %v2573
        %v2632 = vadd.f32 %v2281, %v2576
        %v2633 = vadd.f32 %v2282, %v2579
        %v2634 = vadd.f32 %v2283, %v2582
        %v2635 = vadd.f32 %v2284, %v2585
        %v2636 = vadd.f32 %v2285, %v2588
        %v2637 = vadd.f32 %v2286, %v2591
        %v2638 = vadd.f32 %v2287, %v2594
        %v2639 = vadd.f32 %v2288, %v2597
        %v2640 = vadd.f32 %v2289, %v2600
        %v2641 = vadd.f32 %v2290, %v2603
        %v2642 = vadd.f32 %v2291, %v2606
        %v2643 = vadd.f32 %v2292, %v2609
        %v2644 = vadd.f32 %v2293, %v2612
        %v2645 = vadd.f32 %v2294, %v2615
        %v2646 = vadd.f32 %v2295, %v2618
        %v2647 = vadd.f32 %v2296, %v2621
        %v2648 = vadd.f32 %v2297, %v2624
        %v2649 = vadd.f32 %v2298, %v2627
        %v2650 = vld [vmem:[#allocation2 + $0x160] sm:$0xff]
        %v2651 = vld [vmem:[#allocation2 + $0x168] sm:$0xff]
        %s2652 = scalar_lea.vmem %s3, 1280
        %v2653 = vld [vmem:[%s2652] sm:$0xff]
        %v2654 = vld [vmem:[%s2652 + $0x8] sm:$0xff]
        %v2655 = vld [vmem:[%s2652 + $0x10] sm:$0xff]
        %v2656 = vld [vmem:[%s2652 + $0x18] sm:$0xff]
        %v2657 = vld [vmem:[%s2652 + $0x20] sm:$0xff]
        %v2658 = vld [vmem:[%s2652 + $0x28] sm:$0xff]
        %v2659 = vld [vmem:[%s2652 + $0x30] sm:$0xff]
        %v2660 = vld [vmem:[%s2652 + $0x38] sm:$0xff]
        %v2661 = vld [vmem:[%s2652 + $0x40] sm:$0xff]
        %v2662 = vld [vmem:[%s2652 + $0x48] sm:$0xff]
        %v2663 = vld [vmem:[%s2652 + $0x50] sm:$0xff]
        %v2664 = vld [vmem:[%s2652 + $0x58] sm:$0xff]
        %v2665 = vld [vmem:[%s2652 + $0x60] sm:$0xff]
        %v2666 = vld [vmem:[%s2652 + $0x68] sm:$0xff]
        %v2667 = vld [vmem:[%s2652 + $0x70] sm:$0xff]
        %v2668 = vld [vmem:[%s2652 + $0x78] sm:$0xff]
        %v2669 = vld [vmem:[%s2652 + $0x80] sm:$0xff]
        %v2670 = vld [vmem:[%s2652 + $0x88] sm:$0xff]
        %v2671 = vld [vmem:[%s2652 + $0x90] sm:$0xff]
        %v2672 = vld [vmem:[%s2652 + $0x98] sm:$0xff]
        %v2673 = vld [vmem:[%s2652 + $0xa0] sm:$0xff]
        %v2674 = vld [vmem:[%s2652 + $0xa8] sm:$0xff]
        %v2675 = vld [vmem:[%s2652 + $0xb0] sm:$0xff]
        %v2676 = vld [vmem:[%s2652 + $0xb8] sm:$0xff]
        %v2677 = vld [vmem:[%s2652 + $0xc0] sm:$0xff]
        %v2678 = vld [vmem:[%s2652 + $0xc8] sm:$0xff]
        %v2679 = vld [vmem:[%s2652 + $0xd0] sm:$0xff]
        %v2680 = vld [vmem:[%s2652 + $0xd8] sm:$0xff]
        %v2681 = vld [vmem:[%s2652 + $0xe0] sm:$0xff]
        %v2682 = vld [vmem:[%s2652 + $0xe8] sm:$0xff]
        %v2683 = vld [vmem:[%s2652 + $0xf0] sm:$0xff]
        %v2684 = vld [vmem:[%s2652 + $0xf8] sm:$0xff]
        %2685 = vmatpush.xpose.msra.mxu0 %v2683
        %2686 = vmatpush.xpose.msra.mxu0 %v2681
        %2687 = vmatpush.xpose.msra.mxu0 %v2679
        %2688 = vmatpush.xpose.msra.mxu0 %v2677
        %2689 = vmatpush.xpose.msra.mxu0 %v2675
        %2690 = vmatpush.xpose.msra.mxu0 %v2673
        %2691 = vmatpush.xpose.msra.mxu0 %v2671
        %2692 = vmatpush.xpose.msra.mxu0 %v2669
        %2693 = vmatpush.xpose.msra.mxu0 %v2667
        %2694 = vmatpush.xpose.msra.mxu0 %v2665
        %2695 = vmatpush.xpose.msra.mxu0 %v2663
        %2696 = vmatpush.xpose.msra.mxu0 %v2661
        %2697 = vmatpush.xpose.msra.mxu0 %v2659
        %2698 = vmatpush.xpose.msra.mxu0 %v2657
        %2699 = vmatpush.xpose.msra.mxu0 %v2655
        %2700 = vmatpush.xpose.msra.mxu0 %v2653
        %2701 = vmatmul.f32.gmra.mxu0 %v1870
        %v2702 = vpop.f32.mrf.mxu0
        %v2703 = vadd.f32 0.0, %v2702
        %2704 = vmatmul.f32.gmra.mxu0 %v1872
        %v2705 = vpop.f32.mrf.mxu0
        %v2706 = vadd.f32 0.0, %v2705
        %2707 = vmatmul.f32.gmra.mxu0 %v1874
        %v2708 = vpop.f32.mrf.mxu0
        %v2709 = vadd.f32 0.0, %v2708
        %2710 = vmatmul.f32.gmra.mxu0 %v1876
        %v2711 = vpop.f32.mrf.mxu0
        %v2712 = vadd.f32 0.0, %v2711
        %2713 = vmatmul.f32.gmra.mxu0 %v1878
        %v2714 = vpop.f32.mrf.mxu0
        %v2715 = vadd.f32 0.0, %v2714
        %2716 = vmatmul.f32.gmra.mxu0 %v1880
        %v2717 = vpop.f32.mrf.mxu0
        %v2718 = vadd.f32 0.0, %v2717
        %2719 = vmatmul.f32.gmra.mxu0 %v1882
        %v2720 = vpop.f32.mrf.mxu0
        %v2721 = vadd.f32 0.0, %v2720
        %2722 = vmatmul.f32.gmra.mxu0 %v1884
        %v2723 = vpop.f32.mrf.mxu0
        %v2724 = vadd.f32 0.0, %v2723
        %2725 = vmatmul.f32.gmra.mxu0 %v1886
        %v2726 = vpop.f32.mrf.mxu0
        %v2727 = vadd.f32 0.0, %v2726
        %2728 = vmatmul.f32.gmra.mxu0 %v1888
        %v2729 = vpop.f32.mrf.mxu0
        %v2730 = vadd.f32 0.0, %v2729
        %2731 = vmatmul.f32.gmra.mxu0 %v1890
        %v2732 = vpop.f32.mrf.mxu0
        %v2733 = vadd.f32 0.0, %v2732
        %2734 = vmatmul.f32.gmra.mxu0 %v1892
        %v2735 = vpop.f32.mrf.mxu0
        %v2736 = vadd.f32 0.0, %v2735
        %2737 = vmatmul.f32.gmra.mxu0 %v1894
        %v2738 = vpop.f32.mrf.mxu0
        %v2739 = vadd.f32 0.0, %v2738
        %2740 = vmatmul.f32.gmra.mxu0 %v1896
        %v2741 = vpop.f32.mrf.mxu0
        %v2742 = vadd.f32 0.0, %v2741
        %2743 = vmatmul.f32.gmra.mxu0 %v1898
        %v2744 = vpop.f32.mrf.mxu0
        %v2745 = vadd.f32 0.0, %v2744
        %2746 = vmatmul.f32.gmra.mxu0 %v1900
        %v2747 = vpop.f32.mrf.mxu0
        %v2748 = vadd.f32 0.0, %v2747
        %2749 = vmatmul.f32.gmra.mxu0 %v1902
        %v2750 = vpop.f32.mrf.mxu0
        %v2751 = vadd.f32 0.0, %v2750
        %2752 = vmatmul.f32.gmra.mxu0 %v1904
        %v2753 = vpop.f32.mrf.mxu0
        %v2754 = vadd.f32 0.0, %v2753
        %2755 = vmatmul.f32.gmra.mxu0 %v1906
        %v2756 = vpop.f32.mrf.mxu0
        %v2757 = vadd.f32 0.0, %v2756
        %2758 = vmatmul.f32.gmra.mxu0 %v1908
        %v2759 = vpop.f32.mrf.mxu0
        %v2760 = vadd.f32 0.0, %v2759
        %2761 = vmatmul.f32.gmra.mxu0 %v2650
        %v2762 = vpop.f32.mrf.mxu0
        %v2763 = vadd.f32 0.0, %v2762
        %2764 = vdwg.mxu0
        %2765 = vmatpush.xpose.msra.mxu0 %v2684
        %2766 = vmatpush.xpose.msra.mxu0 %v2682
        %2767 = vmatpush.xpose.msra.mxu0 %v2680
        %2768 = vmatpush.xpose.msra.mxu0 %v2678
        %2769 = vmatpush.xpose.msra.mxu0 %v2676
        %2770 = vmatpush.xpose.msra.mxu0 %v2674
        %2771 = vmatpush.xpose.msra.mxu0 %v2672
        %2772 = vmatpush.xpose.msra.mxu0 %v2670
        %2773 = vmatpush.xpose.msra.mxu0 %v2668
        %2774 = vmatpush.xpose.msra.mxu0 %v2666
        %2775 = vmatpush.xpose.msra.mxu0 %v2664
        %2776 = vmatpush.xpose.msra.mxu0 %v2662
        %2777 = vmatpush.xpose.msra.mxu0 %v2660
        %2778 = vmatpush.xpose.msra.mxu0 %v2658
        %2779 = vmatpush.xpose.msra.mxu0 %v2656
        %2780 = vmatpush.xpose.msra.mxu0 %v2654
        %2781 = vmatmul.f32.gmra.mxu0 %v1871
        %v2782 = vpop.f32.mrf.mxu0
        %v2783 = vadd.f32 %v2703, %v2782
        %2784 = vmatmul.f32.gmra.mxu0 %v1873
        %v2785 = vpop.f32.mrf.mxu0
        %v2786 = vadd.f32 %v2706, %v2785
        %2787 = vmatmul.f32.gmra.mxu0 %v1875
        %v2788 = vpop.f32.mrf.mxu0
        %v2789 = vadd.f32 %v2709, %v2788
        %2790 = vmatmul.f32.gmra.mxu0 %v1877
        %v2791 = vpop.f32.mrf.mxu0
        %v2792 = vadd.f32 %v2712, %v2791
        %2793 = vmatmul.f32.gmra.mxu0 %v1879
        %v2794 = vpop.f32.mrf.mxu0
        %v2795 = vadd.f32 %v2715, %v2794
        %2796 = vmatmul.f32.gmra.mxu0 %v1881
        %v2797 = vpop.f32.mrf.mxu0
        %v2798 = vadd.f32 %v2718, %v2797
        %2799 = vmatmul.f32.gmra.mxu0 %v1883
        %v2800 = vpop.f32.mrf.mxu0
        %v2801 = vadd.f32 %v2721, %v2800
        %2802 = vmatmul.f32.gmra.mxu0 %v1885
        %v2803 = vpop.f32.mrf.mxu0
        %v2804 = vadd.f32 %v2724, %v2803
        %2805 = vmatmul.f32.gmra.mxu0 %v1887
        %v2806 = vpop.f32.mrf.mxu0
        %v2807 = vadd.f32 %v2727, %v2806
        %2808 = vmatmul.f32.gmra.mxu0 %v1889
        %v2809 = vpop.f32.mrf.mxu0
        %v2810 = vadd.f32 %v2730, %v2809
        %2811 = vmatmul.f32.gmra.mxu0 %v1891
        %v2812 = vpop.f32.mrf.mxu0
        %v2813 = vadd.f32 %v2733, %v2812
        %2814 = vmatmul.f32.gmra.mxu0 %v1893
        %v2815 = vpop.f32.mrf.mxu0
        %v2816 = vadd.f32 %v2736, %v2815
        %2817 = vmatmul.f32.gmra.mxu0 %v1895
        %v2818 = vpop.f32.mrf.mxu0
        %v2819 = vadd.f32 %v2739, %v2818
        %2820 = vmatmul.f32.gmra.mxu0 %v1897
        %v2821 = vpop.f32.mrf.mxu0
        %v2822 = vadd.f32 %v2742, %v2821
        %2823 = vmatmul.f32.gmra.mxu0 %v1899
        %v2824 = vpop.f32.mrf.mxu0
        %v2825 = vadd.f32 %v2745, %v2824
        %2826 = vmatmul.f32.gmra.mxu0 %v1901
        %v2827 = vpop.f32.mrf.mxu0
        %v2828 = vadd.f32 %v2748, %v2827
        %2829 = vmatmul.f32.gmra.mxu0 %v1903
        %v2830 = vpop.f32.mrf.mxu0
        %v2831 = vadd.f32 %v2751, %v2830
        %2832 = vmatmul.f32.gmra.mxu0 %v1905
        %v2833 = vpop.f32.mrf.mxu0
        %v2834 = vadd.f32 %v2754, %v2833
        %2835 = vmatmul.f32.gmra.mxu0 %v1907
        %v2836 = vpop.f32.mrf.mxu0
        %v2837 = vadd.f32 %v2757, %v2836
        %2838 = vmatmul.f32.gmra.mxu0 %v1909
        %v2839 = vpop.f32.mrf.mxu0
        %v2840 = vadd.f32 %v2760, %v2839
        %2841 = vmatmul.f32.gmra.mxu0 %v2651
        %v2842 = vpop.f32.mrf.mxu0
        %v2843 = vadd.f32 %v2763, %v2842
        %2844 = vdwg.mxu0
        %v2845 = vadd.f32 %v2629, %v2783
        %v2846 = vadd.f32 %v2630, %v2786
        %v2847 = vadd.f32 %v2631, %v2789
        %v2848 = vadd.f32 %v2632, %v2792
        %v2849 = vadd.f32 %v2633, %v2795
        %v2850 = vadd.f32 %v2634, %v2798
        %v2851 = vadd.f32 %v2635, %v2801
        %v2852 = vadd.f32 %v2636, %v2804
        %v2853 = vadd.f32 %v2637, %v2807
        %v2854 = vadd.f32 %v2638, %v2810
        %v2855 = vadd.f32 %v2639, %v2813
        %v2856 = vadd.f32 %v2640, %v2816
        %v2857 = vadd.f32 %v2641, %v2819
        %v2858 = vadd.f32 %v2642, %v2822
        %v2859 = vadd.f32 %v2643, %v2825
        %v2860 = vadd.f32 %v2644, %v2828
        %v2861 = vadd.f32 %v2645, %v2831
        %v2862 = vadd.f32 %v2646, %v2834
        %v2863 = vadd.f32 %v2647, %v2837
        %v2864 = vadd.f32 %v2648, %v2840
        %v2865 = vadd.f32 %v2649, %v2843
        %v2866 = vld [vmem:[#allocation2 + $0x30] sm:$0xf0]
        %v2867 = vld [vmem:[#allocation2 + $0x38] sm:$0xf0]
        %v2868 = vld [vmem:[#allocation2 + $0x40] sm:$0xff]
        %v2869 = vld [vmem:[#allocation2 + $0x48] sm:$0xff]
        %v2870 = vld [vmem:[#allocation2 + $0x50] sm:$0xff]
        %v2871 = vld [vmem:[#allocation2 + $0x58] sm:$0xff]
        %v2872 = vld [vmem:[#allocation2 + $0x60] sm:$0xff]
        %v2873 = vld [vmem:[#allocation2 + $0x68] sm:$0xff]
        %v2874 = vld [vmem:[#allocation2 + $0x70] sm:$0xff]
        %v2875 = vld [vmem:[#allocation2 + $0x78] sm:$0xff]
        %v2876 = vld [vmem:[#allocation2 + $0x80] sm:$0xff]
        %v2877 = vld [vmem:[#allocation2 + $0x88] sm:$0xff]
        %v2878 = vld [vmem:[#allocation2 + $0x90] sm:$0xff]
        %v2879 = vld [vmem:[#allocation2 + $0x98] sm:$0xff]
        %v2880 = vld [vmem:[#allocation2 + $0xa0] sm:$0xff]
        %v2881 = vld [vmem:[#allocation2 + $0xa8] sm:$0xff]
        %v2882 = vld [vmem:[#allocation2 + $0xb0] sm:$0xff]
        %v2883 = vld [vmem:[#allocation2 + $0xb8] sm:$0xff]
        %v2884 = vld [vmem:[#allocation2 + $0xc0] sm:$0xff]
        %v2885 = vld [vmem:[#allocation2 + $0xc8] sm:$0xff]
        %v2886 = vld [vmem:[#allocation2 + $0xd0] sm:$0xff]
        %v2887 = vld [vmem:[#allocation2 + $0xd8] sm:$0xff]
        %v2888 = vld [vmem:[#allocation2 + $0xe0] sm:$0xff]
        %v2889 = vld [vmem:[#allocation2 + $0xe8] sm:$0xff]
        %v2890 = vld [vmem:[#allocation2 + $0xf0] sm:$0xff]
        %v2891 = vld [vmem:[#allocation2 + $0xf8] sm:$0xff]
        %v2892 = vld [vmem:[#allocation2 + $0x100] sm:$0xff]
        %v2893 = vld [vmem:[#allocation2 + $0x108] sm:$0xff]
        %v2894 = vld [vmem:[#allocation2 + $0x110] sm:$0xff]
        %v2895 = vld [vmem:[#allocation2 + $0x118] sm:$0xff]
        %v2896 = vld [vmem:[#allocation2 + $0x120] sm:$0xff]
        %v2897 = vld [vmem:[#allocation2 + $0x128] sm:$0xff]
        %v2898 = vld [vmem:[#allocation2 + $0x130] sm:$0xff]
        %v2899 = vld [vmem:[#allocation2 + $0x138] sm:$0xff]
        %v2900 = vld [vmem:[#allocation2 + $0x140] sm:$0xff]
        %v2901 = vld [vmem:[#allocation2 + $0x148] sm:$0xff]
        %v2902 = vld [vmem:[#allocation2 + $0x150] sm:$0xff]
        %v2903 = vld [vmem:[#allocation2 + $0x158] sm:$0xff]
        %v2904 = vld [vmem:[#allocation2 + $0x160] sm:$0xff]
        %v2905 = vld [vmem:[#allocation2 + $0x168] sm:$0xff]
        %v2906 = vld [vmem:[#allocation2 + $0x170] sm:$0xff]
        %v2907 = vld [vmem:[#allocation2 + $0x178] sm:$0xff]
        %v2908 = vld [vmem:[#allocation2 + $0x180] sm:$0xf]
        %v2909 = vld [vmem:[#allocation2 + $0x188] sm:$0xf]
        %s2910 = scalar_lea.vmem %s3, 1536
        %v2911 = vld [vmem:[%s2910] sm:$0xff]
        %v2912 = vld [vmem:[%s2910 + $0x8] sm:$0xff]
        %v2913 = vld [vmem:[%s2910 + $0x10] sm:$0xff]
        %v2914 = vld [vmem:[%s2910 + $0x18] sm:$0xff]
        %v2915 = vld [vmem:[%s2910 + $0x20] sm:$0xff]
        %v2916 = vld [vmem:[%s2910 + $0x28] sm:$0xff]
        %v2917 = vld [vmem:[%s2910 + $0x30] sm:$0xff]
        %v2918 = vld [vmem:[%s2910 + $0x38] sm:$0xff]
        %v2919 = vld [vmem:[%s2910 + $0x40] sm:$0xff]
        %v2920 = vld [vmem:[%s2910 + $0x48] sm:$0xff]
        %v2921 = vld [vmem:[%s2910 + $0x50] sm:$0xff]
        %v2922 = vld [vmem:[%s2910 + $0x58] sm:$0xff]
        %v2923 = vld [vmem:[%s2910 + $0x60] sm:$0xff]
        %v2924 = vld [vmem:[%s2910 + $0x68] sm:$0xff]
        %v2925 = vld [vmem:[%s2910 + $0x70] sm:$0xff]
        %v2926 = vld [vmem:[%s2910 + $0x78] sm:$0xff]
        %v2927 = vld [vmem:[%s2910 + $0x80] sm:$0xff]
        %v2928 = vld [vmem:[%s2910 + $0x88] sm:$0xff]
        %v2929 = vld [vmem:[%s2910 + $0x90] sm:$0xff]
        %v2930 = vld [vmem:[%s2910 + $0x98] sm:$0xff]
        %v2931 = vld [vmem:[%s2910 + $0xa0] sm:$0xff]
        %v2932 = vld [vmem:[%s2910 + $0xa8] sm:$0xff]
        %v2933 = vld [vmem:[%s2910 + $0xb0] sm:$0xff]
        %v2934 = vld [vmem:[%s2910 + $0xb8] sm:$0xff]
        %v2935 = vld [vmem:[%s2910 + $0xc0] sm:$0xff]
        %v2936 = vld [vmem:[%s2910 + $0xc8] sm:$0xff]
        %v2937 = vld [vmem:[%s2910 + $0xd0] sm:$0xff]
        %v2938 = vld [vmem:[%s2910 + $0xd8] sm:$0xff]
        %v2939 = vld [vmem:[%s2910 + $0xe0] sm:$0xff]
        %v2940 = vld [vmem:[%s2910 + $0xe8] sm:$0xff]
        %v2941 = vld [vmem:[%s2910 + $0xf0] sm:$0xff]
        %v2942 = vld [vmem:[%s2910 + $0xf8] sm:$0xff]
        %vm2987 = vcmask 1043456
        %v2988 = vrot.slane %v2866, 4
        %v2989 = vrot.slane %v2868, 4
        %v2990 = vsel %vm2987, %v2988, %v2989
        %v2991 = vrot.slane %v2867, 4
        %v2992 = vrot.slane %v2869, 4
        %v2993 = vsel %vm2987, %v2991, %v2992
        %v2994 = vrot.slane %v2870, 4
        %v2995 = vsel %vm2987, %v2989, %v2994
        %v2996 = vrot.slane %v2871, 4
        %v2997 = vsel %vm2987, %v2992, %v2996
        %v2998 = vrot.slane %v2872, 4
        %v2999 = vsel %vm2987, %v2994, %v2998
        %v3000 = vrot.slane %v2873, 4
        %v3001 = vsel %vm2987, %v2996, %v3000
        %v3002 = vrot.slane %v2874, 4
        %v3003 = vsel %vm2987, %v2998, %v3002
        %v3004 = vrot.slane %v2875, 4
        %v3005 = vsel %vm2987, %v3000, %v3004
        %v3006 = vrot.slane %v2876, 4
        %v3007 = vsel %vm2987, %v3002, %v3006
        %v3008 = vrot.slane %v2877, 4
        %v3009 = vsel %vm2987, %v3004, %v3008
        %v3010 = vrot.slane %v2878, 4
        %v3011 = vsel %vm2987, %v3006, %v3010
        %v3012 = vrot.slane %v2879, 4
        %v3013 = vsel %vm2987, %v3008, %v3012
        %v3014 = vrot.slane %v2880, 4
        %v3015 = vsel %vm2987, %v3010, %v3014
        %v3016 = vrot.slane %v2881, 4
        %v3017 = vsel %vm2987, %v3012, %v3016
        %v3018 = vrot.slane %v2882, 4
        %v3019 = vsel %vm2987, %v3014, %v3018
        %v3020 = vrot.slane %v2883, 4
        %v3021 = vsel %vm2987, %v3016, %v3020
        %v3022 = vrot.slane %v2884, 4
        %v3023 = vsel %vm2987, %v3018, %v3022
        %v3024 = vrot.slane %v2885, 4
        %v3025 = vsel %vm2987, %v3020, %v3024
        %v3026 = vrot.slane %v2886, 4
        %v3027 = vsel %vm2987, %v3022, %v3026
        %v3028 = vrot.slane %v2887, 4
        %v3029 = vsel %vm2987, %v3024, %v3028
        %v3030 = vrot.slane %v2888, 4
        %v3031 = vsel %vm2987, %v3026, %v3030
        %v3032 = vrot.slane %v2889, 4
        %v3033 = vsel %vm2987, %v3028, %v3032
        %v3034 = vrot.slane %v2890, 4
        %v3035 = vsel %vm2987, %v3030, %v3034
        %v3036 = vrot.slane %v2891, 4
        %v3037 = vsel %vm2987, %v3032, %v3036
        %v3038 = vrot.slane %v2892, 4
        %v3039 = vsel %vm2987, %v3034, %v3038
        %v3040 = vrot.slane %v2893, 4
        %v3041 = vsel %vm2987, %v3036, %v3040
        %v3042 = vrot.slane %v2894, 4
        %v3043 = vsel %vm2987, %v3038, %v3042
        %v3044 = vrot.slane %v2895, 4
        %v3045 = vsel %vm2987, %v3040, %v3044
        %v3046 = vrot.slane %v2896, 4
        %v3047 = vsel %vm2987, %v3042, %v3046
        %v3048 = vrot.slane %v2897, 4
        %v3049 = vsel %vm2987, %v3044, %v3048
        %v3050 = vrot.slane %v2898, 4
        %v3051 = vsel %vm2987, %v3046, %v3050
        %v3052 = vrot.slane %v2899, 4
        %v3053 = vsel %vm2987, %v3048, %v3052
        %v3054 = vrot.slane %v2900, 4
        %v3055 = vsel %vm2987, %v3050, %v3054
        %v3056 = vrot.slane %v2901, 4
        %v3057 = vsel %vm2987, %v3052, %v3056
        %v3058 = vrot.slane %v2902, 4
        %v3059 = vsel %vm2987, %v3054, %v3058
        %v3060 = vrot.slane %v2903, 4
        %v3061 = vsel %vm2987, %v3056, %v3060
        %v3062 = vrot.slane %v2904, 4
        %v3063 = vsel %vm2987, %v3058, %v3062
        %v3064 = vrot.slane %v2905, 4
        %v3065 = vsel %vm2987, %v3060, %v3064
        %v3066 = vrot.slane %v2906, 4
        %v3067 = vsel %vm2987, %v3062, %v3066
        %v3068 = vrot.slane %v2907, 4
        %v3069 = vsel %vm2987, %v3064, %v3068
        %v3070 = vrot.slane %v2908, 4
        %v3071 = vsel %vm2987, %v3066, %v3070
        %v3072 = vrot.slane %v2909, 4
        %v3073 = vsel %vm2987, %v3068, %v3072
        %3116 = vmatpush.xpose.msra.mxu0 %v2941
        %3117 = vmatpush.xpose.msra.mxu0 %v2939
        %3118 = vmatpush.xpose.msra.mxu0 %v2937
        %3119 = vmatpush.xpose.msra.mxu0 %v2935
        %3120 = vmatpush.xpose.msra.mxu0 %v2933
        %3121 = vmatpush.xpose.msra.mxu0 %v2931
        %3122 = vmatpush.xpose.msra.mxu0 %v2929
        %3123 = vmatpush.xpose.msra.mxu0 %v2927
        %3124 = vmatpush.xpose.msra.mxu0 %v2925
        %3125 = vmatpush.xpose.msra.mxu0 %v2923
        %3126 = vmatpush.xpose.msra.mxu0 %v2921
        %3127 = vmatpush.xpose.msra.mxu0 %v2919
        %3128 = vmatpush.xpose.msra.mxu0 %v2917
        %3129 = vmatpush.xpose.msra.mxu0 %v2915
        %3130 = vmatpush.xpose.msra.mxu0 %v2913
        %3131 = vmatpush.xpose.msra.mxu0 %v2911
        %3132 = vmatmul.f32.gmra.mxu0 %v2990
        %v3133 = vpop.f32.mrf.mxu0
        %v3134 = vadd.f32 0.0, %v3133
        %3135 = vmatmul.f32.gmra.mxu0 %v2995
        %v3136 = vpop.f32.mrf.mxu0
        %v3137 = vadd.f32 0.0, %v3136
        %3138 = vmatmul.f32.gmra.mxu0 %v2999
        %v3139 = vpop.f32.mrf.mxu0
        %v3140 = vadd.f32 0.0, %v3139
        %3141 = vmatmul.f32.gmra.mxu0 %v3003
        %v3142 = vpop.f32.mrf.mxu0
        %v3143 = vadd.f32 0.0, %v3142
        %3144 = vmatmul.f32.gmra.mxu0 %v3007
        %v3145 = vpop.f32.mrf.mxu0
        %v3146 = vadd.f32 0.0, %v3145
        %3147 = vmatmul.f32.gmra.mxu0 %v3011
        %v3148 = vpop.f32.mrf.mxu0
        %v3149 = vadd.f32 0.0, %v3148
        %3150 = vmatmul.f32.gmra.mxu0 %v3015
        %v3151 = vpop.f32.mrf.mxu0
        %v3152 = vadd.f32 0.0, %v3151
        %3153 = vmatmul.f32.gmra.mxu0 %v3019
        %v3154 = vpop.f32.mrf.mxu0
        %v3155 = vadd.f32 0.0, %v3154
        %3156 = vmatmul.f32.gmra.mxu0 %v3023
        %v3157 = vpop.f32.mrf.mxu0
        %v3158 = vadd.f32 0.0, %v3157
        %3159 = vmatmul.f32.gmra.mxu0 %v3027
        %v3160 = vpop.f32.mrf.mxu0
        %v3161 = vadd.f32 0.0, %v3160
        %3162 = vmatmul.f32.gmra.mxu0 %v3031
        %v3163 = vpop.f32.mrf.mxu0
        %v3164 = vadd.f32 0.0, %v3163
        %3165 = vmatmul.f32.gmra.mxu0 %v3035
        %v3166 = vpop.f32.mrf.mxu0
        %v3167 = vadd.f32 0.0, %v3166
        %3168 = vmatmul.f32.gmra.mxu0 %v3039
        %v3169 = vpop.f32.mrf.mxu0
        %v3170 = vadd.f32 0.0, %v3169
        %3171 = vmatmul.f32.gmra.mxu0 %v3043
        %v3172 = vpop.f32.mrf.mxu0
        %v3173 = vadd.f32 0.0, %v3172
        %3174 = vmatmul.f32.gmra.mxu0 %v3047
        %v3175 = vpop.f32.mrf.mxu0
        %v3176 = vadd.f32 0.0, %v3175
        %3177 = vmatmul.f32.gmra.mxu0 %v3051
        %v3178 = vpop.f32.mrf.mxu0
        %v3179 = vadd.f32 0.0, %v3178
        %3180 = vmatmul.f32.gmra.mxu0 %v3055
        %v3181 = vpop.f32.mrf.mxu0
        %v3182 = vadd.f32 0.0, %v3181
        %3183 = vmatmul.f32.gmra.mxu0 %v3059
        %v3184 = vpop.f32.mrf.mxu0
        %v3185 = vadd.f32 0.0, %v3184
        %3186 = vmatmul.f32.gmra.mxu0 %v3063
        %v3187 = vpop.f32.mrf.mxu0
        %v3188 = vadd.f32 0.0, %v3187
        %3189 = vmatmul.f32.gmra.mxu0 %v3067
        %v3190 = vpop.f32.mrf.mxu0
        %v3191 = vadd.f32 0.0, %v3190
        %3192 = vmatmul.f32.gmra.mxu0 %v3071
        %v3193 = vpop.f32.mrf.mxu0
        %v3194 = vadd.f32 0.0, %v3193
        %3195 = vdwg.mxu0
        %3196 = vmatpush.xpose.msra.mxu0 %v2942
        %3197 = vmatpush.xpose.msra.mxu0 %v2940
        %3198 = vmatpush.xpose.msra.mxu0 %v2938
        %3199 = vmatpush.xpose.msra.mxu0 %v2936
        %3200 = vmatpush.xpose.msra.mxu0 %v2934
        %3201 = vmatpush.xpose.msra.mxu0 %v2932
        %3202 = vmatpush.xpose.msra.mxu0 %v2930
        %3203 = vmatpush.xpose.msra.mxu0 %v2928
        %3204 = vmatpush.xpose.msra.mxu0 %v2926
        %3205 = vmatpush.xpose.msra.mxu0 %v2924
        %3206 = vmatpush.xpose.msra.mxu0 %v2922
        %3207 = vmatpush.xpose.msra.mxu0 %v2920
        %3208 = vmatpush.xpose.msra.mxu0 %v2918
        %3209 = vmatpush.xpose.msra.mxu0 %v2916
        %3210 = vmatpush.xpose.msra.mxu0 %v2914
        %3211 = vmatpush.xpose.msra.mxu0 %v2912
        %3212 = vmatmul.f32.gmra.mxu0 %v2993
        %v3213 = vpop.f32.mrf.mxu0
        %v3214 = vadd.f32 %v3134, %v3213
        %3215 = vmatmul.f32.gmra.mxu0 %v2997
        %v3216 = vpop.f32.mrf.mxu0
        %v3217 = vadd.f32 %v3137, %v3216
        %3218 = vmatmul.f32.gmra.mxu0 %v3001
        %v3219 = vpop.f32.mrf.mxu0
        %v3220 = vadd.f32 %v3140, %v3219
        %3221 = vmatmul.f32.gmra.mxu0 %v3005
        %v3222 = vpop.f32.mrf.mxu0
        %v3223 = vadd.f32 %v3143, %v3222
        %3224 = vmatmul.f32.gmra.mxu0 %v3009
        %v3225 = vpop.f32.mrf.mxu0
        %v3226 = vadd.f32 %v3146, %v3225
        %3227 = vmatmul.f32.gmra.mxu0 %v3013
        %v3228 = vpop.f32.mrf.mxu0
        %v3229 = vadd.f32 %v3149, %v3228
        %3230 = vmatmul.f32.gmra.mxu0 %v3017
        %v3231 = vpop.f32.mrf.mxu0
        %v3232 = vadd.f32 %v3152, %v3231
        %3233 = vmatmul.f32.gmra.mxu0 %v3021
        %v3234 = vpop.f32.mrf.mxu0
        %v3235 = vadd.f32 %v3155, %v3234
        %3236 = vmatmul.f32.gmra.mxu0 %v3025
        %v3237 = vpop.f32.mrf.mxu0
        %v3238 = vadd.f32 %v3158, %v3237
        %3239 = vmatmul.f32.gmra.mxu0 %v3029
        %v3240 = vpop.f32.mrf.mxu0
        %v3241 = vadd.f32 %v3161, %v3240
        %3242 = vmatmul.f32.gmra.mxu0 %v3033
        %v3243 = vpop.f32.mrf.mxu0
        %v3244 = vadd.f32 %v3164, %v3243
        %3245 = vmatmul.f32.gmra.mxu0 %v3037
        %v3246 = vpop.f32.mrf.mxu0
        %v3247 = vadd.f32 %v3167, %v3246
        %3248 = vmatmul.f32.gmra.mxu0 %v3041
        %v3249 = vpop.f32.mrf.mxu0
        %v3250 = vadd.f32 %v3170, %v3249
        %3251 = vmatmul.f32.gmra.mxu0 %v3045
        %v3252 = vpop.f32.mrf.mxu0
        %v3253 = vadd.f32 %v3173, %v3252
        %3254 = vmatmul.f32.gmra.mxu0 %v3049
        %v3255 = vpop.f32.mrf.mxu0
        %v3256 = vadd.f32 %v3176, %v3255
        %3257 = vmatmul.f32.gmra.mxu0 %v3053
        %v3258 = vpop.f32.mrf.mxu0
        %v3259 = vadd.f32 %v3179, %v3258
        %3260 = vmatmul.f32.gmra.mxu0 %v3057
        %v3261 = vpop.f32.mrf.mxu0
        %v3262 = vadd.f32 %v3182, %v3261
        %3263 = vmatmul.f32.gmra.mxu0 %v3061
        %v3264 = vpop.f32.mrf.mxu0
        %v3265 = vadd.f32 %v3185, %v3264
        %3266 = vmatmul.f32.gmra.mxu0 %v3065
        %v3267 = vpop.f32.mrf.mxu0
        %v3268 = vadd.f32 %v3188, %v3267
        %3269 = vmatmul.f32.gmra.mxu0 %v3069
        %v3270 = vpop.f32.mrf.mxu0
        %v3271 = vadd.f32 %v3191, %v3270
        %3272 = vmatmul.f32.gmra.mxu0 %v3073
        %v3273 = vpop.f32.mrf.mxu0
        %v3274 = vadd.f32 %v3194, %v3273
        %3275 = vdwg.mxu0
        %v3276 = vadd.f32 %v2845, %v3214
        %v3277 = vadd.f32 %v2846, %v3217
        %v3278 = vadd.f32 %v2847, %v3220
        %v3279 = vadd.f32 %v2848, %v3223
        %v3280 = vadd.f32 %v2849, %v3226
        %v3281 = vadd.f32 %v2850, %v3229
        %v3282 = vadd.f32 %v2851, %v3232
        %v3283 = vadd.f32 %v2852, %v3235
        %v3284 = vadd.f32 %v2853, %v3238
        %v3285 = vadd.f32 %v2854, %v3241
        %v3286 = vadd.f32 %v2855, %v3244
        %v3287 = vadd.f32 %v2856, %v3247
        %v3288 = vadd.f32 %v2857, %v3250
        %v3289 = vadd.f32 %v2858, %v3253
        %v3290 = vadd.f32 %v2859, %v3256
        %v3291 = vadd.f32 %v2860, %v3259
        %v3292 = vadd.f32 %v2861, %v3262
        %v3293 = vadd.f32 %v2862, %v3265
        %v3294 = vadd.f32 %v2863, %v3268
        %v3295 = vadd.f32 %v2864, %v3271
        %v3296 = vadd.f32 %v2865, %v3274
        %v3297 = vld [vmem:[#allocation2 + $0x30] sm:$0xe0]
        %v3298 = vld [vmem:[#allocation2 + $0x38] sm:$0xe0]
        %v3299 = vld [vmem:[#allocation2 + $0x180] sm:$0x1f]
        %v3300 = vld [vmem:[#allocation2 + $0x188] sm:$0x1f]
        %s3301 = scalar_lea.vmem %s3, 1792
        %v3302 = vld [vmem:[%s3301] sm:$0xff]
        %v3303 = vld [vmem:[%s3301 + $0x8] sm:$0xff]
        %v3304 = vld [vmem:[%s3301 + $0x10] sm:$0xff]
        %v3305 = vld [vmem:[%s3301 + $0x18] sm:$0xff]
        %v3306 = vld [vmem:[%s3301 + $0x20] sm:$0xff]
        %v3307 = vld [vmem:[%s3301 + $0x28] sm:$0xff]
        %v3308 = vld [vmem:[%s3301 + $0x30] sm:$0xff]
        %v3309 = vld [vmem:[%s3301 + $0x38] sm:$0xff]
        %v3310 = vld [vmem:[%s3301 + $0x40] sm:$0xff]
        %v3311 = vld [vmem:[%s3301 + $0x48] sm:$0xff]
        %v3312 = vld [vmem:[%s3301 + $0x50] sm:$0xff]
        %v3313 = vld [vmem:[%s3301 + $0x58] sm:$0xff]
        %v3314 = vld [vmem:[%s3301 + $0x60] sm:$0xff]
        %v3315 = vld [vmem:[%s3301 + $0x68] sm:$0xff]
        %v3316 = vld [vmem:[%s3301 + $0x70] sm:$0xff]
        %v3317 = vld [vmem:[%s3301 + $0x78] sm:$0xff]
        %v3318 = vld [vmem:[%s3301 + $0x80] sm:$0xff]
        %v3319 = vld [vmem:[%s3301 + $0x88] sm:$0xff]
        %v3320 = vld [vmem:[%s3301 + $0x90] sm:$0xff]
        %v3321 = vld [vmem:[%s3301 + $0x98] sm:$0xff]
        %v3322 = vld [vmem:[%s3301 + $0xa0] sm:$0xff]
        %v3323 = vld [vmem:[%s3301 + $0xa8] sm:$0xff]
        %v3324 = vld [vmem:[%s3301 + $0xb0] sm:$0xff]
        %v3325 = vld [vmem:[%s3301 + $0xb8] sm:$0xff]
        %v3326 = vld [vmem:[%s3301 + $0xc0] sm:$0xff]
        %v3327 = vld [vmem:[%s3301 + $0xc8] sm:$0xff]
        %v3328 = vld [vmem:[%s3301 + $0xd0] sm:$0xff]
        %v3329 = vld [vmem:[%s3301 + $0xd8] sm:$0xff]
        %v3330 = vld [vmem:[%s3301 + $0xe0] sm:$0xff]
        %v3331 = vld [vmem:[%s3301 + $0xe8] sm:$0xff]
        %v3332 = vld [vmem:[%s3301 + $0xf0] sm:$0xff]
        %v3333 = vld [vmem:[%s3301 + $0xf8] sm:$0xff]
        %vm3338 = vcmask 1042432
        %v3339 = vrot.slane %v3297, 5
        %v3340 = vrot.slane %v2868, 5
        %v3341 = vsel %vm3338, %v3339, %v3340
        %v3342 = vrot.slane %v3298, 5
        %v3343 = vrot.slane %v2869, 5
        %v3344 = vsel %vm3338, %v3342, %v3343
        %v3345 = vrot.slane %v2870, 5
        %v3346 = vsel %vm3338, %v3340, %v3345
        %v3347 = vrot.slane %v2871, 5
        %v3348 = vsel %vm3338, %v3343, %v3347
        %v3349 = vrot.slane %v2872, 5
        %v3350 = vsel %vm3338, %v3345, %v3349
        %v3351 = vrot.slane %v2873, 5
        %v3352 = vsel %vm3338, %v3347, %v3351
        %v3353 = vrot.slane %v2874, 5
        %v3354 = vsel %vm3338, %v3349, %v3353
        %v3355 = vrot.slane %v2875, 5
        %v3356 = vsel %vm3338, %v3351, %v3355
        %v3357 = vrot.slane %v2876, 5
        %v3358 = vsel %vm3338, %v3353, %v3357
        %v3359 = vrot.slane %v2877, 5
        %v3360 = vsel %vm3338, %v3355, %v3359
        %v3361 = vrot.slane %v2878, 5
        %v3362 = vsel %vm3338, %v3357, %v3361
        %v3363 = vrot.slane %v2879, 5
        %v3364 = vsel %vm3338, %v3359, %v3363
        %v3365 = vrot.slane %v2880, 5
        %v3366 = vsel %vm3338, %v3361, %v3365
        %v3367 = vrot.slane %v2881, 5
        %v3368 = vsel %vm3338, %v3363, %v3367
        %v3369 = vrot.slane %v2882, 5
        %v3370 = vsel %vm3338, %v3365, %v3369
        %v3371 = vrot.slane %v2883, 5
        %v3372 = vsel %vm3338, %v3367, %v3371
        %v3373 = vrot.slane %v2884, 5
        %v3374 = vsel %vm3338, %v3369, %v3373
        %v3375 = vrot.slane %v2885, 5
        %v3376 = vsel %vm3338, %v3371, %v3375
        %v3377 = vrot.slane %v2886, 5
        %v3378 = vsel %vm3338, %v3373, %v3377
        %v3379 = vrot.slane %v2887, 5
        %v3380 = vsel %vm3338, %v3375, %v3379
        %v3381 = vrot.slane %v2888, 5
        %v3382 = vsel %vm3338, %v3377, %v3381
        %v3383 = vrot.slane %v2889, 5
        %v3384 = vsel %vm3338, %v3379, %v3383
        %v3385 = vrot.slane %v2890, 5
        %v3386 = vsel %vm3338, %v3381, %v3385
        %v3387 = vrot.slane %v2891, 5
        %v3388 = vsel %vm3338, %v3383, %v3387
        %v3389 = vrot.slane %v2892, 5
        %v3390 = vsel %vm3338, %v3385, %v3389
        %v3391 = vrot.slane %v2893, 5
        %v3392 = vsel %vm3338, %v3387, %v3391
        %v3393 = vrot.slane %v2894, 5
        %v3394 = vsel %vm3338, %v3389, %v3393
        %v3395 = vrot.slane %v2895, 5
        %v3396 = vsel %vm3338, %v3391, %v3395
        %v3397 = vrot.slane %v2896, 5
        %v3398 = vsel %vm3338, %v3393, %v3397
        %v3399 = vrot.slane %v2897, 5
        %v3400 = vsel %vm3338, %v3395, %v3399
        %v3401 = vrot.slane %v2898, 5
        %v3402 = vsel %vm3338, %v3397, %v3401
        %v3403 = vrot.slane %v2899, 5
        %v3404 = vsel %vm3338, %v3399, %v3403
        %v3405 = vrot.slane %v2900, 5
        %v3406 = vsel %vm3338, %v3401, %v3405
        %v3407 = vrot.slane %v2901, 5
        %v3408 = vsel %vm3338, %v3403, %v3407
        %v3409 = vrot.slane %v2902, 5
        %v3410 = vsel %vm3338, %v3405, %v3409
        %v3411 = vrot.slane %v2903, 5
        %v3412 = vsel %vm3338, %v3407, %v3411
        %v3413 = vrot.slane %v2904, 5
        %v3414 = vsel %vm3338, %v3409, %v3413
        %v3415 = vrot.slane %v2905, 5
        %v3416 = vsel %vm3338, %v3411, %v3415
        %v3417 = vrot.slane %v2906, 5
        %v3418 = vsel %vm3338, %v3413, %v3417
        %v3419 = vrot.slane %v2907, 5
        %v3420 = vsel %vm3338, %v3415, %v3419
        %v3421 = vrot.slane %v3299, 5
        %v3422 = vsel %vm3338, %v3417, %v3421
        %v3423 = vrot.slane %v3300, 5
        %v3424 = vsel %vm3338, %v3419, %v3423
        %3467 = vmatpush.xpose.msra.mxu0 %v3332
        %3468 = vmatpush.xpose.msra.mxu0 %v3330
        %3469 = vmatpush.xpose.msra.mxu0 %v3328
        %3470 = vmatpush.xpose.msra.mxu0 %v3326
        %3471 = vmatpush.xpose.msra.mxu0 %v3324
        %3472 = vmatpush.xpose.msra.mxu0 %v3322
        %3473 = vmatpush.xpose.msra.mxu0 %v3320
        %3474 = vmatpush.xpose.msra.mxu0 %v3318
        %3475 = vmatpush.xpose.msra.mxu0 %v3316
        %3476 = vmatpush.xpose.msra.mxu0 %v3314
        %3477 = vmatpush.xpose.msra.mxu0 %v3312
        %3478 = vmatpush.xpose.msra.mxu0 %v3310
        %3479 = vmatpush.xpose.msra.mxu0 %v3308
        %3480 = vmatpush.xpose.msra.mxu0 %v3306
        %3481 = vmatpush.xpose.msra.mxu0 %v3304
        %3482 = vmatpush.xpose.msra.mxu0 %v3302
        %3483 = vmatmul.f32.gmra.mxu0 %v3341
        %v3484 = vpop.f32.mrf.mxu0
        %v3485 = vadd.f32 0.0, %v3484
        %3486 = vmatmul.f32.gmra.mxu0 %v3346
        %v3487 = vpop.f32.mrf.mxu0
        %v3488 = vadd.f32 0.0, %v3487
        %3489 = vmatmul.f32.gmra.mxu0 %v3350
        %v3490 = vpop.f32.mrf.mxu0
        %v3491 = vadd.f32 0.0, %v3490
        %3492 = vmatmul.f32.gmra.mxu0 %v3354
        %v3493 = vpop.f32.mrf.mxu0
        %v3494 = vadd.f32 0.0, %v3493
        %3495 = vmatmul.f32.gmra.mxu0 %v3358
        %v3496 = vpop.f32.mrf.mxu0
        %v3497 = vadd.f32 0.0, %v3496
        %3498 = vmatmul.f32.gmra.mxu0 %v3362
        %v3499 = vpop.f32.mrf.mxu0
        %v3500 = vadd.f32 0.0, %v3499
        %3501 = vmatmul.f32.gmra.mxu0 %v3366
        %v3502 = vpop.f32.mrf.mxu0
        %v3503 = vadd.f32 0.0, %v3502
        %3504 = vmatmul.f32.gmra.mxu0 %v3370
        %v3505 = vpop.f32.mrf.mxu0
        %v3506 = vadd.f32 0.0, %v3505
        %3507 = vmatmul.f32.gmra.mxu0 %v3374
        %v3508 = vpop.f32.mrf.mxu0
        %v3509 = vadd.f32 0.0, %v3508
        %3510 = vmatmul.f32.gmra.mxu0 %v3378
        %v3511 = vpop.f32.mrf.mxu0
        %v3512 = vadd.f32 0.0, %v3511
        %3513 = vmatmul.f32.gmra.mxu0 %v3382
        %v3514 = vpop.f32.mrf.mxu0
        %v3515 = vadd.f32 0.0, %v3514
        %3516 = vmatmul.f32.gmra.mxu0 %v3386
        %v3517 = vpop.f32.mrf.mxu0
        %v3518 = vadd.f32 0.0, %v3517
        %3519 = vmatmul.f32.gmra.mxu0 %v3390
        %v3520 = vpop.f32.mrf.mxu0
        %v3521 = vadd.f32 0.0, %v3520
        %3522 = vmatmul.f32.gmra.mxu0 %v3394
        %v3523 = vpop.f32.mrf.mxu0
        %v3524 = vadd.f32 0.0, %v3523
        %3525 = vmatmul.f32.gmra.mxu0 %v3398
        %v3526 = vpop.f32.mrf.mxu0
        %v3527 = vadd.f32 0.0, %v3526
        %3528 = vmatmul.f32.gmra.mxu0 %v3402
        %v3529 = vpop.f32.mrf.mxu0
        %v3530 = vadd.f32 0.0, %v3529
        %3531 = vmatmul.f32.gmra.mxu0 %v3406
        %v3532 = vpop.f32.mrf.mxu0
        %v3533 = vadd.f32 0.0, %v3532
        %3534 = vmatmul.f32.gmra.mxu0 %v3410
        %v3535 = vpop.f32.mrf.mxu0
        %v3536 = vadd.f32 0.0, %v3535
        %3537 = vmatmul.f32.gmra.mxu0 %v3414
        %v3538 = vpop.f32.mrf.mxu0
        %v3539 = vadd.f32 0.0, %v3538
        %3540 = vmatmul.f32.gmra.mxu0 %v3418
        %v3541 = vpop.f32.mrf.mxu0
        %v3542 = vadd.f32 0.0, %v3541
        %3543 = vmatmul.f32.gmra.mxu0 %v3422
        %v3544 = vpop.f32.mrf.mxu0
        %v3545 = vadd.f32 0.0, %v3544
        %3546 = vdwg.mxu0
        %3547 = vmatpush.xpose.msra.mxu0 %v3333
        %3548 = vmatpush.xpose.msra.mxu0 %v3331
        %3549 = vmatpush.xpose.msra.mxu0 %v3329
        %3550 = vmatpush.xpose.msra.mxu0 %v3327
        %3551 = vmatpush.xpose.msra.mxu0 %v3325
        %3552 = vmatpush.xpose.msra.mxu0 %v3323
        %3553 = vmatpush.xpose.msra.mxu0 %v3321
        %3554 = vmatpush.xpose.msra.mxu0 %v3319
        %3555 = vmatpush.xpose.msra.mxu0 %v3317
        %3556 = vmatpush.xpose.msra.mxu0 %v3315
        %3557 = vmatpush.xpose.msra.mxu0 %v3313
        %3558 = vmatpush.xpose.msra.mxu0 %v3311
        %3559 = vmatpush.xpose.msra.mxu0 %v3309
        %3560 = vmatpush.xpose.msra.mxu0 %v3307
        %3561 = vmatpush.xpose.msra.mxu0 %v3305
        %3562 = vmatpush.xpose.msra.mxu0 %v3303
        %3563 = vmatmul.f32.gmra.mxu0 %v3344
        %v3564 = vpop.f32.mrf.mxu0
        %v3565 = vadd.f32 %v3485, %v3564
        %3566 = vmatmul.f32.gmra.mxu0 %v3348
        %v3567 = vpop.f32.mrf.mxu0
        %v3568 = vadd.f32 %v3488, %v3567
        %3569 = vmatmul.f32.gmra.mxu0 %v3352
        %v3570 = vpop.f32.mrf.mxu0
        %v3571 = vadd.f32 %v3491, %v3570
        %3572 = vmatmul.f32.gmra.mxu0 %v3356
        %v3573 = vpop.f32.mrf.mxu0
        %v3574 = vadd.f32 %v3494, %v3573
        %3575 = vmatmul.f32.gmra.mxu0 %v3360
        %v3576 = vpop.f32.mrf.mxu0
        %v3577 = vadd.f32 %v3497, %v3576
        %3578 = vmatmul.f32.gmra.mxu0 %v3364
        %v3579 = vpop.f32.mrf.mxu0
        %v3580 = vadd.f32 %v3500, %v3579
        %3581 = vmatmul.f32.gmra.mxu0 %v3368
        %v3582 = vpop.f32.mrf.mxu0
        %v3583 = vadd.f32 %v3503, %v3582
        %3584 = vmatmul.f32.gmra.mxu0 %v3372
        %v3585 = vpop.f32.mrf.mxu0
        %v3586 = vadd.f32 %v3506, %v3585
        %3587 = vmatmul.f32.gmra.mxu0 %v3376
        %v3588 = vpop.f32.mrf.mxu0
        %v3589 = vadd.f32 %v3509, %v3588
        %3590 = vmatmul.f32.gmra.mxu0 %v3380
        %v3591 = vpop.f32.mrf.mxu0
        %v3592 = vadd.f32 %v3512, %v3591
        %3593 = vmatmul.f32.gmra.mxu0 %v3384
        %v3594 = vpop.f32.mrf.mxu0
        %v3595 = vadd.f32 %v3515, %v3594
        %3596 = vmatmul.f32.gmra.mxu0 %v3388
        %v3597 = vpop.f32.mrf.mxu0
        %v3598 = vadd.f32 %v3518, %v3597
        %3599 = vmatmul.f32.gmra.mxu0 %v3392
        %v3600 = vpop.f32.mrf.mxu0
        %v3601 = vadd.f32 %v3521, %v3600
        %3602 = vmatmul.f32.gmra.mxu0 %v3396
        %v3603 = vpop.f32.mrf.mxu0
        %v3604 = vadd.f32 %v3524, %v3603
        %3605 = vmatmul.f32.gmra.mxu0 %v3400
        %v3606 = vpop.f32.mrf.mxu0
        %v3607 = vadd.f32 %v3527, %v3606
        %3608 = vmatmul.f32.gmra.mxu0 %v3404
        %v3609 = vpop.f32.mrf.mxu0
        %v3610 = vadd.f32 %v3530, %v3609
        %3611 = vmatmul.f32.gmra.mxu0 %v3408
        %v3612 = vpop.f32.mrf.mxu0
        %v3613 = vadd.f32 %v3533, %v3612
        %3614 = vmatmul.f32.gmra.mxu0 %v3412
        %v3615 = vpop.f32.mrf.mxu0
        %v3616 = vadd.f32 %v3536, %v3615
        %3617 = vmatmul.f32.gmra.mxu0 %v3416
        %v3618 = vpop.f32.mrf.mxu0
        %v3619 = vadd.f32 %v3539, %v3618
        %3620 = vmatmul.f32.gmra.mxu0 %v3420
        %v3621 = vpop.f32.mrf.mxu0
        %v3622 = vadd.f32 %v3542, %v3621
        %3623 = vmatmul.f32.gmra.mxu0 %v3424
        %v3624 = vpop.f32.mrf.mxu0
        %v3625 = vadd.f32 %v3545, %v3624
        %3626 = vdwg.mxu0
        %v3627 = vadd.f32 %v3276, %v3565
        %v3628 = vadd.f32 %v3277, %v3568
        %v3629 = vadd.f32 %v3278, %v3571
        %v3630 = vadd.f32 %v3279, %v3574
        %v3631 = vadd.f32 %v3280, %v3577
        %v3632 = vadd.f32 %v3281, %v3580
        %v3633 = vadd.f32 %v3282, %v3583
        %v3634 = vadd.f32 %v3283, %v3586
        %v3635 = vadd.f32 %v3284, %v3589
        %v3636 = vadd.f32 %v3285, %v3592
        %v3637 = vadd.f32 %v3286, %v3595
        %v3638 = vadd.f32 %v3287, %v3598
        %v3639 = vadd.f32 %v3288, %v3601
        %v3640 = vadd.f32 %v3289, %v3604
        %v3641 = vadd.f32 %v3290, %v3607
        %v3642 = vadd.f32 %v3291, %v3610
        %v3643 = vadd.f32 %v3292, %v3613
        %v3644 = vadd.f32 %v3293, %v3616
        %v3645 = vadd.f32 %v3294, %v3619
        %v3646 = vadd.f32 %v3295, %v3622
        %v3647 = vadd.f32 %v3296, %v3625
        %v3648 = vld [vmem:[#allocation2 + $0x30] sm:$0xc0]
        %v3649 = vld [vmem:[#allocation2 + $0x38] sm:$0xc0]
        %v3650 = vld [vmem:[#allocation2 + $0x180] sm:$0x3f]
        %v3651 = vld [vmem:[#allocation2 + $0x188] sm:$0x3f]
        %s3652 = scalar_lea.vmem %s3, 2048
        %v3653 = vld [vmem:[%s3652] sm:$0xff]
        %v3654 = vld [vmem:[%s3652 + $0x8] sm:$0xff]
        %v3655 = vld [vmem:[%s3652 + $0x10] sm:$0xff]
        %v3656 = vld [vmem:[%s3652 + $0x18] sm:$0xff]
        %v3657 = vld [vmem:[%s3652 + $0x20] sm:$0xff]
        %v3658 = vld [vmem:[%s3652 + $0x28] sm:$0xff]
        %v3659 = vld [vmem:[%s3652 + $0x30] sm:$0xff]
        %v3660 = vld [vmem:[%s3652 + $0x38] sm:$0xff]
        %v3661 = vld [vmem:[%s3652 + $0x40] sm:$0xff]
        %v3662 = vld [vmem:[%s3652 + $0x48] sm:$0xff]
        %v3663 = vld [vmem:[%s3652 + $0x50] sm:$0xff]
        %v3664 = vld [vmem:[%s3652 + $0x58] sm:$0xff]
        %v3665 = vld [vmem:[%s3652 + $0x60] sm:$0xff]
        %v3666 = vld [vmem:[%s3652 + $0x68] sm:$0xff]
        %v3667 = vld [vmem:[%s3652 + $0x70] sm:$0xff]
        %v3668 = vld [vmem:[%s3652 + $0x78] sm:$0xff]
        %v3669 = vld [vmem:[%s3652 + $0x80] sm:$0xff]
        %v3670 = vld [vmem:[%s3652 + $0x88] sm:$0xff]
        %v3671 = vld [vmem:[%s3652 + $0x90] sm:$0xff]
        %v3672 = vld [vmem:[%s3652 + $0x98] sm:$0xff]
        %v3673 = vld [vmem:[%s3652 + $0xa0] sm:$0xff]
        %v3674 = vld [vmem:[%s3652 + $0xa8] sm:$0xff]
        %v3675 = vld [vmem:[%s3652 + $0xb0] sm:$0xff]
        %v3676 = vld [vmem:[%s3652 + $0xb8] sm:$0xff]
        %v3677 = vld [vmem:[%s3652 + $0xc0] sm:$0xff]
        %v3678 = vld [vmem:[%s3652 + $0xc8] sm:$0xff]
        %v3679 = vld [vmem:[%s3652 + $0xd0] sm:$0xff]
        %v3680 = vld [vmem:[%s3652 + $0xd8] sm:$0xff]
        %v3681 = vld [vmem:[%s3652 + $0xe0] sm:$0xff]
        %v3682 = vld [vmem:[%s3652 + $0xe8] sm:$0xff]
        %v3683 = vld [vmem:[%s3652 + $0xf0] sm:$0xff]
        %v3684 = vld [vmem:[%s3652 + $0xf8] sm:$0xff]
        %v3689 = vrot.slane %v3648, 6
        %v3690 = vrot.slane %v2868, 6
        %v3691 = vsel %vm1989, %v3689, %v3690
        %v3692 = vrot.slane %v3649, 6
        %v3693 = vrot.slane %v2869, 6
        %v3694 = vsel %vm1989, %v3692, %v3693
        %v3695 = vrot.slane %v2870, 6
        %v3696 = vsel %vm1989, %v3690, %v3695
        %v3697 = vrot.slane %v2871, 6
        %v3698 = vsel %vm1989, %v3693, %v3697
        %v3699 = vrot.slane %v2872, 6
        %v3700 = vsel %vm1989, %v3695, %v3699
        %v3701 = vrot.slane %v2873, 6
        %v3702 = vsel %vm1989, %v3697, %v3701
        %v3703 = vrot.slane %v2874, 6
        %v3704 = vsel %vm1989, %v3699, %v3703
        %v3705 = vrot.slane %v2875, 6
        %v3706 = vsel %vm1989, %v3701, %v3705
        %v3707 = vrot.slane %v2876, 6
        %v3708 = vsel %vm1989, %v3703, %v3707
        %v3709 = vrot.slane %v2877, 6
        %v3710 = vsel %vm1989, %v3705, %v3709
        %v3711 = vrot.slane %v2878, 6
        %v3712 = vsel %vm1989, %v3707, %v3711
        %v3713 = vrot.slane %v2879, 6
        %v3714 = vsel %vm1989, %v3709, %v3713
        %v3715 = vrot.slane %v2880, 6
        %v3716 = vsel %vm1989, %v3711, %v3715
        %v3717 = vrot.slane %v2881, 6
        %v3718 = vsel %vm1989, %v3713, %v3717
        %v3719 = vrot.slane %v2882, 6
        %v3720 = vsel %vm1989, %v3715, %v3719
        %v3721 = vrot.slane %v2883, 6
        %v3722 = vsel %vm1989, %v3717, %v3721
        %v3723 = vrot.slane %v2884, 6
        %v3724 = vsel %vm1989, %v3719, %v3723
        %v3725 = vrot.slane %v2885, 6
        %v3726 = vsel %vm1989, %v3721, %v3725
        %v3727 = vrot.slane %v2886, 6
        %v3728 = vsel %vm1989, %v3723, %v3727
        %v3729 = vrot.slane %v2887, 6
        %v3730 = vsel %vm1989, %v3725, %v3729
        %v3731 = vrot.slane %v2888, 6
        %v3732 = vsel %vm1989, %v3727, %v3731
        %v3733 = vrot.slane %v2889, 6
        %v3734 = vsel %vm1989, %v3729, %v3733
        %v3735 = vrot.slane %v2890, 6
        %v3736 = vsel %vm1989, %v3731, %v3735
        %v3737 = vrot.slane %v2891, 6
        %v3738 = vsel %vm1989, %v3733, %v3737
        %v3739 = vrot.slane %v2892, 6
        %v3740 = vsel %vm1989, %v3735, %v3739
        %v3741 = vrot.slane %v2893, 6
        %v3742 = vsel %vm1989, %v3737, %v3741
        %v3743 = vrot.slane %v2894, 6
        %v3744 = vsel %vm1989, %v3739, %v3743
        %v3745 = vrot.slane %v2895, 6
        %v3746 = vsel %vm1989, %v3741, %v3745
        %v3747 = vrot.slane %v2896, 6
        %v3748 = vsel %vm1989, %v3743, %v3747
        %v3749 = vrot.slane %v2897, 6
        %v3750 = vsel %vm1989, %v3745, %v3749
        %v3751 = vrot.slane %v2898, 6
        %v3752 = vsel %vm1989, %v3747, %v3751
        %v3753 = vrot.slane %v2899, 6
        %v3754 = vsel %vm1989, %v3749, %v3753
        %v3755 = vrot.slane %v2900, 6
        %v3756 = vsel %vm1989, %v3751, %v3755
        %v3757 = vrot.slane %v2901, 6
        %v3758 = vsel %vm1989, %v3753, %v3757
        %v3759 = vrot.slane %v2902, 6
        %v3760 = vsel %vm1989, %v3755, %v3759
        %v3761 = vrot.slane %v2903, 6
        %v3762 = vsel %vm1989, %v3757, %v3761
        %v3763 = vrot.slane %v2904, 6
        %v3764 = vsel %vm1989, %v3759, %v3763
        %v3765 = vrot.slane %v2905, 6
        %v3766 = vsel %vm1989, %v3761, %v3765
        %v3767 = vrot.slane %v2906, 6
        %v3768 = vsel %vm1989, %v3763, %v3767
        %v3769 = vrot.slane %v2907, 6
        %v3770 = vsel %vm1989, %v3765, %v3769
        %v3771 = vrot.slane %v3650, 6
        %v3772 = vsel %vm1989, %v3767, %v3771
        %v3773 = vrot.slane %v3651, 6
        %v3774 = vsel %vm1989, %v3769, %v3773
        %3817 = vmatpush.xpose.msra.mxu0 %v3683
        %3818 = vmatpush.xpose.msra.mxu0 %v3681
        %3819 = vmatpush.xpose.msra.mxu0 %v3679
        %3820 = vmatpush.xpose.msra.mxu0 %v3677
        %3821 = vmatpush.xpose.msra.mxu0 %v3675
        %3822 = vmatpush.xpose.msra.mxu0 %v3673
        %3823 = vmatpush.xpose.msra.mxu0 %v3671
        %3824 = vmatpush.xpose.msra.mxu0 %v3669
        %3825 = vmatpush.xpose.msra.mxu0 %v3667
        %3826 = vmatpush.xpose.msra.mxu0 %v3665
        %3827 = vmatpush.xpose.msra.mxu0 %v3663
        %3828 = vmatpush.xpose.msra.mxu0 %v3661
        %3829 = vmatpush.xpose.msra.mxu0 %v3659
        %3830 = vmatpush.xpose.msra.mxu0 %v3657
        %3831 = vmatpush.xpose.msra.mxu0 %v3655
        %3832 = vmatpush.xpose.msra.mxu0 %v3653
        %3833 = vmatmul.f32.gmra.mxu0 %v3691
        %v3834 = vpop.f32.mrf.mxu0
        %v3835 = vadd.f32 0.0, %v3834
        %3836 = vmatmul.f32.gmra.mxu0 %v3696
        %v3837 = vpop.f32.mrf.mxu0
        %v3838 = vadd.f32 0.0, %v3837
        %3839 = vmatmul.f32.gmra.mxu0 %v3700
        %v3840 = vpop.f32.mrf.mxu0
        %v3841 = vadd.f32 0.0, %v3840
        %3842 = vmatmul.f32.gmra.mxu0 %v3704
        %v3843 = vpop.f32.mrf.mxu0
        %v3844 = vadd.f32 0.0, %v3843
        %3845 = vmatmul.f32.gmra.mxu0 %v3708
        %v3846 = vpop.f32.mrf.mxu0
        %v3847 = vadd.f32 0.0, %v3846
        %3848 = vmatmul.f32.gmra.mxu0 %v3712
        %v3849 = vpop.f32.mrf.mxu0
        %v3850 = vadd.f32 0.0, %v3849
        %3851 = vmatmul.f32.gmra.mxu0 %v3716
        %v3852 = vpop.f32.mrf.mxu0
        %v3853 = vadd.f32 0.0, %v3852
        %3854 = vmatmul.f32.gmra.mxu0 %v3720
        %v3855 = vpop.f32.mrf.mxu0
        %v3856 = vadd.f32 0.0, %v3855
        %3857 = vmatmul.f32.gmra.mxu0 %v3724
        %v3858 = vpop.f32.mrf.mxu0
        %v3859 = vadd.f32 0.0, %v3858
        %3860 = vmatmul.f32.gmra.mxu0 %v3728
        %v3861 = vpop.f32.mrf.mxu0
        %v3862 = vadd.f32 0.0, %v3861
        %3863 = vmatmul.f32.gmra.mxu0 %v3732
        %v3864 = vpop.f32.mrf.mxu0
        %v3865 = vadd.f32 0.0, %v3864
        %3866 = vmatmul.f32.gmra.mxu0 %v3736
        %v3867 = vpop.f32.mrf.mxu0
        %v3868 = vadd.f32 0.0, %v3867
        %3869 = vmatmul.f32.gmra.mxu0 %v3740
        %v3870 = vpop.f32.mrf.mxu0
        %v3871 = vadd.f32 0.0, %v3870
        %3872 = vmatmul.f32.gmra.mxu0 %v3744
        %v3873 = vpop.f32.mrf.mxu0
        %v3874 = vadd.f32 0.0, %v3873
        %3875 = vmatmul.f32.gmra.mxu0 %v3748
        %v3876 = vpop.f32.mrf.mxu0
        %v3877 = vadd.f32 0.0, %v3876
        %3878 = vmatmul.f32.gmra.mxu0 %v3752
        %v3879 = vpop.f32.mrf.mxu0
        %v3880 = vadd.f32 0.0, %v3879
        %3881 = vmatmul.f32.gmra.mxu0 %v3756
        %v3882 = vpop.f32.mrf.mxu0
        %v3883 = vadd.f32 0.0, %v3882
        %3884 = vmatmul.f32.gmra.mxu0 %v3760
        %v3885 = vpop.f32.mrf.mxu0
        %v3886 = vadd.f32 0.0, %v3885
        %3887 = vmatmul.f32.gmra.mxu0 %v3764
        %v3888 = vpop.f32.mrf.mxu0
        %v3889 = vadd.f32 0.0, %v3888
        %3890 = vmatmul.f32.gmra.mxu0 %v3768
        %v3891 = vpop.f32.mrf.mxu0
        %v3892 = vadd.f32 0.0, %v3891
        %3893 = vmatmul.f32.gmra.mxu0 %v3772
        %v3894 = vpop.f32.mrf.mxu0
        %v3895 = vadd.f32 0.0, %v3894
        %3896 = vdwg.mxu0
        %3897 = vmatpush.xpose.msra.mxu0 %v3684
        %3898 = vmatpush.xpose.msra.mxu0 %v3682
        %3899 = vmatpush.xpose.msra.mxu0 %v3680
        %3900 = vmatpush.xpose.msra.mxu0 %v3678
        %3901 = vmatpush.xpose.msra.mxu0 %v3676
        %3902 = vmatpush.xpose.msra.mxu0 %v3674
        %3903 = vmatpush.xpose.msra.mxu0 %v3672
        %3904 = vmatpush.xpose.msra.mxu0 %v3670
        %3905 = vmatpush.xpose.msra.mxu0 %v3668
        %3906 = vmatpush.xpose.msra.mxu0 %v3666
        %3907 = vmatpush.xpose.msra.mxu0 %v3664
        %3908 = vmatpush.xpose.msra.mxu0 %v3662
        %3909 = vmatpush.xpose.msra.mxu0 %v3660
        %3910 = vmatpush.xpose.msra.mxu0 %v3658
        %3911 = vmatpush.xpose.msra.mxu0 %v3656
        %3912 = vmatpush.xpose.msra.mxu0 %v3654
        %3913 = vmatmul.f32.gmra.mxu0 %v3694
        %v3914 = vpop.f32.mrf.mxu0
        %v3915 = vadd.f32 %v3835, %v3914
        %3916 = vmatmul.f32.gmra.mxu0 %v3698
        %v3917 = vpop.f32.mrf.mxu0
        %v3918 = vadd.f32 %v3838, %v3917
        %3919 = vmatmul.f32.gmra.mxu0 %v3702
        %v3920 = vpop.f32.mrf.mxu0
        %v3921 = vadd.f32 %v3841, %v3920
        %3922 = vmatmul.f32.gmra.mxu0 %v3706
        %v3923 = vpop.f32.mrf.mxu0
        %v3924 = vadd.f32 %v3844, %v3923
        %3925 = vmatmul.f32.gmra.mxu0 %v3710
        %v3926 = vpop.f32.mrf.mxu0
        %v3927 = vadd.f32 %v3847, %v3926
        %3928 = vmatmul.f32.gmra.mxu0 %v3714
        %v3929 = vpop.f32.mrf.mxu0
        %v3930 = vadd.f32 %v3850, %v3929
        %3931 = vmatmul.f32.gmra.mxu0 %v3718
        %v3932 = vpop.f32.mrf.mxu0
        %v3933 = vadd.f32 %v3853, %v3932
        %3934 = vmatmul.f32.gmra.mxu0 %v3722
        %v3935 = vpop.f32.mrf.mxu0
        %v3936 = vadd.f32 %v3856, %v3935
        %3937 = vmatmul.f32.gmra.mxu0 %v3726
        %v3938 = vpop.f32.mrf.mxu0
        %v3939 = vadd.f32 %v3859, %v3938
        %3940 = vmatmul.f32.gmra.mxu0 %v3730
        %v3941 = vpop.f32.mrf.mxu0
        %v3942 = vadd.f32 %v3862, %v3941
        %3943 = vmatmul.f32.gmra.mxu0 %v3734
        %v3944 = vpop.f32.mrf.mxu0
        %v3945 = vadd.f32 %v3865, %v3944
        %3946 = vmatmul.f32.gmra.mxu0 %v3738
        %v3947 = vpop.f32.mrf.mxu0
        %v3948 = vadd.f32 %v3868, %v3947
        %3949 = vmatmul.f32.gmra.mxu0 %v3742
        %v3950 = vpop.f32.mrf.mxu0
        %v3951 = vadd.f32 %v3871, %v3950
        %3952 = vmatmul.f32.gmra.mxu0 %v3746
        %v3953 = vpop.f32.mrf.mxu0
        %v3954 = vadd.f32 %v3874, %v3953
        %3955 = vmatmul.f32.gmra.mxu0 %v3750
        %v3956 = vpop.f32.mrf.mxu0
        %v3957 = vadd.f32 %v3877, %v3956
        %3958 = vmatmul.f32.gmra.mxu0 %v3754
        %v3959 = vpop.f32.mrf.mxu0
        %v3960 = vadd.f32 %v3880, %v3959
        %3961 = vmatmul.f32.gmra.mxu0 %v3758
        %v3962 = vpop.f32.mrf.mxu0
        %v3963 = vadd.f32 %v3883, %v3962
        %3964 = vmatmul.f32.gmra.mxu0 %v3762
        %v3965 = vpop.f32.mrf.mxu0
        %v3966 = vadd.f32 %v3886, %v3965
        %3967 = vmatmul.f32.gmra.mxu0 %v3766
        %v3968 = vpop.f32.mrf.mxu0
        %v3969 = vadd.f32 %v3889, %v3968
        %3970 = vmatmul.f32.gmra.mxu0 %v3770
        %v3971 = vpop.f32.mrf.mxu0
        %v3972 = vadd.f32 %v3892, %v3971
        %3973 = vmatmul.f32.gmra.mxu0 %v3774
        %v3974 = vpop.f32.mrf.mxu0
        %v3975 = vadd.f32 %v3895, %v3974
        %3976 = vdwg.mxu0
        %v3977 = vadd.f32 %v3627, %v3915
        %v3978 = vadd.f32 %v3628, %v3918
        %v3979 = vadd.f32 %v3629, %v3921
        %v3980 = vadd.f32 %v3630, %v3924
        %v3981 = vadd.f32 %v3631, %v3927
        %v3982 = vadd.f32 %v3632, %v3930
        %v3983 = vadd.f32 %v3633, %v3933
        %v3984 = vadd.f32 %v3634, %v3936
        %v3985 = vadd.f32 %v3635, %v3939
        %v3986 = vadd.f32 %v3636, %v3942
        %v3987 = vadd.f32 %v3637, %v3945
        %v3988 = vadd.f32 %v3638, %v3948
        %v3989 = vadd.f32 %v3639, %v3951
        %v3990 = vadd.f32 %v3640, %v3954
        %v3991 = vadd.f32 %v3641, %v3957
        %v3992 = vadd.f32 %v3642, %v3960
        %v3993 = vadd.f32 %v3643, %v3963
        %v3994 = vadd.f32 %v3644, %v3966
        %v3995 = vadd.f32 %v3645, %v3969
        %v3996 = vadd.f32 %v3646, %v3972
        %v3997 = vadd.f32 %v3647, %v3975
        %v3998 = vld [vmem:[%s4] sm:$0x1]
        %v4000 = vperm.slane %v3998, 0
        %v4002 = vadd.f32 %v3977, %v4000
        %v4003 = vadd.f32 %v3978, %v4000
        %v4004 = vadd.f32 %v3979, %v4000
        %v4005 = vadd.f32 %v3980, %v4000
        %v4006 = vadd.f32 %v3981, %v4000
        %v4007 = vadd.f32 %v3982, %v4000
        %v4008 = vadd.f32 %v3983, %v4000
        %v4009 = vadd.f32 %v3984, %v4000
        %v4010 = vadd.f32 %v3985, %v4000
        %v4011 = vadd.f32 %v3986, %v4000
        %v4012 = vadd.f32 %v3987, %v4000
        %v4013 = vadd.f32 %v3988, %v4000
        %v4014 = vadd.f32 %v3989, %v4000
        %v4015 = vadd.f32 %v3990, %v4000
        %v4016 = vadd.f32 %v3991, %v4000
        %v4017 = vadd.f32 %v3992, %v4000
        %v4018 = vadd.f32 %v3993, %v4000
        %v4019 = vadd.f32 %v3994, %v4000
        %v4020 = vadd.f32 %v3995, %v4000
        %v4021 = vadd.f32 %v3996, %v4000
        %v4022 = vadd.f32 %v3997, %v4000
        %v4023 = vmax.f32 %v4002, 0.0
        %v4024 = vmax.f32 %v4003, 0.0
        %v4025 = vmax.f32 %v4004, 0.0
        %v4026 = vmax.f32 %v4005, 0.0
        %v4027 = vmax.f32 %v4006, 0.0
        %v4028 = vmax.f32 %v4007, 0.0
        %v4029 = vmax.f32 %v4008, 0.0
        %v4030 = vmax.f32 %v4009, 0.0
        %v4031 = vmax.f32 %v4010, 0.0
        %v4032 = vmax.f32 %v4011, 0.0
        %v4033 = vmax.f32 %v4012, 0.0
        %v4034 = vmax.f32 %v4013, 0.0
        %v4035 = vmax.f32 %v4014, 0.0
        %v4036 = vmax.f32 %v4015, 0.0
        %v4037 = vmax.f32 %v4016, 0.0
        %v4038 = vmax.f32 %v4017, 0.0
        %v4039 = vmax.f32 %v4018, 0.0
        %v4040 = vmax.f32 %v4019, 0.0
        %v4041 = vmax.f32 %v4020, 0.0
        %v4042 = vmax.f32 %v4021, 0.0
        %v4043 = vmax.f32 %v4022, 0.0
        %v4044 = vld [vmem:[%s5] sm:$0xff]
        %v4045 = vld [vmem:[%s5 + $0x8] sm:$0xff]
        %v4046 = vld [vmem:[%s5 + $0x10] sm:$0xff]
        %v4047 = vld [vmem:[%s5 + $0x18] sm:$0xff]
        %v4048 = vld [vmem:[%s5 + $0x20] sm:$0xff]
        %v4049 = vld [vmem:[%s5 + $0x28] sm:$0xff]
        %v4050 = vld [vmem:[%s5 + $0x30] sm:$0xff]
        %v4051 = vld [vmem:[%s5 + $0x38] sm:$0xff]
        %v4052 = vld [vmem:[%s5 + $0x40] sm:$0xff]
        %v4053 = vld [vmem:[%s5 + $0x48] sm:$0xff]
        %v4054 = vld [vmem:[%s5 + $0x50] sm:$0xff]
        %v4055 = vld [vmem:[%s5 + $0x58] sm:$0xff]
        %v4056 = vld [vmem:[%s5 + $0x60] sm:$0xff]
        %v4057 = vld [vmem:[%s5 + $0x68] sm:$0xff]
        %v4058 = vld [vmem:[%s5 + $0x70] sm:$0xff]
        %v4059 = vld [vmem:[%s5 + $0x78] sm:$0xff]
        %v4060 = vld [vmem:[%s6] sm:$0x1]
        %v4062 = vperm.slane %v4060, 0
        %4064 = vmatpush.xpose.msra.mxu0 %v4059
        %4065 = vmatpush.xpose.msra.mxu0 %v4058
        %4066 = vmatpush.xpose.msra.mxu0 %v4057
        %4067 = vmatpush.xpose.msra.mxu0 %v4056
        %4068 = vmatpush.xpose.msra.mxu0 %v4055
        %4069 = vmatpush.xpose.msra.mxu0 %v4054
        %4070 = vmatpush.xpose.msra.mxu0 %v4053
        %4071 = vmatpush.xpose.msra.mxu0 %v4052
        %4072 = vmatpush.xpose.msra.mxu0 %v4051
        %4073 = vmatpush.xpose.msra.mxu0 %v4050
        %4074 = vmatpush.xpose.msra.mxu0 %v4049
        %4075 = vmatpush.xpose.msra.mxu0 %v4048
        %4076 = vmatpush.xpose.msra.mxu0 %v4047
        %4077 = vmatpush.xpose.msra.mxu0 %v4046
        %4078 = vmatpush.xpose.msra.mxu0 %v4045
        %4079 = vmatpush.xpose.msra.mxu0 %v4044
        %4080 = vmatmul.f32.gmra.mxu0 %v4023
        %v4081 = vpop.f32.mrf.mxu0
        %v4082 = vadd.f32 %v4062, %v4081
        %4083 = vmatmul.f32.gmra.mxu0 %v4024
        %v4084 = vpop.f32.mrf.mxu0
        %v4085 = vadd.f32 %v4062, %v4084
        %4086 = vmatmul.f32.gmra.mxu0 %v4025
        %v4087 = vpop.f32.mrf.mxu0
        %v4088 = vadd.f32 %v4062, %v4087
        %4089 = vmatmul.f32.gmra.mxu0 %v4026
        %v4090 = vpop.f32.mrf.mxu0
        %v4091 = vadd.f32 %v4062, %v4090
        %4092 = vmatmul.f32.gmra.mxu0 %v4027
        %v4093 = vpop.f32.mrf.mxu0
        %v4094 = vadd.f32 %v4062, %v4093
        %4095 = vmatmul.f32.gmra.mxu0 %v4028
        %v4096 = vpop.f32.mrf.mxu0
        %v4097 = vadd.f32 %v4062, %v4096
        %4098 = vmatmul.f32.gmra.mxu0 %v4029
        %v4099 = vpop.f32.mrf.mxu0
        %v4100 = vadd.f32 %v4062, %v4099
        %4101 = vmatmul.f32.gmra.mxu0 %v4030
        %v4102 = vpop.f32.mrf.mxu0
        %v4103 = vadd.f32 %v4062, %v4102
        %4104 = vmatmul.f32.gmra.mxu0 %v4031
        %v4105 = vpop.f32.mrf.mxu0
        %v4106 = vadd.f32 %v4062, %v4105
        %4107 = vmatmul.f32.gmra.mxu0 %v4032
        %v4108 = vpop.f32.mrf.mxu0
        %v4109 = vadd.f32 %v4062, %v4108
        %4110 = vmatmul.f32.gmra.mxu0 %v4033
        %v4111 = vpop.f32.mrf.mxu0
        %v4112 = vadd.f32 %v4062, %v4111
        %4113 = vmatmul.f32.gmra.mxu0 %v4034
        %v4114 = vpop.f32.mrf.mxu0
        %v4115 = vadd.f32 %v4062, %v4114
        %4116 = vmatmul.f32.gmra.mxu0 %v4035
        %v4117 = vpop.f32.mrf.mxu0
        %v4118 = vadd.f32 %v4062, %v4117
        %4119 = vmatmul.f32.gmra.mxu0 %v4036
        %v4120 = vpop.f32.mrf.mxu0
        %v4121 = vadd.f32 %v4062, %v4120
        %4122 = vmatmul.f32.gmra.mxu0 %v4037
        %v4123 = vpop.f32.mrf.mxu0
        %v4124 = vadd.f32 %v4062, %v4123
        %4125 = vmatmul.f32.gmra.mxu0 %v4038
        %v4126 = vpop.f32.mrf.mxu0
        %v4127 = vadd.f32 %v4062, %v4126
        %4128 = vmatmul.f32.gmra.mxu0 %v4039
        %v4129 = vpop.f32.mrf.mxu0
        %v4130 = vadd.f32 %v4062, %v4129
        %4131 = vmatmul.f32.gmra.mxu0 %v4040
        %v4132 = vpop.f32.mrf.mxu0
        %v4133 = vadd.f32 %v4062, %v4132
        %4134 = vmatmul.f32.gmra.mxu0 %v4041
        %v4135 = vpop.f32.mrf.mxu0
        %v4136 = vadd.f32 %v4062, %v4135
        %4137 = vmatmul.f32.gmra.mxu0 %v4042
        %v4138 = vpop.f32.mrf.mxu0
        %v4139 = vadd.f32 %v4062, %v4138
        %4140 = vmatmul.f32.gmra.mxu0 %v4043
        %v4141 = vpop.f32.mrf.mxu0
        %v4142 = vadd.f32 %v4062, %v4141
        %4143 = vdwg.mxu0
        %v4144 = vmax.f32 %v4082, 0.0
        %v4145 = vmax.f32 %v4085, 0.0
        %v4146 = vmax.f32 %v4088, 0.0
        %v4147 = vmax.f32 %v4091, 0.0
        %v4148 = vmax.f32 %v4094, 0.0
        %v4149 = vmax.f32 %v4097, 0.0
        %v4150 = vmax.f32 %v4100, 0.0
        %v4151 = vmax.f32 %v4103, 0.0
        %v4152 = vmax.f32 %v4106, 0.0
        %v4153 = vmax.f32 %v4109, 0.0
        %v4154 = vmax.f32 %v4112, 0.0
        %v4155 = vmax.f32 %v4115, 0.0
        %v4156 = vmax.f32 %v4118, 0.0
        %v4157 = vmax.f32 %v4121, 0.0
        %v4158 = vmax.f32 %v4124, 0.0
        %v4159 = vmax.f32 %v4127, 0.0
        %v4160 = vmax.f32 %v4130, 0.0
        %v4161 = vmax.f32 %v4133, 0.0
        %v4162 = vmax.f32 %v4136, 0.0
        %v4163 = vmax.f32 %v4139, 0.0
        %v4164 = vmax.f32 %v4142, 0.0
        %v4165 = vld [vmem:[%s7] sm:$0xff]
        %v4166 = vld [vmem:[%s7 + $0x8] sm:$0xff]
        %v4167 = vld [vmem:[%s7 + $0x10] sm:$0xff]
        %v4168 = vld [vmem:[%s7 + $0x18] sm:$0xff]
        %v4169 = vld [vmem:[%s7 + $0x20] sm:$0xff]
        %v4170 = vld [vmem:[%s7 + $0x28] sm:$0xff]
        %v4171 = vld [vmem:[%s7 + $0x30] sm:$0xff]
        %v4172 = vld [vmem:[%s7 + $0x38] sm:$0xff]
        %v4173 = vld [vmem:[%s7 + $0x40] sm:$0xff]
        %v4174 = vld [vmem:[%s7 + $0x48] sm:$0xff]
        %v4175 = vld [vmem:[%s7 + $0x50] sm:$0xff]
        %v4176 = vld [vmem:[%s7 + $0x58] sm:$0xff]
        %v4177 = vld [vmem:[%s7 + $0x60] sm:$0xff]
        %v4178 = vld [vmem:[%s7 + $0x68] sm:$0xff]
        %v4179 = vld [vmem:[%s7 + $0x70] sm:$0xff]
        %v4180 = vld [vmem:[%s7 + $0x78] sm:$0xff]
        %v4181 = vld [vmem:[%s8] sm:$0x1]
        %v4183 = vperm.slane %v4181, 0
        %4185 = vmatpush.xpose.msra.mxu0 %v4180
        %4186 = vmatpush.xpose.msra.mxu0 %v4179
        %4187 = vmatpush.xpose.msra.mxu0 %v4178
        %4188 = vmatpush.xpose.msra.mxu0 %v4177
        %4189 = vmatpush.xpose.msra.mxu0 %v4176
        %4190 = vmatpush.xpose.msra.mxu0 %v4175
        %4191 = vmatpush.xpose.msra.mxu0 %v4174
        %4192 = vmatpush.xpose.msra.mxu0 %v4173
        %4193 = vmatpush.xpose.msra.mxu0 %v4172
        %4194 = vmatpush.xpose.msra.mxu0 %v4171
        %4195 = vmatpush.xpose.msra.mxu0 %v4170
        %4196 = vmatpush.xpose.msra.mxu0 %v4169
        %4197 = vmatpush.xpose.msra.mxu0 %v4168
        %4198 = vmatpush.xpose.msra.mxu0 %v4167
        %4199 = vmatpush.xpose.msra.mxu0 %v4166
        %4200 = vmatpush.xpose.msra.mxu0 %v4165
        %4201 = vmatmul.f32.gmra.mxu0 %v4144
        %v4202 = vpop.f32.mrf.mxu0
        %v4203 = vadd.f32 %v4183, %v4202
        %4204 = vmatmul.f32.gmra.mxu0 %v4145
        %v4205 = vpop.f32.mrf.mxu0
        %v4206 = vadd.f32 %v4183, %v4205
        %4207 = vmatmul.f32.gmra.mxu0 %v4146
        %v4208 = vpop.f32.mrf.mxu0
        %v4209 = vadd.f32 %v4183, %v4208
        %4210 = vmatmul.f32.gmra.mxu0 %v4147
        %v4211 = vpop.f32.mrf.mxu0
        %v4212 = vadd.f32 %v4183, %v4211
        %4213 = vmatmul.f32.gmra.mxu0 %v4148
        %v4214 = vpop.f32.mrf.mxu0
        %v4215 = vadd.f32 %v4183, %v4214
        %4216 = vmatmul.f32.gmra.mxu0 %v4149
        %v4217 = vpop.f32.mrf.mxu0
        %v4218 = vadd.f32 %v4183, %v4217
        %4219 = vmatmul.f32.gmra.mxu0 %v4150
        %v4220 = vpop.f32.mrf.mxu0
        %v4221 = vadd.f32 %v4183, %v4220
        %4222 = vmatmul.f32.gmra.mxu0 %v4151
        %v4223 = vpop.f32.mrf.mxu0
        %v4224 = vadd.f32 %v4183, %v4223
        %4225 = vmatmul.f32.gmra.mxu0 %v4152
        %v4226 = vpop.f32.mrf.mxu0
        %v4227 = vadd.f32 %v4183, %v4226
        %4228 = vmatmul.f32.gmra.mxu0 %v4153
        %v4229 = vpop.f32.mrf.mxu0
        %v4230 = vadd.f32 %v4183, %v4229
        %4231 = vmatmul.f32.gmra.mxu0 %v4154
        %v4232 = vpop.f32.mrf.mxu0
        %v4233 = vadd.f32 %v4183, %v4232
        %4234 = vmatmul.f32.gmra.mxu0 %v4155
        %v4235 = vpop.f32.mrf.mxu0
        %v4236 = vadd.f32 %v4183, %v4235
        %4237 = vmatmul.f32.gmra.mxu0 %v4156
        %v4238 = vpop.f32.mrf.mxu0
        %v4239 = vadd.f32 %v4183, %v4238
        %4240 = vmatmul.f32.gmra.mxu0 %v4157
        %v4241 = vpop.f32.mrf.mxu0
        %v4242 = vadd.f32 %v4183, %v4241
        %4243 = vmatmul.f32.gmra.mxu0 %v4158
        %v4244 = vpop.f32.mrf.mxu0
        %v4245 = vadd.f32 %v4183, %v4244
        %4246 = vmatmul.f32.gmra.mxu0 %v4159
        %v4247 = vpop.f32.mrf.mxu0
        %v4248 = vadd.f32 %v4183, %v4247
        %4249 = vmatmul.f32.gmra.mxu0 %v4160
        %v4250 = vpop.f32.mrf.mxu0
        %v4251 = vadd.f32 %v4183, %v4250
        %4252 = vmatmul.f32.gmra.mxu0 %v4161
        %v4253 = vpop.f32.mrf.mxu0
        %v4254 = vadd.f32 %v4183, %v4253
        %4255 = vmatmul.f32.gmra.mxu0 %v4162
        %v4256 = vpop.f32.mrf.mxu0
        %v4257 = vadd.f32 %v4183, %v4256
        %4258 = vmatmul.f32.gmra.mxu0 %v4163
        %v4259 = vpop.f32.mrf.mxu0
        %v4260 = vadd.f32 %v4183, %v4259
        %4261 = vmatmul.f32.gmra.mxu0 %v4164
        %v4262 = vpop.f32.mrf.mxu0
        %v4263 = vadd.f32 %v4183, %v4262
        %4264 = vdwg.mxu0
        %v4265 = vmax.f32 %v4203, 0.0
        %v4266 = vmax.f32 %v4206, 0.0
        %v4267 = vmax.f32 %v4209, 0.0
        %v4268 = vmax.f32 %v4212, 0.0
        %v4269 = vmax.f32 %v4215, 0.0
        %v4270 = vmax.f32 %v4218, 0.0
        %v4271 = vmax.f32 %v4221, 0.0
        %v4272 = vmax.f32 %v4224, 0.0
        %v4273 = vmax.f32 %v4227, 0.0
        %v4274 = vmax.f32 %v4230, 0.0
        %v4275 = vmax.f32 %v4233, 0.0
        %v4276 = vmax.f32 %v4236, 0.0
        %v4277 = vmax.f32 %v4239, 0.0
        %v4278 = vmax.f32 %v4242, 0.0
        %v4279 = vmax.f32 %v4245, 0.0
        %v4280 = vmax.f32 %v4248, 0.0
        %v4281 = vmax.f32 %v4251, 0.0
        %v4282 = vmax.f32 %v4254, 0.0
        %v4283 = vmax.f32 %v4257, 0.0
        %v4284 = vmax.f32 %v4260, 0.0
        %v4285 = vmax.f32 %v4263, 0.0
        %v4286 = vld [vmem:[%s9] sm:$0xff]
        %v4287 = vld [vmem:[%s9 + $0x8] sm:$0xff]
        %v4288 = vld [vmem:[%s9 + $0x10] sm:$0xff]
        %v4289 = vld [vmem:[%s9 + $0x18] sm:$0xff]
        %v4290 = vld [vmem:[%s9 + $0x20] sm:$0xff]
        %v4291 = vld [vmem:[%s9 + $0x28] sm:$0xff]
        %v4292 = vld [vmem:[%s9 + $0x30] sm:$0xff]
        %v4293 = vld [vmem:[%s9 + $0x38] sm:$0xff]
        %v4294 = vld [vmem:[%s9 + $0x40] sm:$0xff]
        %v4295 = vld [vmem:[%s9 + $0x48] sm:$0xff]
        %v4296 = vld [vmem:[%s9 + $0x50] sm:$0xff]
        %v4297 = vld [vmem:[%s9 + $0x58] sm:$0xff]
        %v4298 = vld [vmem:[%s9 + $0x60] sm:$0xff]
        %v4299 = vld [vmem:[%s9 + $0x68] sm:$0xff]
        %v4300 = vld [vmem:[%s9 + $0x70] sm:$0xff]
        %v4301 = vld [vmem:[%s9 + $0x78] sm:$0xff]
        %v4302 = vld [vmem:[%s10] sm:$0x1]
        %v4304 = vperm.slane %v4302, 0
        %4306 = vmatpush.xpose.msra.mxu0 %v4301
        %4307 = vmatpush.xpose.msra.mxu0 %v4300
        %4308 = vmatpush.xpose.msra.mxu0 %v4299
        %4309 = vmatpush.xpose.msra.mxu0 %v4298
        %4310 = vmatpush.xpose.msra.mxu0 %v4297
        %4311 = vmatpush.xpose.msra.mxu0 %v4296
        %4312 = vmatpush.xpose.msra.mxu0 %v4295
        %4313 = vmatpush.xpose.msra.mxu0 %v4294
        %4314 = vmatpush.xpose.msra.mxu0 %v4293
        %4315 = vmatpush.xpose.msra.mxu0 %v4292
        %4316 = vmatpush.xpose.msra.mxu0 %v4291
        %4317 = vmatpush.xpose.msra.mxu0 %v4290
        %4318 = vmatpush.xpose.msra.mxu0 %v4289
        %4319 = vmatpush.xpose.msra.mxu0 %v4288
        %4320 = vmatpush.xpose.msra.mxu0 %v4287
        %4321 = vmatpush.xpose.msra.mxu0 %v4286
        %4322 = vmatmul.f32.gmra.mxu0 %v4265
        %v4323 = vpop.f32.mrf.mxu0
        %v4324 = vadd.f32 %v4304, %v4323
        %4325 = vmatmul.f32.gmra.mxu0 %v4266
        %v4326 = vpop.f32.mrf.mxu0
        %v4327 = vadd.f32 %v4304, %v4326
        %4328 = vmatmul.f32.gmra.mxu0 %v4267
        %v4329 = vpop.f32.mrf.mxu0
        %v4330 = vadd.f32 %v4304, %v4329
        %4331 = vmatmul.f32.gmra.mxu0 %v4268
        %v4332 = vpop.f32.mrf.mxu0
        %v4333 = vadd.f32 %v4304, %v4332
        %4334 = vmatmul.f32.gmra.mxu0 %v4269
        %v4335 = vpop.f32.mrf.mxu0
        %v4336 = vadd.f32 %v4304, %v4335
        %4337 = vmatmul.f32.gmra.mxu0 %v4270
        %v4338 = vpop.f32.mrf.mxu0
        %v4339 = vadd.f32 %v4304, %v4338
        %4340 = vmatmul.f32.gmra.mxu0 %v4271
        %v4341 = vpop.f32.mrf.mxu0
        %v4342 = vadd.f32 %v4304, %v4341
        %4343 = vmatmul.f32.gmra.mxu0 %v4272
        %v4344 = vpop.f32.mrf.mxu0
        %v4345 = vadd.f32 %v4304, %v4344
        %4346 = vmatmul.f32.gmra.mxu0 %v4273
        %v4347 = vpop.f32.mrf.mxu0
        %v4348 = vadd.f32 %v4304, %v4347
        %4349 = vmatmul.f32.gmra.mxu0 %v4274
        %v4350 = vpop.f32.mrf.mxu0
        %v4351 = vadd.f32 %v4304, %v4350
        %4352 = vmatmul.f32.gmra.mxu0 %v4275
        %v4353 = vpop.f32.mrf.mxu0
        %v4354 = vadd.f32 %v4304, %v4353
        %4355 = vmatmul.f32.gmra.mxu0 %v4276
        %v4356 = vpop.f32.mrf.mxu0
        %v4357 = vadd.f32 %v4304, %v4356
        %4358 = vmatmul.f32.gmra.mxu0 %v4277
        %v4359 = vpop.f32.mrf.mxu0
        %v4360 = vadd.f32 %v4304, %v4359
        %4361 = vmatmul.f32.gmra.mxu0 %v4278
        %v4362 = vpop.f32.mrf.mxu0
        %v4363 = vadd.f32 %v4304, %v4362
        %4364 = vmatmul.f32.gmra.mxu0 %v4279
        %v4365 = vpop.f32.mrf.mxu0
        %v4366 = vadd.f32 %v4304, %v4365
        %4367 = vmatmul.f32.gmra.mxu0 %v4280
        %v4368 = vpop.f32.mrf.mxu0
        %v4369 = vadd.f32 %v4304, %v4368
        %4370 = vmatmul.f32.gmra.mxu0 %v4281
        %v4371 = vpop.f32.mrf.mxu0
        %v4372 = vadd.f32 %v4304, %v4371
        %4373 = vmatmul.f32.gmra.mxu0 %v4282
        %v4374 = vpop.f32.mrf.mxu0
        %v4375 = vadd.f32 %v4304, %v4374
        %4376 = vmatmul.f32.gmra.mxu0 %v4283
        %v4377 = vpop.f32.mrf.mxu0
        %v4378 = vadd.f32 %v4304, %v4377
        %4379 = vmatmul.f32.gmra.mxu0 %v4284
        %v4380 = vpop.f32.mrf.mxu0
        %v4381 = vadd.f32 %v4304, %v4380
        %4382 = vmatmul.f32.gmra.mxu0 %v4285
        %v4383 = vpop.f32.mrf.mxu0
        %v4384 = vadd.f32 %v4304, %v4383
        %4385 = vdwg.mxu0
        %v4386 = vmax.f32 %v4324, 0.0
        %v4387 = vmax.f32 %v4327, 0.0
        %v4388 = vmax.f32 %v4330, 0.0
        %v4389 = vmax.f32 %v4333, 0.0
        %v4390 = vmax.f32 %v4336, 0.0
        %v4391 = vmax.f32 %v4339, 0.0
        %v4392 = vmax.f32 %v4342, 0.0
        %v4393 = vmax.f32 %v4345, 0.0
        %v4394 = vmax.f32 %v4348, 0.0
        %v4395 = vmax.f32 %v4351, 0.0
        %v4396 = vmax.f32 %v4354, 0.0
        %v4397 = vmax.f32 %v4357, 0.0
        %v4398 = vmax.f32 %v4360, 0.0
        %v4399 = vmax.f32 %v4363, 0.0
        %v4400 = vmax.f32 %v4366, 0.0
        %v4401 = vmax.f32 %v4369, 0.0
        %v4402 = vmax.f32 %v4372, 0.0
        %v4403 = vmax.f32 %v4375, 0.0
        %v4404 = vmax.f32 %v4378, 0.0
        %v4405 = vmax.f32 %v4381, 0.0
        %v4406 = vmax.f32 %v4384, 0.0
        %v4407 = vld [vmem:[%s11] sm:$0xff]
        %v4408 = vld [vmem:[%s11 + $0x8] sm:$0xff]
        %v4409 = vld [vmem:[%s11 + $0x10] sm:$0xff]
        %v4410 = vld [vmem:[%s11 + $0x18] sm:$0xff]
        %v4411 = vld [vmem:[%s11 + $0x20] sm:$0xff]
        %v4412 = vld [vmem:[%s11 + $0x28] sm:$0xff]
        %v4413 = vld [vmem:[%s11 + $0x30] sm:$0xff]
        %v4414 = vld [vmem:[%s11 + $0x38] sm:$0xff]
        %v4415 = vld [vmem:[%s11 + $0x40] sm:$0xff]
        %v4416 = vld [vmem:[%s11 + $0x48] sm:$0xff]
        %v4417 = vld [vmem:[%s11 + $0x50] sm:$0xff]
        %v4418 = vld [vmem:[%s11 + $0x58] sm:$0xff]
        %v4419 = vld [vmem:[%s11 + $0x60] sm:$0xff]
        %v4420 = vld [vmem:[%s11 + $0x68] sm:$0xff]
        %v4421 = vld [vmem:[%s11 + $0x70] sm:$0xff]
        %v4422 = vld [vmem:[%s11 + $0x78] sm:$0xff]
        %v4423 = vld [vmem:[%s12] sm:$0x1]
        %v4425 = vperm.slane %v4423, 0
        %4427 = vmatpush.xpose.msra.mxu0 %v4422
        %4428 = vmatpush.xpose.msra.mxu0 %v4421
        %4429 = vmatpush.xpose.msra.mxu0 %v4420
        %4430 = vmatpush.xpose.msra.mxu0 %v4419
        %4431 = vmatpush.xpose.msra.mxu0 %v4418
        %4432 = vmatpush.xpose.msra.mxu0 %v4417
        %4433 = vmatpush.xpose.msra.mxu0 %v4416
        %4434 = vmatpush.xpose.msra.mxu0 %v4415
        %4435 = vmatpush.xpose.msra.mxu0 %v4414
        %4436 = vmatpush.xpose.msra.mxu0 %v4413
        %4437 = vmatpush.xpose.msra.mxu0 %v4412
        %4438 = vmatpush.xpose.msra.mxu0 %v4411
        %4439 = vmatpush.xpose.msra.mxu0 %v4410
        %4440 = vmatpush.xpose.msra.mxu0 %v4409
        %4441 = vmatpush.xpose.msra.mxu0 %v4408
        %4442 = vmatpush.xpose.msra.mxu0 %v4407
        %4443 = vmatmul.f32.gmra.mxu0 %v4386
        %v4444 = vpop.f32.mrf.mxu0
        %v4445 = vadd.f32 %v4425, %v4444
        %4446 = vmatmul.f32.gmra.mxu0 %v4387
        %v4447 = vpop.f32.mrf.mxu0
        %v4448 = vadd.f32 %v4425, %v4447
        %4449 = vmatmul.f32.gmra.mxu0 %v4388
        %v4450 = vpop.f32.mrf.mxu0
        %v4451 = vadd.f32 %v4425, %v4450
        %4452 = vmatmul.f32.gmra.mxu0 %v4389
        %v4453 = vpop.f32.mrf.mxu0
        %v4454 = vadd.f32 %v4425, %v4453
        %4455 = vmatmul.f32.gmra.mxu0 %v4390
        %v4456 = vpop.f32.mrf.mxu0
        %v4457 = vadd.f32 %v4425, %v4456
        %4458 = vmatmul.f32.gmra.mxu0 %v4391
        %v4459 = vpop.f32.mrf.mxu0
        %v4460 = vadd.f32 %v4425, %v4459
        %4461 = vmatmul.f32.gmra.mxu0 %v4392
        %v4462 = vpop.f32.mrf.mxu0
        %v4463 = vadd.f32 %v4425, %v4462
        %4464 = vmatmul.f32.gmra.mxu0 %v4393
        %v4465 = vpop.f32.mrf.mxu0
        %v4466 = vadd.f32 %v4425, %v4465
        %4467 = vmatmul.f32.gmra.mxu0 %v4394
        %v4468 = vpop.f32.mrf.mxu0
        %v4469 = vadd.f32 %v4425, %v4468
        %4470 = vmatmul.f32.gmra.mxu0 %v4395
        %v4471 = vpop.f32.mrf.mxu0
        %v4472 = vadd.f32 %v4425, %v4471
        %4473 = vmatmul.f32.gmra.mxu0 %v4396
        %v4474 = vpop.f32.mrf.mxu0
        %v4475 = vadd.f32 %v4425, %v4474
        %4476 = vmatmul.f32.gmra.mxu0 %v4397
        %v4477 = vpop.f32.mrf.mxu0
        %v4478 = vadd.f32 %v4425, %v4477
        %4479 = vmatmul.f32.gmra.mxu0 %v4398
        %v4480 = vpop.f32.mrf.mxu0
        %v4481 = vadd.f32 %v4425, %v4480
        %4482 = vmatmul.f32.gmra.mxu0 %v4399
        %v4483 = vpop.f32.mrf.mxu0
        %v4484 = vadd.f32 %v4425, %v4483
        %4485 = vmatmul.f32.gmra.mxu0 %v4400
        %v4486 = vpop.f32.mrf.mxu0
        %v4487 = vadd.f32 %v4425, %v4486
        %4488 = vmatmul.f32.gmra.mxu0 %v4401
        %v4489 = vpop.f32.mrf.mxu0
        %v4490 = vadd.f32 %v4425, %v4489
        %4491 = vmatmul.f32.gmra.mxu0 %v4402
        %v4492 = vpop.f32.mrf.mxu0
        %v4493 = vadd.f32 %v4425, %v4492
        %4494 = vmatmul.f32.gmra.mxu0 %v4403
        %v4495 = vpop.f32.mrf.mxu0
        %v4496 = vadd.f32 %v4425, %v4495
        %4497 = vmatmul.f32.gmra.mxu0 %v4404
        %v4498 = vpop.f32.mrf.mxu0
        %v4499 = vadd.f32 %v4425, %v4498
        %4500 = vmatmul.f32.gmra.mxu0 %v4405
        %v4501 = vpop.f32.mrf.mxu0
        %v4502 = vadd.f32 %v4425, %v4501
        %4503 = vmatmul.f32.gmra.mxu0 %v4406
        %v4504 = vpop.f32.mrf.mxu0
        %v4505 = vadd.f32 %v4425, %v4504
        %4506 = vdwg.mxu0
        %v4507 = vmax.f32 %v4445, 0.0
        %v4508 = vmax.f32 %v4448, 0.0
        %v4509 = vmax.f32 %v4451, 0.0
        %v4510 = vmax.f32 %v4454, 0.0
        %v4511 = vmax.f32 %v4457, 0.0
        %v4512 = vmax.f32 %v4460, 0.0
        %v4513 = vmax.f32 %v4463, 0.0
        %v4514 = vmax.f32 %v4466, 0.0
        %v4515 = vmax.f32 %v4469, 0.0
        %v4516 = vmax.f32 %v4472, 0.0
        %v4517 = vmax.f32 %v4475, 0.0
        %v4518 = vmax.f32 %v4478, 0.0
        %v4519 = vmax.f32 %v4481, 0.0
        %v4520 = vmax.f32 %v4484, 0.0
        %v4521 = vmax.f32 %v4487, 0.0
        %v4522 = vmax.f32 %v4490, 0.0
        %v4523 = vmax.f32 %v4493, 0.0
        %v4524 = vmax.f32 %v4496, 0.0
        %v4525 = vmax.f32 %v4499, 0.0
        %v4526 = vmax.f32 %v4502, 0.0
        %v4527 = vmax.f32 %v4505, 0.0
        %v4528 = vld [vmem:[%s13] sm:$0xff]
        %v4529 = vld [vmem:[%s13 + $0x8] sm:$0xff]
        %v4530 = vld [vmem:[%s13 + $0x10] sm:$0xff]
        %v4531 = vld [vmem:[%s13 + $0x18] sm:$0xff]
        %v4532 = vld [vmem:[%s13 + $0x20] sm:$0xff]
        %v4533 = vld [vmem:[%s13 + $0x28] sm:$0xff]
        %v4534 = vld [vmem:[%s13 + $0x30] sm:$0xff]
        %v4535 = vld [vmem:[%s13 + $0x38] sm:$0xff]
        %v4536 = vld [vmem:[%s13 + $0x40] sm:$0xff]
        %v4537 = vld [vmem:[%s13 + $0x48] sm:$0xff]
        %v4538 = vld [vmem:[%s13 + $0x50] sm:$0xff]
        %v4539 = vld [vmem:[%s13 + $0x58] sm:$0xff]
        %v4540 = vld [vmem:[%s13 + $0x60] sm:$0xff]
        %v4541 = vld [vmem:[%s13 + $0x68] sm:$0xff]
        %v4542 = vld [vmem:[%s13 + $0x70] sm:$0xff]
        %v4543 = vld [vmem:[%s13 + $0x78] sm:$0xff]
        %v4544 = vld [vmem:[%s14] sm:$0x1]
        %v4546 = vperm.slane %v4544, 0
        %4548 = vmatpush.xpose.msra.mxu0 %v4543
        %4549 = vmatpush.xpose.msra.mxu0 %v4542
        %4550 = vmatpush.xpose.msra.mxu0 %v4541
        %4551 = vmatpush.xpose.msra.mxu0 %v4540
        %4552 = vmatpush.xpose.msra.mxu0 %v4539
        %4553 = vmatpush.xpose.msra.mxu0 %v4538
        %4554 = vmatpush.xpose.msra.mxu0 %v4537
        %4555 = vmatpush.xpose.msra.mxu0 %v4536
        %4556 = vmatpush.xpose.msra.mxu0 %v4535
        %4557 = vmatpush.xpose.msra.mxu0 %v4534
        %4558 = vmatpush.xpose.msra.mxu0 %v4533
        %4559 = vmatpush.xpose.msra.mxu0 %v4532
        %4560 = vmatpush.xpose.msra.mxu0 %v4531
        %4561 = vmatpush.xpose.msra.mxu0 %v4530
        %4562 = vmatpush.xpose.msra.mxu0 %v4529
        %4563 = vmatpush.xpose.msra.mxu0 %v4528
        %4564 = vmatmul.f32.gmra.mxu0 %v4507
        %v4565 = vpop.f32.mrf.mxu0
        %v4566 = vadd.f32 %v4546, %v4565
        %4567 = vmatmul.f32.gmra.mxu0 %v4508
        %v4568 = vpop.f32.mrf.mxu0
        %v4569 = vadd.f32 %v4546, %v4568
        %4570 = vmatmul.f32.gmra.mxu0 %v4509
        %v4571 = vpop.f32.mrf.mxu0
        %v4572 = vadd.f32 %v4546, %v4571
        %4573 = vmatmul.f32.gmra.mxu0 %v4510
        %v4574 = vpop.f32.mrf.mxu0
        %v4575 = vadd.f32 %v4546, %v4574
        %4576 = vmatmul.f32.gmra.mxu0 %v4511
        %v4577 = vpop.f32.mrf.mxu0
        %v4578 = vadd.f32 %v4546, %v4577
        %4579 = vmatmul.f32.gmra.mxu0 %v4512
        %v4580 = vpop.f32.mrf.mxu0
        %v4581 = vadd.f32 %v4546, %v4580
        %4582 = vmatmul.f32.gmra.mxu0 %v4513
        %v4583 = vpop.f32.mrf.mxu0
        %v4584 = vadd.f32 %v4546, %v4583
        %4585 = vmatmul.f32.gmra.mxu0 %v4514
        %v4586 = vpop.f32.mrf.mxu0
        %v4587 = vadd.f32 %v4546, %v4586
        %4588 = vmatmul.f32.gmra.mxu0 %v4515
        %v4589 = vpop.f32.mrf.mxu0
        %v4590 = vadd.f32 %v4546, %v4589
        %4591 = vmatmul.f32.gmra.mxu0 %v4516
        %v4592 = vpop.f32.mrf.mxu0
        %v4593 = vadd.f32 %v4546, %v4592
        %4594 = vmatmul.f32.gmra.mxu0 %v4517
        %v4595 = vpop.f32.mrf.mxu0
        %v4596 = vadd.f32 %v4546, %v4595
        %4597 = vmatmul.f32.gmra.mxu0 %v4518
        %v4598 = vpop.f32.mrf.mxu0
        %v4599 = vadd.f32 %v4546, %v4598
        %4600 = vmatmul.f32.gmra.mxu0 %v4519
        %v4601 = vpop.f32.mrf.mxu0
        %v4602 = vadd.f32 %v4546, %v4601
        %4603 = vmatmul.f32.gmra.mxu0 %v4520
        %v4604 = vpop.f32.mrf.mxu0
        %v4605 = vadd.f32 %v4546, %v4604
        %4606 = vmatmul.f32.gmra.mxu0 %v4521
        %v4607 = vpop.f32.mrf.mxu0
        %v4608 = vadd.f32 %v4546, %v4607
        %4609 = vmatmul.f32.gmra.mxu0 %v4522
        %v4610 = vpop.f32.mrf.mxu0
        %v4611 = vadd.f32 %v4546, %v4610
        %4612 = vmatmul.f32.gmra.mxu0 %v4523
        %v4613 = vpop.f32.mrf.mxu0
        %v4614 = vadd.f32 %v4546, %v4613
        %4615 = vmatmul.f32.gmra.mxu0 %v4524
        %v4616 = vpop.f32.mrf.mxu0
        %v4617 = vadd.f32 %v4546, %v4616
        %4618 = vmatmul.f32.gmra.mxu0 %v4525
        %v4619 = vpop.f32.mrf.mxu0
        %v4620 = vadd.f32 %v4546, %v4619
        %4621 = vmatmul.f32.gmra.mxu0 %v4526
        %v4622 = vpop.f32.mrf.mxu0
        %v4623 = vadd.f32 %v4546, %v4622
        %4624 = vmatmul.f32.gmra.mxu0 %v4527
        %v4625 = vpop.f32.mrf.mxu0
        %v4626 = vadd.f32 %v4546, %v4625
        %4627 = vdwg.mxu0
        %v4628 = vmax.f32 %v4566, 0.0
        %v4629 = vmax.f32 %v4569, 0.0
        %v4630 = vmax.f32 %v4572, 0.0
        %v4631 = vmax.f32 %v4575, 0.0
        %v4632 = vmax.f32 %v4578, 0.0
        %v4633 = vmax.f32 %v4581, 0.0
        %v4634 = vmax.f32 %v4584, 0.0
        %v4635 = vmax.f32 %v4587, 0.0
        %v4636 = vmax.f32 %v4590, 0.0
        %v4637 = vmax.f32 %v4593, 0.0
        %v4638 = vmax.f32 %v4596, 0.0
        %v4639 = vmax.f32 %v4599, 0.0
        %v4640 = vmax.f32 %v4602, 0.0
        %v4641 = vmax.f32 %v4605, 0.0
        %v4642 = vmax.f32 %v4608, 0.0
        %v4643 = vmax.f32 %v4611, 0.0
        %v4644 = vmax.f32 %v4614, 0.0
        %v4645 = vmax.f32 %v4617, 0.0
        %v4646 = vmax.f32 %v4620, 0.0
        %v4647 = vmax.f32 %v4623, 0.0
        %v4648 = vmax.f32 %v4626, 0.0
        %v4649 = vld [vmem:[#allocation3] sm:$0xff]
        %v4650 = vld [vmem:[#allocation3 + $0x8] sm:$0xff]
        %v4651 = vld [vmem:[#allocation3 + $0x10] sm:$0xff]
        %v4652 = vld [vmem:[#allocation3 + $0x18] sm:$0xff]
        %v4653 = vld [vmem:[#allocation3 + $0x20] sm:$0xff]
        %v4654 = vld [vmem:[#allocation3 + $0x28] sm:$0xff]
        %v4655 = vld [vmem:[#allocation3 + $0x30] sm:$0xff]
        %v4656 = vld [vmem:[#allocation3 + $0x38] sm:$0xff]
        %v4657 = vld [vmem:[#allocation3 + $0x40] sm:$0xff]
        %v4658 = vld [vmem:[#allocation3 + $0x48] sm:$0xff]
        %v4659 = vld [vmem:[#allocation3 + $0x50] sm:$0xff]
        %v4660 = vld [vmem:[#allocation3 + $0x58] sm:$0xff]
        %v4661 = vld [vmem:[#allocation3 + $0x60] sm:$0xff]
        %v4662 = vld [vmem:[#allocation3 + $0x68] sm:$0xff]
        %v4663 = vld [vmem:[#allocation3 + $0x70] sm:$0xff]
        %v4664 = vld [vmem:[#allocation3 + $0x78] sm:$0xff]
        %v4665 = vld [vmem:[%s16] sm:$0x1]
        %v4667 = vperm.slane %v4665, 0
        %4669 = vmatpush.xpose.msra.mxu0 %v4664
        %4670 = vmatpush.xpose.msra.mxu0 %v4663
        %4671 = vmatpush.xpose.msra.mxu0 %v4662
        %4672 = vmatpush.xpose.msra.mxu0 %v4661
        %4673 = vmatpush.xpose.msra.mxu0 %v4660
        %4674 = vmatpush.xpose.msra.mxu0 %v4659
        %4675 = vmatpush.xpose.msra.mxu0 %v4658
        %4676 = vmatpush.xpose.msra.mxu0 %v4657
        %4677 = vmatpush.xpose.msra.mxu0 %v4656
        %4678 = vmatpush.xpose.msra.mxu0 %v4655
        %4679 = vmatpush.xpose.msra.mxu0 %v4654
        %4680 = vmatpush.xpose.msra.mxu0 %v4653
        %4681 = vmatpush.xpose.msra.mxu0 %v4652
        %4682 = vmatpush.xpose.msra.mxu0 %v4651
        %4683 = vmatpush.xpose.msra.mxu0 %v4650
        %4684 = vmatpush.xpose.msra.mxu0 %v4649
        %4685 = vmatmul.f32.gmra.mxu0 %v4628
        %v4686 = vpop.f32.mrf.mxu0
        %v4687 = vadd.f32 %v4667, %v4686
        %4688 = vmatmul.f32.gmra.mxu0 %v4629
        %v4689 = vpop.f32.mrf.mxu0
        %v4690 = vadd.f32 %v4667, %v4689
        %4691 = vmatmul.f32.gmra.mxu0 %v4630
        %v4692 = vpop.f32.mrf.mxu0
        %v4693 = vadd.f32 %v4667, %v4692
        %4694 = vmatmul.f32.gmra.mxu0 %v4631
        %v4695 = vpop.f32.mrf.mxu0
        %v4696 = vadd.f32 %v4667, %v4695
        %4697 = vmatmul.f32.gmra.mxu0 %v4632
        %v4698 = vpop.f32.mrf.mxu0
        %v4699 = vadd.f32 %v4667, %v4698
        %4700 = vmatmul.f32.gmra.mxu0 %v4633
        %v4701 = vpop.f32.mrf.mxu0
        %v4702 = vadd.f32 %v4667, %v4701
        %4703 = vmatmul.f32.gmra.mxu0 %v4634
        %v4704 = vpop.f32.mrf.mxu0
        %v4705 = vadd.f32 %v4667, %v4704
        %4706 = vmatmul.f32.gmra.mxu0 %v4635
        %v4707 = vpop.f32.mrf.mxu0
        %v4708 = vadd.f32 %v4667, %v4707
        %4709 = vmatmul.f32.gmra.mxu0 %v4636
        %v4710 = vpop.f32.mrf.mxu0
        %v4711 = vadd.f32 %v4667, %v4710
        %4712 = vmatmul.f32.gmra.mxu0 %v4637
        %v4713 = vpop.f32.mrf.mxu0
        %v4714 = vadd.f32 %v4667, %v4713
        %4715 = vmatmul.f32.gmra.mxu0 %v4638
        %v4716 = vpop.f32.mrf.mxu0
        %v4717 = vadd.f32 %v4667, %v4716
        %4718 = vmatmul.f32.gmra.mxu0 %v4639
        %v4719 = vpop.f32.mrf.mxu0
        %v4720 = vadd.f32 %v4667, %v4719
        %4721 = vmatmul.f32.gmra.mxu0 %v4640
        %v4722 = vpop.f32.mrf.mxu0
        %v4723 = vadd.f32 %v4667, %v4722
        %4724 = vmatmul.f32.gmra.mxu0 %v4641
        %v4725 = vpop.f32.mrf.mxu0
        %v4726 = vadd.f32 %v4667, %v4725
        %4727 = vmatmul.f32.gmra.mxu0 %v4642
        %v4728 = vpop.f32.mrf.mxu0
        %v4729 = vadd.f32 %v4667, %v4728
        %4730 = vmatmul.f32.gmra.mxu0 %v4643
        %v4731 = vpop.f32.mrf.mxu0
        %v4732 = vadd.f32 %v4667, %v4731
        %4733 = vmatmul.f32.gmra.mxu0 %v4644
        %v4734 = vpop.f32.mrf.mxu0
        %v4735 = vadd.f32 %v4667, %v4734
        %4736 = vmatmul.f32.gmra.mxu0 %v4645
        %v4737 = vpop.f32.mrf.mxu0
        %v4738 = vadd.f32 %v4667, %v4737
        %4739 = vmatmul.f32.gmra.mxu0 %v4646
        %v4740 = vpop.f32.mrf.mxu0
        %v4741 = vadd.f32 %v4667, %v4740
        %4742 = vmatmul.f32.gmra.mxu0 %v4647
        %v4743 = vpop.f32.mrf.mxu0
        %v4744 = vadd.f32 %v4667, %v4743
        %4745 = vmatmul.f32.gmra.mxu0 %v4648
        %v4746 = vpop.f32.mrf.mxu0
        %v4747 = vadd.f32 %v4667, %v4746
        %4748 = vdwg.mxu0
        %4749 = vst [vmem:[%s565] sm:$0xff] %v4687
        %4750 = vst [vmem:[%s565 + $0x8] sm:$0xff] %v4690
        %4751 = vst [vmem:[%s565 + $0x10] sm:$0xff] %v4693
        %4752 = vst [vmem:[%s565 + $0x18] sm:$0xff] %v4696
        %4753 = vst [vmem:[%s565 + $0x20] sm:$0xff] %v4699
        %4754 = vst [vmem:[%s565 + $0x28] sm:$0xff] %v4702
        %4755 = vst [vmem:[%s565 + $0x30] sm:$0xff] %v4705
        %4756 = vst [vmem:[%s565 + $0x38] sm:$0xff] %v4708
        %4757 = vst [vmem:[%s565 + $0x40] sm:$0xff] %v4711
        %4758 = vst [vmem:[%s565 + $0x48] sm:$0xff] %v4714
        %4759 = vst [vmem:[%s565 + $0x50] sm:$0xff] %v4717
        %4760 = vst [vmem:[%s565 + $0x58] sm:$0xff] %v4720
        %4761 = vst [vmem:[%s565 + $0x60] sm:$0xff] %v4723
        %4762 = vst [vmem:[%s565 + $0x68] sm:$0xff] %v4726
        %4763 = vst [vmem:[%s565 + $0x70] sm:$0xff] %v4729
        %4764 = vst [vmem:[%s565 + $0x78] sm:$0xff] %v4732
        %4765 = vst [vmem:[%s565 + $0x80] sm:$0xff] %v4735
        %4766 = vst [vmem:[%s565 + $0x88] sm:$0xff] %v4738
        %4767 = vst [vmem:[%s565 + $0x90] sm:$0xff] %v4741
        %4768 = vst [vmem:[%s565 + $0x98] sm:$0xff] %v4744
        %4769 = vst [vmem:[%s565 + $0xa0] sm:$0xff] %v4747
        %p4770 = scmp.lt.s32.totalorder %s29, 1
        %s4771 = scalar_select %p4770, %s29, 1
        %s4772 = smul.addr %s4771, 21
        %s4773 = smul.addr %s4772, 8
        %s4774 = scalar_lea.vmem %s17, %s4773
        // Predicated region
        $region93: #{cnn5x5_bc_forward.1} parent=87 // pred_check
          %p4775 = pneg %p409
        $region94: #{cnn5x5_bc_forward.1} parent=87 // pred_check_branch
          %4777 = sbr.rel (%p4775) target = $region96
        $region95: #{cnn5x5_bc_forward.1} parent=87 // pred_region
          _
        $region96: #{cnn5x5_bc_forward.1} parent=87 // pred_fallthru
          _
      $region88: #{cnn5x5_bc_forward.1} parent=5 // pred_fallthru
        _
      %p4778 = scmp.le.s32.totalorder 2, %s24
      // Predicated region
      $region97: #{cnn5x5_bc_forward.1} parent=5 // pred_check
        %p4779 = pneg %p4778
      $region98: #{cnn5x5_bc_forward.1} parent=5 // pred_check_branch
        %4781 = sbr.rel (%p4779) target = $region100
      $region99: #{cnn5x5_bc_forward.1} parent=5 // pred_region
        %s4782 = ssub.s32 %s24, 2
        // Predicated region
        $region101: #{cnn5x5_bc_forward.1} parent=99 // pred_check
          %p4783 = pneg %p415
        $region102: #{cnn5x5_bc_forward.1} parent=99 // pred_check_branch
          %4785 = sbr.rel (%p4783) target = $region104
        $region103: #{cnn5x5_bc_forward.1} parent=99 // pred_region
          %p4786 = scmp.lt.s32.totalorder %s30, 1
          %s4787 = scalar_select %p4786, %s30, 1
          %s4788 = smul.addr %s4787, 21
          %s4789 = smul.addr %s4788, 8
          %s4790 = scalar_lea.vmem %s17, %s4789
        $region104: #{cnn5x5_bc_forward.1} parent=99 // pred_fallthru
          _
      $region100: #{cnn5x5_bc_forward.1} parent=5 // pred_fallthru
        _
    $region6: #{cnn5x5_bc_forward.1} parent=1 // loop_footer
      %s28 = sadd.s32 1, %s24
    $region7: #{cnn5x5_bc_forward.1} parent=1 // loop_footer_branch
      %23 = sbr.rel target = $region3
    $region8: #{cnn5x5_bc_forward.1} parent=1 // loop_exit
      _
    %4791 = vsyncpa [#allocation4], 1
    %s4792 = scalar_lea.sflag [#allocation4], 1
    %4793 = vsyncpa %s4792, 1

</llo_original>
